<compile_context>
chip_gen: v6e
topology: v6e:2x2x1
jax: 0.10.0
libtpu: 0.0.40
codegen_flags: <defaults>
</compile_context>

<pallas_src>
import functools

import jax
import jax.numpy as jnp
from jax.experimental import pallas as pl
from jax.experimental.pallas import tpu as pltpu


# ----------------------------------------------------------------------------
# Fused decoder-layer kernel (one (batch, q-tile) per grid step)
# ----------------------------------------------------------------------------
def _decoder_layer_kernel(trgq_ref, trgkv_ref, enc_ref, tmask_ref, smask_ref,
                          *rest, n_heads, head_dim, mm_dtype):
    (wq1_ref, bq1_ref, wkv1_ref, bkv1_ref, wo1_ref, bo1_ref, g1_ref, be1_ref,
     wq2_ref, bq2_ref, wkv2_ref, bkv2_ref, wo2_ref, bo2_ref, g2_ref, be2_ref,
     w1_ref, b1_ref, w2_ref, b2_ref, g3_ref, be3_ref,
     out_ref, attn_ref) = rest

    f32 = jnp.float32
    D = n_heads * head_dim

    xq = trgq_ref[0]        # (tq, D)  query tile / residual source
    xkv = trgkv_ref[0]      # (T, D)   full target sequence (self-attn K/V)
    enc = enc_ref[0]        # (S, D)   encoder output (cross-attn K/V)
    tq, T, S = xq.shape[0], xkv.shape[0], enc.shape[0]

    def cast(a):
        # Cast only at matmul inputs; all elementwise math stays f32.
        return a.astype(mm_dtype)

    def layer_norm(r, g_ref, b_ref):
        mu = jnp.mean(r, axis=-1, keepdims=True)
        var = jnp.mean((r - mu) ** 2, axis=-1, keepdims=True)
        return (r - mu) * jax.lax.rsqrt(var + 1e-5) * g_ref[...] + b_ref[...]

    def mha(q, k, v, mask_b, wo_ref, bo_ref, attn_out_ref):
        """q:(tq,D), k/v:(Tk,D), mask_b:(tq,Tk). Scale already folded into q."""
        acc = jnp.zeros((q.shape[0], D), f32)
        for h in range(n_heads):
            sl = slice(h * head_dim, (h + 1) * head_dim)
            e = jax.lax.dot_general(cast(q[:, sl]), cast(k[:, sl]),
                                    (((1,), (1,)), ((), ())),
                                    preferred_element_type=f32)
            e = jnp.where(mask_b != 0, e, jnp.float32(-1e10))
            e = e - jnp.max(e, axis=-1, keepdims=True)
            p = jnp.exp(e)
            p = p * pl.reciprocal(jnp.sum(p, axis=-1, keepdims=True),
                                  approx=True)
            if attn_out_ref is not None:
                attn_out_ref[0, h] = p.astype(attn_out_ref.dtype)
            ctx = jnp.dot(cast(p), cast(v[:, sl]), preferred_element_type=f32)
            # accumulate the output projection per head (no concatenate)
            acc = acc + jnp.dot(cast(ctx), wo_ref[h],
                                preferred_element_type=f32)
        return acc + bo_ref[...]

    # ---- 1) masked self-attention (probs never written to HBM) ----
    q1 = jnp.dot(cast(xq), wq1_ref[...], preferred_element_type=f32) + bq1_ref[...]
    kv1 = jnp.dot(cast(xkv), wkv1_ref[...], preferred_element_type=f32) + bkv1_ref[...]
    tmask = jnp.broadcast_to(tmask_ref[0, 0], (tq, T))
    sa = mha(q1, kv1[:, :D], kv1[:, D:], tmask, wo1_ref, bo1_ref, None)
    t1 = layer_norm(xq + sa, g1_ref, be1_ref)

    # ---- 2) encoder-decoder attention (probs are the returned `attention`) ----
    q2 = jnp.dot(cast(t1), wq2_ref[...], preferred_element_type=f32) + bq2_ref[...]
    kv2 = jnp.dot(cast(enc), wkv2_ref[...], preferred_element_type=f32) + bkv2_ref[...]
    smask = jnp.broadcast_to(smask_ref[0, 0], (tq, S))
    ca = mha(q2, kv2[:, :D], kv2[:, D:], smask, wo2_ref, bo2_ref, attn_ref)
    t2 = layer_norm(t1 + ca, g2_ref, be2_ref)

    # ---- 3) position-wise feed-forward ----
    hidden = jnp.maximum(
        jnp.dot(cast(t2), w1_ref[...], preferred_element_type=f32) + b1_ref[...],
        0.0)
    y = jnp.dot(cast(hidden), w2_ref[...], preferred_element_type=f32) + b2_ref[...]
    out_ref[0] = layer_norm(t2 + y, g3_ref, be3_ref).astype(out_ref.dtype)


# ----------------------------------------------------------------------------
# Wrapper
# ----------------------------------------------------------------------------
def _full_spec(shape):
    nd = len(shape)
    return pl.BlockSpec(shape, lambda b, qi, _nd=nd: (0,) * _nd)


def _mask_spec(mask_shape, q_len, kv_len, q_block):
    """BlockSpec for a broadcastable mask of shape (B|1, 1, q_len|1, kv_len|1)."""
    mb, mh, mq, mk = mask_shape
    assert mh == 1 and mq in (1, q_len) and mk in (1, kv_len), mask_shape
    take_b = mb != 1
    take_q = mq == q_len and q_len != 1
    bq = q_block if take_q else mq

    def idx(b, qi, _tb=take_b, _tq=take_q):
        return ((b if _tb else 0), 0, (qi if _tq else 0), 0)

    return pl.BlockSpec((1, 1, bq, mk), idx)


def _prep_attn(p, scale, mm_dtype, n_heads, head_dim):
    """Pre-pack attention weights: fold 1/scale into Q, fuse K|V, head-split Wo."""
    d = p["wq"].shape[0]
    inv = 1.0 / scale
    wq = (p["wq"] * inv).astype(mm_dtype)
    bq = (p["bq"] * inv).astype(jnp.float32)
    wkv = jnp.concatenate([p["wk"], p["wv"]], axis=1).astype(mm_dtype)
    bkv = jnp.concatenate([p["bk"], p["bv"]], axis=1).astype(jnp.float32)
    wo_h = p["wo"].reshape(n_heads, head_dim, d).astype(mm_dtype)
    return (wq, bq, wkv, bkv, wo_h,
            p["bo"].astype(jnp.float32),
            p["ln_g"].astype(jnp.float32), p["ln_b"].astype(jnp.float32))


def decoder_layer(trg, enc_src, trg_mask, src_mask, params, n_heads,
                  q_block=None, matmul_dtype=jnp.float32):
    """Forward pass of DecoderLayer (eval mode: dropout = identity)."""
    B, T, D = trg.shape
    S = enc_src.shape[1]
    head_dim = D // n_heads
    if q_block is None:
        q_block = T
    assert T % q_block == 0
    assert q_block == T or q_block % 8 == 0
    nq = T // q_block
    scale = float(head_dim) ** 0.5

    sa = _prep_attn(params["self_attn"], scale, matmul_dtype, n_heads, head_dim)
    ca = _prep_attn(params["enc_attn"], scale, matmul_dtype, n_heads, head_dim)
    pf = params["pff"]
    ffn = (pf["w1"].astype(matmul_dtype), pf["b1"].astype(jnp.float32),
           pf["w2"].astype(matmul_dtype), pf["b2"].astype(jnp.float32),
           pf["ln_g"].astype(jnp.float32), pf["ln_b"].astype(jnp.float32))
    weights = (*sa, *ca, *ffn)

    tmask = trg_mask.astype(jnp.float32)   # keep compact shape, only fix dtype
    smask = src_mask.astype(jnp.float32)

    in_specs = [
        pl.BlockSpec((1, q_block, D), lambda b, qi: (b, qi, 0)),  # trg: q-tile
        pl.BlockSpec((1, T, D), lambda b, qi: (b, 0, 0)),         # trg: full (K/V)
        pl.BlockSpec((1, S, D), lambda b, qi: (b, 0, 0)),         # enc_src
        _mask_spec(tmask.shape, T, T, q_block),
        _mask_spec(smask.shape, T, S, q_block),
    ] + [_full_spec(w.shape) for w in weights]

    out_specs = (
        pl.BlockSpec((1, q_block, D), lambda b, qi: (b, qi, 0)),
        pl.BlockSpec((1, n_heads, q_block, S), lambda b, qi: (b, 0, qi, 0)),
    )
    out_shape = (
        jax.ShapeDtypeStruct((B, T, D), jnp.float32),
        jax.ShapeDtypeStruct((B, n_heads, T, S), jnp.float32),
    )

    kernel = functools.partial(_decoder_layer_kernel, n_heads=n_heads,
                               head_dim=head_dim, mm_dtype=matmul_dtype)
    return pl.pallas_call(
        kernel,
        grid=(B, nq),
        in_specs=in_specs,
        out_specs=out_specs,
        out_shape=out_shape,
        compiler_params=pltpu.CompilerParams(
            dimension_semantics=("parallel", "parallel"),
            vmem_limit_bytes=48 * 1024 * 1024),
    )(trg, trg, enc_src, tmask, smask, *weights)


# ----------------------------------------------------------------------------
# Pure-JAX reference (for verification)
# ----------------------------------------------------------------------------
def _ref_attention(q_in, kv_in, mask, p, n_heads):
    B, Tq, D = q_in.shape
    Tk = kv_in.shape[1]
    hd = D // n_heads
    Q = q_in @ p["wq"] + p["bq"][0]
    K = kv_in @ p["wk"] + p["bk"][0]
    V = kv_in @ p["wv"] + p["bv"][0]
    Q = Q.reshape(B, Tq, n_heads, hd).transpose(0, 2, 1, 3)
    K = K.reshape(B, Tk, n_heads, hd).transpose(0, 2, 1, 3)
    V = V.reshape(B, Tk, n_heads, hd).transpose(0, 2, 1, 3)
    e = jnp.einsum("bhqd,bhkd->bhqk", Q, K) / jnp.sqrt(jnp.float32(hd))
    e = jnp.where(mask == 0, -1e10, e)
    a = jax.nn.softmax(e, axis=-1)
    w = jnp.einsum("bhqk,bhkd->bhqd", a, V)
    w = w.transpose(0, 2, 1, 3).reshape(B, Tq, D)
    o = w @ p["wo"] + p["bo"][0]
    r = q_in + o
    mu = r.mean(-1, keepdims=True)
    var = ((r - mu) ** 2).mean(-1, keepdims=True)
    y = (r - mu) / jnp.sqrt(var + 1e-5) * p["ln_g"][0] + p["ln_b"][0]
    return y, a


def _ref_decoder(trg, enc_src, trg_mask, src_mask, params, n_heads):
    t1, _ = _ref_attention(trg, trg, trg_mask, params["self_attn"], n_heads)
    t2, attn = _ref_attention(t1, enc_src, src_mask, params["enc_attn"], n_heads)
    p = params["pff"]
    h = jnp.maximum(t2 @ p["w1"] + p["b1"][0], 0.0)
    y = h @ p["w2"] + p["b2"][0]
    r = t2 + y
    mu = r.mean(-1, keepdims=True)
    var = ((r - mu) ** 2).mean(-1, keepdims=True)
    t3 = (r - mu) / jnp.sqrt(var + 1e-5) * p["ln_g"][0] + p["ln_b"][0]
    return t3, attn


# ----------------------------------------------------------------------------
# Parameter init
# ----------------------------------------------------------------------------
def init_params(key, d_model, pff_dim):
    def lin(k, fan_in, fan_out):
        kw, kb = jax.random.split(k)
        w = jax.random.normal(kw, (fan_in, fan_out), jnp.float32) * 0.02
        b = jax.random.normal(kb, (1, fan_out), jnp.float32) * 0.02
        return w, b

    keys = jax.random.split(key, 16)

    def attn_params(ks):
        wq, bq = lin(ks[0], d_model, d_model)
        wk, bk = lin(ks[1], d_model, d_model)
        wv, bv = lin(ks[2], d_model, d_model)
        wo, bo = lin(ks[3], d_model, d_model)
        return dict(wq=wq, bq=bq, wk=wk, bk=bk, wv=wv, bv=bv, wo=wo, bo=bo,
                    ln_g=jnp.ones((1, d_model), jnp.float32),
                    ln_b=jnp.zeros((1, d_model), jnp.float32))

    w1, b1 = lin(keys[8], d_model, pff_dim)
    w2, b2 = lin(keys[9], pff_dim, d_model)
    return dict(
        self_attn=attn_params(keys[0:4]),
        enc_attn=attn_params(keys[4:8]),
        pff=dict(w1=w1, b1=b1, w2=w2, b2=b2,
                 ln_g=jnp.ones((1, d_model), jnp.float32),
                 ln_b=jnp.zeros((1, d_model), jnp.float32)),
    )


# ----------------------------------------------------------------------------
if __name__ == "__main__":
    B, T, S = 2, 16, 16
    D, H, P = 32, 4, 64

    key = jax.random.PRNGKey(0)
    k_trg, k_src, k_par = jax.random.split(key, 3)

    trg = jax.random.normal(k_trg, (B, T, D), jnp.float32)
    enc_src = jax.random.normal(k_src, (B, S, D), jnp.float32)

    # Compact masks (no dense broadcast): causal (1,1,T,T), padding (B,1,1,S).
    trg_mask = jnp.tril(jnp.ones((T, T), jnp.float32)).reshape(1, 1, T, T)
    src_lens = jnp.array([S, S - 5])
    src_mask = (jnp.arange(S)[None, :] < src_lens[:, None]).astype(
        jnp.float32).reshape(B, 1, 1, S)

    params = init_params(k_par, D, P)

    # f32 matmul path (q-tiled: grid = (B, T // 8)).
    out, attention = decoder_layer(trg, enc_src, trg_mask, src_mask, params, H,
                                   q_block=8)
    out = jax.block_until_ready(out)
    attention = jax.block_until_ready(attention)

    ref_out, ref_attn = _ref_decoder(trg, enc_src, trg_mask, src_mask, params, H)

    assert out.shape == (B, T, D)
    assert attention.shape == (B, H, T, S)
    # Tolerance accounts for the EUP approximate reciprocal in the softmax.
    assert jnp.allclose(out, ref_out, atol=1e-2, rtol=1e-2)
    assert jnp.allclose(attention, ref_attn, atol=1e-2, rtol=1e-2)

    # bf16-matmul fast path (MXU bf16, f32 accumulate) — looser tolerance.
    out_bf, attn_bf = decoder_layer(trg, enc_src, trg_mask, src_mask, params, H,
                                    q_block=8, matmul_dtype=jnp.bfloat16)
    out_bf = jax.block_until_ready(out_bf)
    attn_bf = jax.block_until_ready(attn_bf)
    assert jnp.allclose(out_bf, ref_out, atol=1e-1, rtol=1e-1)
    assert jnp.allclose(attn_bf, ref_attn, atol=1e-1, rtol=1e-1)

    print("KERNEL_OK")
</pallas_src>

<mosaic_0001>
module attributes {stable_mosaic.version = 11 : i64} {
  func.func @_decoder_layer_kernel(%arg0: i32, %arg1: i32, %arg2: memref<1x8x32xf32, #tpu.memory_space<vmem>>, %arg3: memref<1x16x32xf32, #tpu.memory_space<vmem>>, %arg4: memref<1x16x32xf32, #tpu.memory_space<vmem>>, %arg5: memref<1x1x8x16xf32, #tpu.memory_space<vmem>>, %arg6: memref<1x1x1x16xf32, #tpu.memory_space<vmem>>, %arg7: memref<32x32xf32, #tpu.memory_space<vmem>>, %arg8: memref<1x32xf32, #tpu.memory_space<vmem>>, %arg9: memref<32x64xf32, #tpu.memory_space<vmem>>, %arg10: memref<1x64xf32, #tpu.memory_space<vmem>>, %arg11: memref<4x8x32xf32, #tpu.memory_space<vmem>>, %arg12: memref<1x32xf32, #tpu.memory_space<vmem>>, %arg13: memref<1x32xf32, #tpu.memory_space<vmem>>, %arg14: memref<1x32xf32, #tpu.memory_space<vmem>>, %arg15: memref<32x32xf32, #tpu.memory_space<vmem>>, %arg16: memref<1x32xf32, #tpu.memory_space<vmem>>, %arg17: memref<32x64xf32, #tpu.memory_space<vmem>>, %arg18: memref<1x64xf32, #tpu.memory_space<vmem>>, %arg19: memref<4x8x32xf32, #tpu.memory_space<vmem>>, %arg20: memref<1x32xf32, #tpu.memory_space<vmem>>, %arg21: memref<1x32xf32, #tpu.memory_space<vmem>>, %arg22: memref<1x32xf32, #tpu.memory_space<vmem>>, %arg23: memref<32x64xf32, #tpu.memory_space<vmem>>, %arg24: memref<1x64xf32, #tpu.memory_space<vmem>>, %arg25: memref<64x32xf32, #tpu.memory_space<vmem>>, %arg26: memref<1x32xf32, #tpu.memory_space<vmem>>, %arg27: memref<1x32xf32, #tpu.memory_space<vmem>>, %arg28: memref<1x32xf32, #tpu.memory_space<vmem>>, %arg29: memref<1x8x32xf32, #tpu.memory_space<vmem>>, %arg30: memref<1x4x8x16xf32, #tpu.memory_space<vmem>>) attributes {dimension_semantics = [#tpu.dimension_semantics<parallel>, #tpu.dimension_semantics<parallel>], iteration_bounds = array<i64: 2, 2>, scalar_prefetch = 0 : i64, scratch_operands = 0 : i64, tpu.core_type = #tpu.core_type<tc>, window_params = [{transform_indices = @transform_0, window_bounds = array<i64: 1, 8, 32>}, {transform_indices = @transform_1, window_bounds = array<i64: 1, 16, 32>}, {transform_indices = @transform_2, window_bounds = array<i64: 1, 16, 32>}, {transform_indices = @transform_3, window_bounds = array<i64: 1, 1, 8, 16>}, {transform_indices = @transform_4, window_bounds = array<i64: 1, 1, 1, 16>}, {pipeline_mode = #tpu.pipeline_mode<synchronous>, transform_indices = @transform_5, window_bounds = array<i64: 32, 32>}, {pipeline_mode = #tpu.pipeline_mode<synchronous>, transform_indices = @transform_6, window_bounds = array<i64: 1, 32>}, {pipeline_mode = #tpu.pipeline_mode<synchronous>, transform_indices = @transform_7, window_bounds = array<i64: 32, 64>}, {pipeline_mode = #tpu.pipeline_mode<synchronous>, transform_indices = @transform_8, window_bounds = array<i64: 1, 64>}, {pipeline_mode = #tpu.pipeline_mode<synchronous>, transform_indices = @transform_9, window_bounds = array<i64: 4, 8, 32>}, {pipeline_mode = #tpu.pipeline_mode<synchronous>, transform_indices = @transform_10, window_bounds = array<i64: 1, 32>}, {pipeline_mode = #tpu.pipeline_mode<synchronous>, transform_indices = @transform_11, window_bounds = array<i64: 1, 32>}, {pipeline_mode = #tpu.pipeline_mode<synchronous>, transform_indices = @transform_12, window_bounds = array<i64: 1, 32>}, {pipeline_mode = #tpu.pipeline_mode<synchronous>, transform_indices = @transform_13, window_bounds = array<i64: 32, 32>}, {pipeline_mode = #tpu.pipeline_mode<synchronous>, transform_indices = @transform_14, window_bounds = array<i64: 1, 32>}, {pipeline_mode = #tpu.pipeline_mode<synchronous>, transform_indices = @transform_15, window_bounds = array<i64: 32, 64>}, {pipeline_mode = #tpu.pipeline_mode<synchronous>, transform_indices = @transform_16, window_bounds = array<i64: 1, 64>}, {pipeline_mode = #tpu.pipeline_mode<synchronous>, transform_indices = @transform_17, window_bounds = array<i64: 4, 8, 32>}, {pipeline_mode = #tpu.pipeline_mode<synchronous>, transform_indices = @transform_18, window_bounds = array<i64: 1, 32>}, {pipeline_mode = #tpu.pipeline_mode<synchronous>, transform_indices = @transform_19, window_bounds = array<i64: 1, 32>}, {pipeline_mode = #tpu.pipeline_mode<synchronous>, transform_indices = @transform_20, window_bounds = array<i64: 1, 32>}, {pipeline_mode = #tpu.pipeline_mode<synchronous>, transform_indices = @transform_21, window_bounds = array<i64: 32, 64>}, {pipeline_mode = #tpu.pipeline_mode<synchronous>, transform_indices = @transform_22, window_bounds = array<i64: 1, 64>}, {pipeline_mode = #tpu.pipeline_mode<synchronous>, transform_indices = @transform_23, window_bounds = array<i64: 64, 32>}, {pipeline_mode = #tpu.pipeline_mode<synchronous>, transform_indices = @transform_24, window_bounds = array<i64: 1, 32>}, {pipeline_mode = #tpu.pipeline_mode<synchronous>, transform_indices = @transform_25, window_bounds = array<i64: 1, 32>}, {pipeline_mode = #tpu.pipeline_mode<synchronous>, transform_indices = @transform_26, window_bounds = array<i64: 1, 32>}, {transform_indices = @transform_27, window_bounds = array<i64: 1, 8, 32>}, {transform_indices = @transform_28, window_bounds = array<i64: 1, 4, 8, 16>}]} {
    %c0 = arith.constant 0 : index
    %c0_0 = arith.constant 0 : index
    %c0_1 = arith.constant 0 : index
    %0 = vector.load %arg2[%c0, %c0_0, %c0_1] : memref<1x8x32xf32, #tpu.memory_space<vmem>>, vector<1x8x32xf32>
    %1 = vector.shape_cast %0 : vector<1x8x32xf32> to vector<8x32xf32>
    %c0_2 = arith.constant 0 : index
    %c0_3 = arith.constant 0 : index
    %c0_4 = arith.constant 0 : index
    %2 = vector.load %arg3[%c0_2, %c0_3, %c0_4] : memref<1x16x32xf32, #tpu.memory_space<vmem>>, vector<1x16x32xf32>
    %3 = vector.shape_cast %2 : vector<1x16x32xf32> to vector<16x32xf32>
    %c0_5 = arith.constant 0 : index
    %c0_6 = arith.constant 0 : index
    %c0_7 = arith.constant 0 : index
    %4 = vector.load %arg4[%c0_5, %c0_6, %c0_7] : memref<1x16x32xf32, #tpu.memory_space<vmem>>, vector<1x16x32xf32>
    %5 = vector.shape_cast %4 : vector<1x16x32xf32> to vector<16x32xf32>
    %c0_8 = arith.constant 0 : index
    %c0_9 = arith.constant 0 : index
    %6 = vector.load %arg7[%c0_8, %c0_9] : memref<32x32xf32, #tpu.memory_space<vmem>>, vector<32x32xf32>
    %cst = arith.constant dense<0.000000e+00> : vector<8x32xf32>
    %7 = tpu.matmul %1, %6, %cst {dimension_numbers = #tpu.dot_dimension_numbers<[1], [0], [0], [1], [0, 0, 1, 1], [], []>} : vector<8x32xf32>, vector<32x32xf32>, vector<8x32xf32> -> vector<8x32xf32>
    %c0_10 = arith.constant 0 : index
    %c0_11 = arith.constant 0 : index
    %8 = vector.load %arg8[%c0_10, %c0_11] : memref<1x32xf32, #tpu.memory_space<vmem>>, vector<1x32xf32>
    %9 = vector.broadcast %8 : vector<1x32xf32> to vector<8x32xf32>
    %10 = arith.addf %7, %9 : vector<8x32xf32>
    %c0_12 = arith.constant 0 : index
    %c0_13 = arith.constant 0 : index
    %11 = vector.load %arg9[%c0_12, %c0_13] : memref<32x64xf32, #tpu.memory_space<vmem>>, vector<32x64xf32>
    %cst_14 = arith.constant dense<0.000000e+00> : vector<16x64xf32>
    %12 = tpu.matmul %3, %11, %cst_14 {dimension_numbers = #tpu.dot_dimension_numbers<[1], [0], [0], [1], [0, 0, 1, 1], [], []>} : vector<16x32xf32>, vector<32x64xf32>, vector<16x64xf32> -> vector<16x64xf32>
    %c0_15 = arith.constant 0 : index
    %c0_16 = arith.constant 0 : index
    %13 = vector.load %arg10[%c0_15, %c0_16] : memref<1x64xf32, #tpu.memory_space<vmem>>, vector<1x64xf32>
    %14 = vector.broadcast %13 : vector<1x64xf32> to vector<16x64xf32>
    %15 = arith.addf %12, %14 : vector<16x64xf32>
    %c0_17 = arith.constant 0 : index
    %c0_18 = arith.constant 0 : index
    %c0_19 = arith.constant 0 : index
    %c0_20 = arith.constant 0 : index
    %16 = vector.load %arg5[%c0_17, %c0_18, %c0_19, %c0_20] : memref<1x1x8x16xf32, #tpu.memory_space<vmem>>, vector<1x1x8x16xf32>
    %17 = vector.shape_cast %16 : vector<1x1x8x16xf32> to vector<8x16xf32>
    %18 = vector.extract_strided_slice %15 {offsets = [0, 0], sizes = [16, 32], strides = [1, 1]} : vector<16x64xf32> to vector<16x32xf32>
    %19 = vector.extract_strided_slice %15 {offsets = [0, 32], sizes = [16, 32], strides = [1, 1]} : vector<16x64xf32> to vector<16x32xf32>
    %cst_21 = arith.constant 0.000000e+00 : f32
    %20 = vector.broadcast %cst_21 : f32 to vector<8x32xf32>
    %21 = vector.extract_strided_slice %10 {offsets = [0, 0], sizes = [8, 8], strides = [1, 1]} : vector<8x32xf32> to vector<8x8xf32>
    %22 = vector.extract_strided_slice %18 {offsets = [0, 0], sizes = [16, 8], strides = [1, 1]} : vector<16x32xf32> to vector<16x8xf32>
    %cst_22 = arith.constant dense<0.000000e+00> : vector<8x16xf32>
    %23 = tpu.matmul %21, %22, %cst_22 {dimension_numbers = #tpu.dot_dimension_numbers<[1], [1], [0], [0], [0, 0, 1, 0], [], []>} : vector<8x8xf32>, vector<16x8xf32>, vector<8x16xf32> -> vector<8x16xf32>
    %cst_23 = arith.constant 0.000000e+00 : f32
    %24 = vector.broadcast %cst_23 : f32 to vector<8x16xf32>
    %25 = arith.cmpf one, %17, %24 : vector<8x16xf32>
    %cst_24 = arith.constant -1.000000e+10 : f32
    %26 = vector.broadcast %cst_24 : f32 to vector<8x16xf32>
    %27 = arith.select %25, %23, %26 : vector<8x16xi1>, vector<8x16xf32>
    %cst_25 = arith.constant dense<0xFF800000> : vector<8xf32>
    %28 = vector.multi_reduction <maximumf>, %27, %cst_25 [1] : vector<8x16xf32> to vector<8xf32>
    %29 = vector.shape_cast %28 : vector<8xf32> to vector<8x1xf32>
    %30 = vector.broadcast %29 : vector<8x1xf32> to vector<8x16xf32>
    %31 = arith.subf %27, %30 : vector<8x16xf32>
    %32 = math.exp %31 : vector<8x16xf32>
    %cst_26 = arith.constant dense<0.000000e+00> : vector<8xf32>
    %33 = vector.multi_reduction <add>, %32, %cst_26 [1] : vector<8x16xf32> to vector<8xf32>
    %34 = vector.shape_cast %33 : vector<8xf32> to vector<8x1xf32>
    %35 = tpu.reciprocal %34 {approx = true} : vector<8x1xf32> -> vector<8x1xf32>
    %36 = vector.broadcast %35 : vector<8x1xf32> to vector<8x16xf32>
    %37 = arith.mulf %32, %36 : vector<8x16xf32>
    %38 = vector.extract_strided_slice %19 {offsets = [0, 0], sizes = [16, 8], strides = [1, 1]} : vector<16x32xf32> to vector<16x8xf32>
    %cst_27 = arith.constant dense<0.000000e+00> : vector<8x8xf32>
    %39 = tpu.matmul %37, %38, %cst_27 {dimension_numbers = #tpu.dot_dimension_numbers<[1], [0], [0], [1], [0, 0, 1, 1], [], []>} : vector<8x16xf32>, vector<16x8xf32>, vector<8x8xf32> -> vector<8x8xf32>
    %c0_28 = arith.constant 0 : index
    %c0_29 = arith.constant 0 : index
    %c0_30 = arith.constant 0 : index
    %40 = vector.load %arg11[%c0_28, %c0_29, %c0_30] : memref<4x8x32xf32, #tpu.memory_space<vmem>>, vector<1x8x32xf32>
    %41 = vector.shape_cast %40 : vector<1x8x32xf32> to vector<8x32xf32>
    %cst_31 = arith.constant dense<0.000000e+00> : vector<8x32xf32>
    %42 = tpu.matmul %39, %41, %cst_31 {dimension_numbers = #tpu.dot_dimension_numbers<[1], [0], [0], [1], [0, 0, 1, 1], [], []>} : vector<8x8xf32>, vector<8x32xf32>, vector<8x32xf32> -> vector<8x32xf32>
    %43 = arith.addf %20, %42 : vector<8x32xf32>
    %44 = vector.extract_strided_slice %10 {offsets = [0, 8], sizes = [8, 8], strides = [1, 1]} : vector<8x32xf32> to vector<8x8xf32>
    %45 = vector.extract_strided_slice %18 {offsets = [0, 8], sizes = [16, 8], strides = [1, 1]} : vector<16x32xf32> to vector<16x8xf32>
    %cst_32 = arith.constant dense<0.000000e+00> : vector<8x16xf32>
    %46 = tpu.matmul %44, %45, %cst_32 {dimension_numbers = #tpu.dot_dimension_numbers<[1], [1], [0], [0], [0, 0, 1, 0], [], []>} : vector<8x8xf32>, vector<16x8xf32>, vector<8x16xf32> -> vector<8x16xf32>
    %cst_33 = arith.constant 0.000000e+00 : f32
    %47 = vector.broadcast %cst_33 : f32 to vector<8x16xf32>
    %48 = arith.cmpf one, %17, %47 : vector<8x16xf32>
    %cst_34 = arith.constant -1.000000e+10 : f32
    %49 = vector.broadcast %cst_34 : f32 to vector<8x16xf32>
    %50 = arith.select %48, %46, %49 : vector<8x16xi1>, vector<8x16xf32>
    %cst_35 = arith.constant dense<0xFF800000> : vector<8xf32>
    %51 = vector.multi_reduction <maximumf>, %50, %cst_35 [1] : vector<8x16xf32> to vector<8xf32>
    %52 = vector.shape_cast %51 : vector<8xf32> to vector<8x1xf32>
    %53 = vector.broadcast %52 : vector<8x1xf32> to vector<8x16xf32>
    %54 = arith.subf %50, %53 : vector<8x16xf32>
    %55 = math.exp %54 : vector<8x16xf32>
    %cst_36 = arith.constant dense<0.000000e+00> : vector<8xf32>
    %56 = vector.multi_reduction <add>, %55, %cst_36 [1] : vector<8x16xf32> to vector<8xf32>
    %57 = vector.shape_cast %56 : vector<8xf32> to vector<8x1xf32>
    %58 = tpu.reciprocal %57 {approx = true} : vector<8x1xf32> -> vector<8x1xf32>
    %59 = vector.broadcast %58 : vector<8x1xf32> to vector<8x16xf32>
    %60 = arith.mulf %55, %59 : vector<8x16xf32>
    %61 = vector.extract_strided_slice %19 {offsets = [0, 8], sizes = [16, 8], strides = [1, 1]} : vector<16x32xf32> to vector<16x8xf32>
    %cst_37 = arith.constant dense<0.000000e+00> : vector<8x8xf32>
    %62 = tpu.matmul %60, %61, %cst_37 {dimension_numbers = #tpu.dot_dimension_numbers<[1], [0], [0], [1], [0, 0, 1, 1], [], []>} : vector<8x16xf32>, vector<16x8xf32>, vector<8x8xf32> -> vector<8x8xf32>
    %c1 = arith.constant 1 : index
    %c0_38 = arith.constant 0 : index
    %c0_39 = arith.constant 0 : index
    %63 = vector.load %arg11[%c1, %c0_38, %c0_39] : memref<4x8x32xf32, #tpu.memory_space<vmem>>, vector<1x8x32xf32>
    %64 = vector.shape_cast %63 : vector<1x8x32xf32> to vector<8x32xf32>
    %cst_40 = arith.constant dense<0.000000e+00> : vector<8x32xf32>
    %65 = tpu.matmul %62, %64, %cst_40 {dimension_numbers = #tpu.dot_dimension_numbers<[1], [0], [0], [1], [0, 0, 1, 1], [], []>} : vector<8x8xf32>, vector<8x32xf32>, vector<8x32xf32> -> vector<8x32xf32>
    %66 = arith.addf %43, %65 : vector<8x32xf32>
    %67 = vector.extract_strided_slice %10 {offsets = [0, 16], sizes = [8, 8], strides = [1, 1]} : vector<8x32xf32> to vector<8x8xf32>
    %68 = vector.extract_strided_slice %18 {offsets = [0, 16], sizes = [16, 8], strides = [1, 1]} : vector<16x32xf32> to vector<16x8xf32>
    %cst_41 = arith.constant dense<0.000000e+00> : vector<8x16xf32>
    %69 = tpu.matmul %67, %68, %cst_41 {dimension_numbers = #tpu.dot_dimension_numbers<[1], [1], [0], [0], [0, 0, 1, 0], [], []>} : vector<8x8xf32>, vector<16x8xf32>, vector<8x16xf32> -> vector<8x16xf32>
    %cst_42 = arith.constant 0.000000e+00 : f32
    %70 = vector.broadcast %cst_42 : f32 to vector<8x16xf32>
    %71 = arith.cmpf one, %17, %70 : vector<8x16xf32>
    %cst_43 = arith.constant -1.000000e+10 : f32
    %72 = vector.broadcast %cst_43 : f32 to vector<8x16xf32>
    %73 = arith.select %71, %69, %72 : vector<8x16xi1>, vector<8x16xf32>
    %cst_44 = arith.constant dense<0xFF800000> : vector<8xf32>
    %74 = vector.multi_reduction <maximumf>, %73, %cst_44 [1] : vector<8x16xf32> to vector<8xf32>
    %75 = vector.shape_cast %74 : vector<8xf32> to vector<8x1xf32>
    %76 = vector.broadcast %75 : vector<8x1xf32> to vector<8x16xf32>
    %77 = arith.subf %73, %76 : vector<8x16xf32>
    %78 = math.exp %77 : vector<8x16xf32>
    %cst_45 = arith.constant dense<0.000000e+00> : vector<8xf32>
    %79 = vector.multi_reduction <add>, %78, %cst_45 [1] : vector<8x16xf32> to vector<8xf32>
    %80 = vector.shape_cast %79 : vector<8xf32> to vector<8x1xf32>
    %81 = tpu.reciprocal %80 {approx = true} : vector<8x1xf32> -> vector<8x1xf32>
    %82 = vector.broadcast %81 : vector<8x1xf32> to vector<8x16xf32>
    %83 = arith.mulf %78, %82 : vector<8x16xf32>
    %84 = vector.extract_strided_slice %19 {offsets = [0, 16], sizes = [16, 8], strides = [1, 1]} : vector<16x32xf32> to vector<16x8xf32>
    %cst_46 = arith.constant dense<0.000000e+00> : vector<8x8xf32>
    %85 = tpu.matmul %83, %84, %cst_46 {dimension_numbers = #tpu.dot_dimension_numbers<[1], [0], [0], [1], [0, 0, 1, 1], [], []>} : vector<8x16xf32>, vector<16x8xf32>, vector<8x8xf32> -> vector<8x8xf32>
    %c2 = arith.constant 2 : index
    %c0_47 = arith.constant 0 : index
    %c0_48 = arith.constant 0 : index
    %86 = vector.load %arg11[%c2, %c0_47, %c0_48] : memref<4x8x32xf32, #tpu.memory_space<vmem>>, vector<1x8x32xf32>
    %87 = vector.shape_cast %86 : vector<1x8x32xf32> to vector<8x32xf32>
    %cst_49 = arith.constant dense<0.000000e+00> : vector<8x32xf32>
    %88 = tpu.matmul %85, %87, %cst_49 {dimension_numbers = #tpu.dot_dimension_numbers<[1], [0], [0], [1], [0, 0, 1, 1], [], []>} : vector<8x8xf32>, vector<8x32xf32>, vector<8x32xf32> -> vector<8x32xf32>
    %89 = arith.addf %66, %88 : vector<8x32xf32>
    %90 = vector.extract_strided_slice %10 {offsets = [0, 24], sizes = [8, 8], strides = [1, 1]} : vector<8x32xf32> to vector<8x8xf32>
    %91 = vector.extract_strided_slice %18 {offsets = [0, 24], sizes = [16, 8], strides = [1, 1]} : vector<16x32xf32> to vector<16x8xf32>
    %cst_50 = arith.constant dense<0.000000e+00> : vector<8x16xf32>
    %92 = tpu.matmul %90, %91, %cst_50 {dimension_numbers = #tpu.dot_dimension_numbers<[1], [1], [0], [0], [0, 0, 1, 0], [], []>} : vector<8x8xf32>, vector<16x8xf32>, vector<8x16xf32> -> vector<8x16xf32>
    %cst_51 = arith.constant 0.000000e+00 : f32
    %93 = vector.broadcast %cst_51 : f32 to vector<8x16xf32>
    %94 = arith.cmpf one, %17, %93 : vector<8x16xf32>
    %cst_52 = arith.constant -1.000000e+10 : f32
    %95 = vector.broadcast %cst_52 : f32 to vector<8x16xf32>
    %96 = arith.select %94, %92, %95 : vector<8x16xi1>, vector<8x16xf32>
    %cst_53 = arith.constant dense<0xFF800000> : vector<8xf32>
    %97 = vector.multi_reduction <maximumf>, %96, %cst_53 [1] : vector<8x16xf32> to vector<8xf32>
    %98 = vector.shape_cast %97 : vector<8xf32> to vector<8x1xf32>
    %99 = vector.broadcast %98 : vector<8x1xf32> to vector<8x16xf32>
    %100 = arith.subf %96, %99 : vector<8x16xf32>
    %101 = math.exp %100 : vector<8x16xf32>
    %cst_54 = arith.constant dense<0.000000e+00> : vector<8xf32>
    %102 = vector.multi_reduction <add>, %101, %cst_54 [1] : vector<8x16xf32> to vector<8xf32>
    %103 = vector.shape_cast %102 : vector<8xf32> to vector<8x1xf32>
    %104 = tpu.reciprocal %103 {approx = true} : vector<8x1xf32> -> vector<8x1xf32>
    %105 = vector.broadcast %104 : vector<8x1xf32> to vector<8x16xf32>
    %106 = arith.mulf %101, %105 : vector<8x16xf32>
    %107 = vector.extract_strided_slice %19 {offsets = [0, 24], sizes = [16, 8], strides = [1, 1]} : vector<16x32xf32> to vector<16x8xf32>
    %cst_55 = arith.constant dense<0.000000e+00> : vector<8x8xf32>
    %108 = tpu.matmul %106, %107, %cst_55 {dimension_numbers = #tpu.dot_dimension_numbers<[1], [0], [0], [1], [0, 0, 1, 1], [], []>} : vector<8x16xf32>, vector<16x8xf32>, vector<8x8xf32> -> vector<8x8xf32>
    %c3 = arith.constant 3 : index
    %c0_56 = arith.constant 0 : index
    %c0_57 = arith.constant 0 : index
    %109 = vector.load %arg11[%c3, %c0_56, %c0_57] : memref<4x8x32xf32, #tpu.memory_space<vmem>>, vector<1x8x32xf32>
    %110 = vector.shape_cast %109 : vector<1x8x32xf32> to vector<8x32xf32>
    %cst_58 = arith.constant dense<0.000000e+00> : vector<8x32xf32>
    %111 = tpu.matmul %108, %110, %cst_58 {dimension_numbers = #tpu.dot_dimension_numbers<[1], [0], [0], [1], [0, 0, 1, 1], [], []>} : vector<8x8xf32>, vector<8x32xf32>, vector<8x32xf32> -> vector<8x32xf32>
    %112 = arith.addf %89, %111 : vector<8x32xf32>
    %c0_59 = arith.constant 0 : index
    %c0_60 = arith.constant 0 : index
    %113 = vector.load %arg12[%c0_59, %c0_60] : memref<1x32xf32, #tpu.memory_space<vmem>>, vector<1x32xf32>
    %114 = vector.broadcast %113 : vector<1x32xf32> to vector<8x32xf32>
    %115 = arith.addf %112, %114 : vector<8x32xf32>
    %116 = arith.addf %1, %115 : vector<8x32xf32>
    %cst_61 = arith.constant dense<0.000000e+00> : vector<8xf32>
    %117 = vector.multi_reduction <add>, %116, %cst_61 [1] : vector<8x32xf32> to vector<8xf32>
    %118 = vector.shape_cast %117 : vector<8xf32> to vector<8x1xf32>
    %cst_62 = arith.constant 3.200000e+01 : f32
    %119 = vector.broadcast %cst_62 : f32 to vector<8x1xf32>
    %120 = arith.divf %118, %119 : vector<8x1xf32>
    %121 = vector.broadcast %120 : vector<8x1xf32> to vector<8x32xf32>
    %122 = arith.subf %116, %121 : vector<8x32xf32>
    %123 = arith.mulf %122, %122 : vector<8x32xf32>
    %cst_63 = arith.constant dense<0.000000e+00> : vector<8xf32>
    %124 = vector.multi_reduction <add>, %123, %cst_63 [1] : vector<8x32xf32> to vector<8xf32>
    %125 = vector.shape_cast %124 : vector<8xf32> to vector<8x1xf32>
    %cst_64 = arith.constant 3.200000e+01 : f32
    %126 = vector.broadcast %cst_64 : f32 to vector<8x1xf32>
    %127 = arith.divf %125, %126 : vector<8x1xf32>
    %128 = vector.broadcast %120 : vector<8x1xf32> to vector<8x32xf32>
    %129 = arith.subf %116, %128 : vector<8x32xf32>
    %cst_65 = arith.constant 9.99999974E-6 : f32
    %130 = vector.broadcast %cst_65 : f32 to vector<8x1xf32>
    %131 = arith.addf %127, %130 : vector<8x1xf32>
    %132 = math.rsqrt %131 : vector<8x1xf32>
    %133 = vector.broadcast %132 : vector<8x1xf32> to vector<8x32xf32>
    %134 = arith.mulf %129, %133 : vector<8x32xf32>
    %c0_66 = arith.constant 0 : index
    %c0_67 = arith.constant 0 : index
    %135 = vector.load %arg13[%c0_66, %c0_67] : memref<1x32xf32, #tpu.memory_space<vmem>>, vector<1x32xf32>
    %136 = vector.broadcast %135 : vector<1x32xf32> to vector<8x32xf32>
    %137 = arith.mulf %134, %136 : vector<8x32xf32>
    %c0_68 = arith.constant 0 : index
    %c0_69 = arith.constant 0 : index
    %138 = vector.load %arg14[%c0_68, %c0_69] : memref<1x32xf32, #tpu.memory_space<vmem>>, vector<1x32xf32>
    %139 = vector.broadcast %138 : vector<1x32xf32> to vector<8x32xf32>
    %140 = arith.addf %137, %139 : vector<8x32xf32>
    %c0_70 = arith.constant 0 : index
    %c0_71 = arith.constant 0 : index
    %141 = vector.load %arg15[%c0_70, %c0_71] : memref<32x32xf32, #tpu.memory_space<vmem>>, vector<32x32xf32>
    %cst_72 = arith.constant dense<0.000000e+00> : vector<8x32xf32>
    %142 = tpu.matmul %140, %141, %cst_72 {dimension_numbers = #tpu.dot_dimension_numbers<[1], [0], [0], [1], [0, 0, 1, 1], [], []>} : vector<8x32xf32>, vector<32x32xf32>, vector<8x32xf32> -> vector<8x32xf32>
    %c0_73 = arith.constant 0 : index
    %c0_74 = arith.constant 0 : index
    %143 = vector.load %arg16[%c0_73, %c0_74] : memref<1x32xf32, #tpu.memory_space<vmem>>, vector<1x32xf32>
    %144 = vector.broadcast %143 : vector<1x32xf32> to vector<8x32xf32>
    %145 = arith.addf %142, %144 : vector<8x32xf32>
    %c0_75 = arith.constant 0 : index
    %c0_76 = arith.constant 0 : index
    %146 = vector.load %arg17[%c0_75, %c0_76] : memref<32x64xf32, #tpu.memory_space<vmem>>, vector<32x64xf32>
    %cst_77 = arith.constant dense<0.000000e+00> : vector<16x64xf32>
    %147 = tpu.matmul %5, %146, %cst_77 {dimension_numbers = #tpu.dot_dimension_numbers<[1], [0], [0], [1], [0, 0, 1, 1], [], []>} : vector<16x32xf32>, vector<32x64xf32>, vector<16x64xf32> -> vector<16x64xf32>
    %c0_78 = arith.constant 0 : index
    %c0_79 = arith.constant 0 : index
    %148 = vector.load %arg18[%c0_78, %c0_79] : memref<1x64xf32, #tpu.memory_space<vmem>>, vector<1x64xf32>
    %149 = vector.broadcast %148 : vector<1x64xf32> to vector<16x64xf32>
    %150 = arith.addf %147, %149 : vector<16x64xf32>
    %c0_80 = arith.constant 0 : index
    %c0_81 = arith.constant 0 : index
    %c0_82 = arith.constant 0 : index
    %c0_83 = arith.constant 0 : index
    %151 = vector.load %arg6[%c0_80, %c0_81, %c0_82, %c0_83] : memref<1x1x1x16xf32, #tpu.memory_space<vmem>>, vector<1x1x1x16xf32>
    %152 = vector.shape_cast %151 : vector<1x1x1x16xf32> to vector<1x16xf32>
    %153 = vector.shape_cast %152 : vector<1x16xf32> to vector<1x16xf32>
    %154 = vector.broadcast %153 : vector<1x16xf32> to vector<8x16xf32>
    %155 = vector.extract_strided_slice %150 {offsets = [0, 0], sizes = [16, 32], strides = [1, 1]} : vector<16x64xf32> to vector<16x32xf32>
    %156 = vector.extract_strided_slice %150 {offsets = [0, 32], sizes = [16, 32], strides = [1, 1]} : vector<16x64xf32> to vector<16x32xf32>
    %cst_84 = arith.constant 0.000000e+00 : f32
    %157 = vector.broadcast %cst_84 : f32 to vector<8x32xf32>
    %158 = vector.extract_strided_slice %145 {offsets = [0, 0], sizes = [8, 8], strides = [1, 1]} : vector<8x32xf32> to vector<8x8xf32>
    %159 = vector.extract_strided_slice %155 {offsets = [0, 0], sizes = [16, 8], strides = [1, 1]} : vector<16x32xf32> to vector<16x8xf32>
    %cst_85 = arith.constant dense<0.000000e+00> : vector<8x16xf32>
    %160 = tpu.matmul %158, %159, %cst_85 {dimension_numbers = #tpu.dot_dimension_numbers<[1], [1], [0], [0], [0, 0, 1, 0], [], []>} : vector<8x8xf32>, vector<16x8xf32>, vector<8x16xf32> -> vector<8x16xf32>
    %cst_86 = arith.constant 0.000000e+00 : f32
    %161 = vector.broadcast %cst_86 : f32 to vector<8x16xf32>
    %162 = arith.cmpf one, %154, %161 : vector<8x16xf32>
    %cst_87 = arith.constant -1.000000e+10 : f32
    %163 = vector.broadcast %cst_87 : f32 to vector<8x16xf32>
    %164 = arith.select %162, %160, %163 : vector<8x16xi1>, vector<8x16xf32>
    %cst_88 = arith.constant dense<0xFF800000> : vector<8xf32>
    %165 = vector.multi_reduction <maximumf>, %164, %cst_88 [1] : vector<8x16xf32> to vector<8xf32>
    %166 = vector.shape_cast %165 : vector<8xf32> to vector<8x1xf32>
    %167 = vector.broadcast %166 : vector<8x1xf32> to vector<8x16xf32>
    %168 = arith.subf %164, %167 : vector<8x16xf32>
    %169 = math.exp %168 : vector<8x16xf32>
    %cst_89 = arith.constant dense<0.000000e+00> : vector<8xf32>
    %170 = vector.multi_reduction <add>, %169, %cst_89 [1] : vector<8x16xf32> to vector<8xf32>
    %171 = vector.shape_cast %170 : vector<8xf32> to vector<8x1xf32>
    %172 = tpu.reciprocal %171 {approx = true} : vector<8x1xf32> -> vector<8x1xf32>
    %173 = vector.broadcast %172 : vector<8x1xf32> to vector<8x16xf32>
    %174 = arith.mulf %169, %173 : vector<8x16xf32>
    %c0_90 = arith.constant 0 : index
    %c0_91 = arith.constant 0 : index
    %c0_92 = arith.constant 0 : index
    %c0_93 = arith.constant 0 : index
    %175 = vector.load %arg30[%c0_90, %c0_91, %c0_92, %c0_93] : memref<1x4x8x16xf32, #tpu.memory_space<vmem>>, vector<1x1x8x16xf32>
    %176 = vector.shape_cast %175 : vector<1x1x8x16xf32> to vector<8x16xf32>
    %177 = vector.shape_cast %174 : vector<8x16xf32> to vector<1x1x8x16xf32>
    tpu.vector_store %arg30[%c0_90, %c0_91, %c0_92, %c0_93], %177 {strides = array<i32>} : memref<1x4x8x16xf32, #tpu.memory_space<vmem>>, vector<1x1x8x16xf32>,
    %178 = vector.extract_strided_slice %156 {offsets = [0, 0], sizes = [16, 8], strides = [1, 1]} : vector<16x32xf32> to vector<16x8xf32>
    %cst_94 = arith.constant dense<0.000000e+00> : vector<8x8xf32>
    %179 = tpu.matmul %174, %178, %cst_94 {dimension_numbers = #tpu.dot_dimension_numbers<[1], [0], [0], [1], [0, 0, 1, 1], [], []>} : vector<8x16xf32>, vector<16x8xf32>, vector<8x8xf32> -> vector<8x8xf32>
    %c0_95 = arith.constant 0 : index
    %c0_96 = arith.constant 0 : index
    %c0_97 = arith.constant 0 : index
    %180 = vector.load %arg19[%c0_95, %c0_96, %c0_97] : memref<4x8x32xf32, #tpu.memory_space<vmem>>, vector<1x8x32xf32>
    %181 = vector.shape_cast %180 : vector<1x8x32xf32> to vector<8x32xf32>
    %cst_98 = arith.constant dense<0.000000e+00> : vector<8x32xf32>
    %182 = tpu.matmul %179, %181, %cst_98 {dimension_numbers = #tpu.dot_dimension_numbers<[1], [0], [0], [1], [0, 0, 1, 1], [], []>} : vector<8x8xf32>, vector<8x32xf32>, vector<8x32xf32> -> vector<8x32xf32>
    %183 = arith.addf %157, %182 : vector<8x32xf32>
    %184 = vector.extract_strided_slice %145 {offsets = [0, 8], sizes = [8, 8], strides = [1, 1]} : vector<8x32xf32> to vector<8x8xf32>
    %185 = vector.extract_strided_slice %155 {offsets = [0, 8], sizes = [16, 8], strides = [1, 1]} : vector<16x32xf32> to vector<16x8xf32>
    %cst_99 = arith.constant dense<0.000000e+00> : vector<8x16xf32>
    %186 = tpu.matmul %184, %185, %cst_99 {dimension_numbers = #tpu.dot_dimension_numbers<[1], [1], [0], [0], [0, 0, 1, 0], [], []>} : vector<8x8xf32>, vector<16x8xf32>, vector<8x16xf32> -> vector<8x16xf32>
    %cst_100 = arith.constant 0.000000e+00 : f32
    %187 = vector.broadcast %cst_100 : f32 to vector<8x16xf32>
    %188 = arith.cmpf one, %154, %187 : vector<8x16xf32>
    %cst_101 = arith.constant -1.000000e+10 : f32
    %189 = vector.broadcast %cst_101 : f32 to vector<8x16xf32>
    %190 = arith.select %188, %186, %189 : vector<8x16xi1>, vector<8x16xf32>
    %cst_102 = arith.constant dense<0xFF800000> : vector<8xf32>
    %191 = vector.multi_reduction <maximumf>, %190, %cst_102 [1] : vector<8x16xf32> to vector<8xf32>
    %192 = vector.shape_cast %191 : vector<8xf32> to vector<8x1xf32>
    %193 = vector.broadcast %192 : vector<8x1xf32> to vector<8x16xf32>
    %194 = arith.subf %190, %193 : vector<8x16xf32>
    %195 = math.exp %194 : vector<8x16xf32>
    %cst_103 = arith.constant dense<0.000000e+00> : vector<8xf32>
    %196 = vector.multi_reduction <add>, %195, %cst_103 [1] : vector<8x16xf32> to vector<8xf32>
    %197 = vector.shape_cast %196 : vector<8xf32> to vector<8x1xf32>
    %198 = tpu.reciprocal %197 {approx = true} : vector<8x1xf32> -> vector<8x1xf32>
    %199 = vector.broadcast %198 : vector<8x1xf32> to vector<8x16xf32>
    %200 = arith.mulf %195, %199 : vector<8x16xf32>
    %c0_104 = arith.constant 0 : index
    %c1_105 = arith.constant 1 : index
    %c0_106 = arith.constant 0 : index
    %c0_107 = arith.constant 0 : index
    %201 = vector.load %arg30[%c0_104, %c1_105, %c0_106, %c0_107] : memref<1x4x8x16xf32, #tpu.memory_space<vmem>>, vector<1x1x8x16xf32>
    %202 = vector.shape_cast %201 : vector<1x1x8x16xf32> to vector<8x16xf32>
    %203 = vector.shape_cast %200 : vector<8x16xf32> to vector<1x1x8x16xf32>
    tpu.vector_store %arg30[%c0_104, %c1_105, %c0_106, %c0_107], %203 {strides = array<i32>} : memref<1x4x8x16xf32, #tpu.memory_space<vmem>>, vector<1x1x8x16xf32>,
    %204 = vector.extract_strided_slice %156 {offsets = [0, 8], sizes = [16, 8], strides = [1, 1]} : vector<16x32xf32> to vector<16x8xf32>
    %cst_108 = arith.constant dense<0.000000e+00> : vector<8x8xf32>
    %205 = tpu.matmul %200, %204, %cst_108 {dimension_numbers = #tpu.dot_dimension_numbers<[1], [0], [0], [1], [0, 0, 1, 1], [], []>} : vector<8x16xf32>, vector<16x8xf32>, vector<8x8xf32> -> vector<8x8xf32>
    %c1_109 = arith.constant 1 : index
    %c0_110 = arith.constant 0 : index
    %c0_111 = arith.constant 0 : index
    %206 = vector.load %arg19[%c1_109, %c0_110, %c0_111] : memref<4x8x32xf32, #tpu.memory_space<vmem>>, vector<1x8x32xf32>
    %207 = vector.shape_cast %206 : vector<1x8x32xf32> to vector<8x32xf32>
    %cst_112 = arith.constant dense<0.000000e+00> : vector<8x32xf32>
    %208 = tpu.matmul %205, %207, %cst_112 {dimension_numbers = #tpu.dot_dimension_numbers<[1], [0], [0], [1], [0, 0, 1, 1], [], []>} : vector<8x8xf32>, vector<8x32xf32>, vector<8x32xf32> -> vector<8x32xf32>
    %209 = arith.addf %183, %208 : vector<8x32xf32>
    %210 = vector.extract_strided_slice %145 {offsets = [0, 16], sizes = [8, 8], strides = [1, 1]} : vector<8x32xf32> to vector<8x8xf32>
    %211 = vector.extract_strided_slice %155 {offsets = [0, 16], sizes = [16, 8], strides = [1, 1]} : vector<16x32xf32> to vector<16x8xf32>
    %cst_113 = arith.constant dense<0.000000e+00> : vector<8x16xf32>
    %212 = tpu.matmul %210, %211, %cst_113 {dimension_numbers = #tpu.dot_dimension_numbers<[1], [1], [0], [0], [0, 0, 1, 0], [], []>} : vector<8x8xf32>, vector<16x8xf32>, vector<8x16xf32> -> vector<8x16xf32>
    %cst_114 = arith.constant 0.000000e+00 : f32
    %213 = vector.broadcast %cst_114 : f32 to vector<8x16xf32>
    %214 = arith.cmpf one, %154, %213 : vector<8x16xf32>
    %cst_115 = arith.constant -1.000000e+10 : f32
    %215 = vector.broadcast %cst_115 : f32 to vector<8x16xf32>
    %216 = arith.select %214, %212, %215 : vector<8x16xi1>, vector<8x16xf32>
    %cst_116 = arith.constant dense<0xFF800000> : vector<8xf32>
    %217 = vector.multi_reduction <maximumf>, %216, %cst_116 [1] : vector<8x16xf32> to vector<8xf32>
    %218 = vector.shape_cast %217 : vector<8xf32> to vector<8x1xf32>
    %219 = vector.broadcast %218 : vector<8x1xf32> to vector<8x16xf32>
    %220 = arith.subf %216, %219 : vector<8x16xf32>
    %221 = math.exp %220 : vector<8x16xf32>
    %cst_117 = arith.constant dense<0.000000e+00> : vector<8xf32>
    %222 = vector.multi_reduction <add>, %221, %cst_117 [1] : vector<8x16xf32> to vector<8xf32>
    %223 = vector.shape_cast %222 : vector<8xf32> to vector<8x1xf32>
    %224 = tpu.reciprocal %223 {approx = true} : vector<8x1xf32> -> vector<8x1xf32>
    %225 = vector.broadcast %224 : vector<8x1xf32> to vector<8x16xf32>
    %226 = arith.mulf %221, %225 : vector<8x16xf32>
    %c0_118 = arith.constant 0 : index
    %c2_119 = arith.constant 2 : index
    %c0_120 = arith.constant 0 : index
    %c0_121 = arith.constant 0 : index
    %227 = vector.load %arg30[%c0_118, %c2_119, %c0_120, %c0_121] : memref<1x4x8x16xf32, #tpu.memory_space<vmem>>, vector<1x1x8x16xf32>
    %228 = vector.shape_cast %227 : vector<1x1x8x16xf32> to vector<8x16xf32>
    %229 = vector.shape_cast %226 : vector<8x16xf32> to vector<1x1x8x16xf32>
    tpu.vector_store %arg30[%c0_118, %c2_119, %c0_120, %c0_121], %229 {strides = array<i32>} : memref<1x4x8x16xf32, #tpu.memory_space<vmem>>, vector<1x1x8x16xf32>,
    %230 = vector.extract_strided_slice %156 {offsets = [0, 16], sizes = [16, 8], strides = [1, 1]} : vector<16x32xf32> to vector<16x8xf32>
    %cst_122 = arith.constant dense<0.000000e+00> : vector<8x8xf32>
    %231 = tpu.matmul %226, %230, %cst_122 {dimension_numbers = #tpu.dot_dimension_numbers<[1], [0], [0], [1], [0, 0, 1, 1], [], []>} : vector<8x16xf32>, vector<16x8xf32>, vector<8x8xf32> -> vector<8x8xf32>
    %c2_123 = arith.constant 2 : index
    %c0_124 = arith.constant 0 : index
    %c0_125 = arith.constant 0 : index
    %232 = vector.load %arg19[%c2_123, %c0_124, %c0_125] : memref<4x8x32xf32, #tpu.memory_space<vmem>>, vector<1x8x32xf32>
    %233 = vector.shape_cast %232 : vector<1x8x32xf32> to vector<8x32xf32>
    %cst_126 = arith.constant dense<0.000000e+00> : vector<8x32xf32>
    %234 = tpu.matmul %231, %233, %cst_126 {dimension_numbers = #tpu.dot_dimension_numbers<[1], [0], [0], [1], [0, 0, 1, 1], [], []>} : vector<8x8xf32>, vector<8x32xf32>, vector<8x32xf32> -> vector<8x32xf32>
    %235 = arith.addf %209, %234 : vector<8x32xf32>
    %236 = vector.extract_strided_slice %145 {offsets = [0, 24], sizes = [8, 8], strides = [1, 1]} : vector<8x32xf32> to vector<8x8xf32>
    %237 = vector.extract_strided_slice %155 {offsets = [0, 24], sizes = [16, 8], strides = [1, 1]} : vector<16x32xf32> to vector<16x8xf32>
    %cst_127 = arith.constant dense<0.000000e+00> : vector<8x16xf32>
    %238 = tpu.matmul %236, %237, %cst_127 {dimension_numbers = #tpu.dot_dimension_numbers<[1], [1], [0], [0], [0, 0, 1, 0], [], []>} : vector<8x8xf32>, vector<16x8xf32>, vector<8x16xf32> -> vector<8x16xf32>
    %cst_128 = arith.constant 0.000000e+00 : f32
    %239 = vector.broadcast %cst_128 : f32 to vector<8x16xf32>
    %240 = arith.cmpf one, %154, %239 : vector<8x16xf32>
    %cst_129 = arith.constant -1.000000e+10 : f32
    %241 = vector.broadcast %cst_129 : f32 to vector<8x16xf32>
    %242 = arith.select %240, %238, %241 : vector<8x16xi1>, vector<8x16xf32>
    %cst_130 = arith.constant dense<0xFF800000> : vector<8xf32>
    %243 = vector.multi_reduction <maximumf>, %242, %cst_130 [1] : vector<8x16xf32> to vector<8xf32>
    %244 = vector.shape_cast %243 : vector<8xf32> to vector<8x1xf32>
    %245 = vector.broadcast %244 : vector<8x1xf32> to vector<8x16xf32>
    %246 = arith.subf %242, %245 : vector<8x16xf32>
    %247 = math.exp %246 : vector<8x16xf32>
    %cst_131 = arith.constant dense<0.000000e+00> : vector<8xf32>
    %248 = vector.multi_reduction <add>, %247, %cst_131 [1] : vector<8x16xf32> to vector<8xf32>
    %249 = vector.shape_cast %248 : vector<8xf32> to vector<8x1xf32>
    %250 = tpu.reciprocal %249 {approx = true} : vector<8x1xf32> -> vector<8x1xf32>
    %251 = vector.broadcast %250 : vector<8x1xf32> to vector<8x16xf32>
    %252 = arith.mulf %247, %251 : vector<8x16xf32>
    %c0_132 = arith.constant 0 : index
    %c3_133 = arith.constant 3 : index
    %c0_134 = arith.constant 0 : index
    %c0_135 = arith.constant 0 : index
    %253 = vector.load %arg30[%c0_132, %c3_133, %c0_134, %c0_135] : memref<1x4x8x16xf32, #tpu.memory_space<vmem>>, vector<1x1x8x16xf32>
    %254 = vector.shape_cast %253 : vector<1x1x8x16xf32> to vector<8x16xf32>
    %255 = vector.shape_cast %252 : vector<8x16xf32> to vector<1x1x8x16xf32>
    tpu.vector_store %arg30[%c0_132, %c3_133, %c0_134, %c0_135], %255 {strides = array<i32>} : memref<1x4x8x16xf32, #tpu.memory_space<vmem>>, vector<1x1x8x16xf32>,
    %256 = vector.extract_strided_slice %156 {offsets = [0, 24], sizes = [16, 8], strides = [1, 1]} : vector<16x32xf32> to vector<16x8xf32>
    %cst_136 = arith.constant dense<0.000000e+00> : vector<8x8xf32>
    %257 = tpu.matmul %252, %256, %cst_136 {dimension_numbers = #tpu.dot_dimension_numbers<[1], [0], [0], [1], [0, 0, 1, 1], [], []>} : vector<8x16xf32>, vector<16x8xf32>, vector<8x8xf32> -> vector<8x8xf32>
    %c3_137 = arith.constant 3 : index
    %c0_138 = arith.constant 0 : index
    %c0_139 = arith.constant 0 : index
    %258 = vector.load %arg19[%c3_137, %c0_138, %c0_139] : memref<4x8x32xf32, #tpu.memory_space<vmem>>, vector<1x8x32xf32>
    %259 = vector.shape_cast %258 : vector<1x8x32xf32> to vector<8x32xf32>
    %cst_140 = arith.constant dense<0.000000e+00> : vector<8x32xf32>
    %260 = tpu.matmul %257, %259, %cst_140 {dimension_numbers = #tpu.dot_dimension_numbers<[1], [0], [0], [1], [0, 0, 1, 1], [], []>} : vector<8x8xf32>, vector<8x32xf32>, vector<8x32xf32> -> vector<8x32xf32>
    %261 = arith.addf %235, %260 : vector<8x32xf32>
    %c0_141 = arith.constant 0 : index
    %c0_142 = arith.constant 0 : index
    %262 = vector.load %arg20[%c0_141, %c0_142] : memref<1x32xf32, #tpu.memory_space<vmem>>, vector<1x32xf32>
    %263 = vector.broadcast %262 : vector<1x32xf32> to vector<8x32xf32>
    %264 = arith.addf %261, %263 : vector<8x32xf32>
    %265 = arith.addf %140, %264 : vector<8x32xf32>
    %cst_143 = arith.constant dense<0.000000e+00> : vector<8xf32>
    %266 = vector.multi_reduction <add>, %265, %cst_143 [1] : vector<8x32xf32> to vector<8xf32>
    %267 = vector.shape_cast %266 : vector<8xf32> to vector<8x1xf32>
    %cst_144 = arith.constant 3.200000e+01 : f32
    %268 = vector.broadcast %cst_144 : f32 to vector<8x1xf32>
    %269 = arith.divf %267, %268 : vector<8x1xf32>
    %270 = vector.broadcast %269 : vector<8x1xf32> to vector<8x32xf32>
    %271 = arith.subf %265, %270 : vector<8x32xf32>
    %272 = arith.mulf %271, %271 : vector<8x32xf32>
    %cst_145 = arith.constant dense<0.000000e+00> : vector<8xf32>
    %273 = vector.multi_reduction <add>, %272, %cst_145 [1] : vector<8x32xf32> to vector<8xf32>
    %274 = vector.shape_cast %273 : vector<8xf32> to vector<8x1xf32>
    %cst_146 = arith.constant 3.200000e+01 : f32
    %275 = vector.broadcast %cst_146 : f32 to vector<8x1xf32>
    %276 = arith.divf %274, %275 : vector<8x1xf32>
    %277 = vector.broadcast %269 : vector<8x1xf32> to vector<8x32xf32>
    %278 = arith.subf %265, %277 : vector<8x32xf32>
    %cst_147 = arith.constant 9.99999974E-6 : f32
    %279 = vector.broadcast %cst_147 : f32 to vector<8x1xf32>
    %280 = arith.addf %276, %279 : vector<8x1xf32>
    %281 = math.rsqrt %280 : vector<8x1xf32>
    %282 = vector.broadcast %281 : vector<8x1xf32> to vector<8x32xf32>
    %283 = arith.mulf %278, %282 : vector<8x32xf32>
    %c0_148 = arith.constant 0 : index
    %c0_149 = arith.constant 0 : index
    %284 = vector.load %arg21[%c0_148, %c0_149] : memref<1x32xf32, #tpu.memory_space<vmem>>, vector<1x32xf32>
    %285 = vector.broadcast %284 : vector<1x32xf32> to vector<8x32xf32>
    %286 = arith.mulf %283, %285 : vector<8x32xf32>
    %c0_150 = arith.constant 0 : index
    %c0_151 = arith.constant 0 : index
    %287 = vector.load %arg22[%c0_150, %c0_151] : memref<1x32xf32, #tpu.memory_space<vmem>>, vector<1x32xf32>
    %288 = vector.broadcast %287 : vector<1x32xf32> to vector<8x32xf32>
    %289 = arith.addf %286, %288 : vector<8x32xf32>
    %c0_152 = arith.constant 0 : index
    %c0_153 = arith.constant 0 : index
    %290 = vector.load %arg23[%c0_152, %c0_153] : memref<32x64xf32, #tpu.memory_space<vmem>>, vector<32x64xf32>
    %cst_154 = arith.constant dense<0.000000e+00> : vector<8x64xf32>
    %291 = tpu.matmul %289, %290, %cst_154 {dimension_numbers = #tpu.dot_dimension_numbers<[1], [0], [0], [1], [0, 0, 1, 1], [], []>} : vector<8x32xf32>, vector<32x64xf32>, vector<8x64xf32> -> vector<8x64xf32>
    %c0_155 = arith.constant 0 : index
    %c0_156 = arith.constant 0 : index
    %292 = vector.load %arg24[%c0_155, %c0_156] : memref<1x64xf32, #tpu.memory_space<vmem>>, vector<1x64xf32>
    %293 = vector.broadcast %292 : vector<1x64xf32> to vector<8x64xf32>
    %294 = arith.addf %291, %293 : vector<8x64xf32>
    %cst_157 = arith.constant 0.000000e+00 : f32
    %295 = vector.broadcast %cst_157 : f32 to vector<8x64xf32>
    %296 = arith.maximumf %294, %295 : vector<8x64xf32>
    %c0_158 = arith.constant 0 : index
    %c0_159 = arith.constant 0 : index
    %297 = vector.load %arg25[%c0_158, %c0_159] : memref<64x32xf32, #tpu.memory_space<vmem>>, vector<64x32xf32>
    %cst_160 = arith.constant dense<0.000000e+00> : vector<8x32xf32>
    %298 = tpu.matmul %296, %297, %cst_160 {dimension_numbers = #tpu.dot_dimension_numbers<[1], [0], [0], [1], [0, 0, 1, 1], [], []>} : vector<8x64xf32>, vector<64x32xf32>, vector<8x32xf32> -> vector<8x32xf32>
    %c0_161 = arith.constant 0 : index
    %c0_162 = arith.constant 0 : index
    %299 = vector.load %arg26[%c0_161, %c0_162] : memref<1x32xf32, #tpu.memory_space<vmem>>, vector<1x32xf32>
    %300 = vector.broadcast %299 : vector<1x32xf32> to vector<8x32xf32>
    %301 = arith.addf %298, %300 : vector<8x32xf32>
    %302 = arith.addf %289, %301 : vector<8x32xf32>
    %cst_163 = arith.constant dense<0.000000e+00> : vector<8xf32>
    %303 = vector.multi_reduction <add>, %302, %cst_163 [1] : vector<8x32xf32> to vector<8xf32>
    %304 = vector.shape_cast %303 : vector<8xf32> to vector<8x1xf32>
    %cst_164 = arith.constant 3.200000e+01 : f32
    %305 = vector.broadcast %cst_164 : f32 to vector<8x1xf32>
    %306 = arith.divf %304, %305 : vector<8x1xf32>
    %307 = vector.broadcast %306 : vector<8x1xf32> to vector<8x32xf32>
    %308 = arith.subf %302, %307 : vector<8x32xf32>
    %309 = arith.mulf %308, %308 : vector<8x32xf32>
    %cst_165 = arith.constant dense<0.000000e+00> : vector<8xf32>
    %310 = vector.multi_reduction <add>, %309, %cst_165 [1] : vector<8x32xf32> to vector<8xf32>
    %311 = vector.shape_cast %310 : vector<8xf32> to vector<8x1xf32>
    %cst_166 = arith.constant 3.200000e+01 : f32
    %312 = vector.broadcast %cst_166 : f32 to vector<8x1xf32>
    %313 = arith.divf %311, %312 : vector<8x1xf32>
    %314 = vector.broadcast %306 : vector<8x1xf32> to vector<8x32xf32>
    %315 = arith.subf %302, %314 : vector<8x32xf32>
    %cst_167 = arith.constant 9.99999974E-6 : f32
    %316 = vector.broadcast %cst_167 : f32 to vector<8x1xf32>
    %317 = arith.addf %313, %316 : vector<8x1xf32>
    %318 = math.rsqrt %317 : vector<8x1xf32>
    %319 = vector.broadcast %318 : vector<8x1xf32> to vector<8x32xf32>
    %320 = arith.mulf %315, %319 : vector<8x32xf32>
    %c0_168 = arith.constant 0 : index
    %c0_169 = arith.constant 0 : index
    %321 = vector.load %arg27[%c0_168, %c0_169] : memref<1x32xf32, #tpu.memory_space<vmem>>, vector<1x32xf32>
    %322 = vector.broadcast %321 : vector<1x32xf32> to vector<8x32xf32>
    %323 = arith.mulf %320, %322 : vector<8x32xf32>
    %c0_170 = arith.constant 0 : index
    %c0_171 = arith.constant 0 : index
    %324 = vector.load %arg28[%c0_170, %c0_171] : memref<1x32xf32, #tpu.memory_space<vmem>>, vector<1x32xf32>
    %325 = vector.broadcast %324 : vector<1x32xf32> to vector<8x32xf32>
    %326 = arith.addf %323, %325 : vector<8x32xf32>
    %c0_172 = arith.constant 0 : index
    %c0_173 = arith.constant 0 : index
    %c0_174 = arith.constant 0 : index
    %327 = vector.load %arg29[%c0_172, %c0_173, %c0_174] : memref<1x8x32xf32, #tpu.memory_space<vmem>>, vector<1x8x32xf32>
    %328 = vector.shape_cast %327 : vector<1x8x32xf32> to vector<8x32xf32>
    %329 = vector.shape_cast %326 : vector<8x32xf32> to vector<1x8x32xf32>
    tpu.vector_store %arg29[%c0_172, %c0_173, %c0_174], %329 {strides = array<i32>} : memref<1x8x32xf32, #tpu.memory_space<vmem>>, vector<1x8x32xf32>,
    return
  }
  func.func @transform_0(%arg0: i32, %arg1: i32) -> (i32, i32, i32) {
    %c0_i32 = arith.constant 0 : i32
    %c0_i32_0 = arith.constant 0 : i32
    return %arg0, %arg1, %c0_i32 : i32, i32, i32
  }
  func.func @transform_1(%arg0: i32, %arg1: i32) -> (i32, i32, i32) {
    %c0_i32 = arith.constant 0 : i32
    %c0_i32_0 = arith.constant 0 : i32
    %c0_i32_1 = arith.constant 0 : i32
    return %arg0, %c0_i32, %c0_i32_0 : i32, i32, i32
  }
  func.func @transform_2(%arg0: i32, %arg1: i32) -> (i32, i32, i32) {
    %c0_i32 = arith.constant 0 : i32
    %c0_i32_0 = arith.constant 0 : i32
    %c0_i32_1 = arith.constant 0 : i32
    return %arg0, %c0_i32, %c0_i32_0 : i32, i32, i32
  }
  func.func @transform_3(%arg0: i32, %arg1: i32) -> (i32, i32, i32, i32) {
    %c0_i32 = arith.constant 0 : i32
    %c0_i32_0 = arith.constant 0 : i32
    %c0_i32_1 = arith.constant 0 : i32
    %c0_i32_2 = arith.constant 0 : i32
    return %c0_i32, %c0_i32_0, %arg1, %c0_i32_1 : i32, i32, i32, i32
  }
  func.func @transform_4(%arg0: i32, %arg1: i32) -> (i32, i32, i32, i32) {
    %c0_i32 = arith.constant 0 : i32
    %c0_i32_0 = arith.constant 0 : i32
    %c0_i32_1 = arith.constant 0 : i32
    %c0_i32_2 = arith.constant 0 : i32
    return %arg0, %c0_i32, %c0_i32_0, %c0_i32_1 : i32, i32, i32, i32
  }
  func.func @transform_5(%arg0: i32, %arg1: i32) -> (i32, i32) {
    %c0_i32 = arith.constant 0 : i32
    %c0_i32_0 = arith.constant 0 : i32
    %c0_i32_1 = arith.constant 0 : i32
    return %c0_i32, %c0_i32_0 : i32, i32
  }
  func.func @transform_6(%arg0: i32, %arg1: i32) -> (i32, i32) {
    %c0_i32 = arith.constant 0 : i32
    %c0_i32_0 = arith.constant 0 : i32
    %c0_i32_1 = arith.constant 0 : i32
    return %c0_i32, %c0_i32_0 : i32, i32
  }
  func.func @transform_7(%arg0: i32, %arg1: i32) -> (i32, i32) {
    %c0_i32 = arith.constant 0 : i32
    %c0_i32_0 = arith.constant 0 : i32
    %c0_i32_1 = arith.constant 0 : i32
    return %c0_i32, %c0_i32_0 : i32, i32
  }
  func.func @transform_8(%arg0: i32, %arg1: i32) -> (i32, i32) {
    %c0_i32 = arith.constant 0 : i32
    %c0_i32_0 = arith.constant 0 : i32
    %c0_i32_1 = arith.constant 0 : i32
    return %c0_i32, %c0_i32_0 : i32, i32
  }
  func.func @transform_9(%arg0: i32, %arg1: i32) -> (i32, i32, i32) {
    %c0_i32 = arith.constant 0 : i32
    %c0_i32_0 = arith.constant 0 : i32
    %c0_i32_1 = arith.constant 0 : i32
    %c0_i32_2 = arith.constant 0 : i32
    return %c0_i32, %c0_i32_0, %c0_i32_1 : i32, i32, i32
  }
  func.func @transform_10(%arg0: i32, %arg1: i32) -> (i32, i32) {
    %c0_i32 = arith.constant 0 : i32
    %c0_i32_0 = arith.constant 0 : i32
    %c0_i32_1 = arith.constant 0 : i32
    return %c0_i32, %c0_i32_0 : i32, i32
  }
  func.func @transform_11(%arg0: i32, %arg1: i32) -> (i32, i32) {
    %c0_i32 = arith.constant 0 : i32
    %c0_i32_0 = arith.constant 0 : i32
    %c0_i32_1 = arith.constant 0 : i32
    return %c0_i32, %c0_i32_0 : i32, i32
  }
  func.func @transform_12(%arg0: i32, %arg1: i32) -> (i32, i32) {
    %c0_i32 = arith.constant 0 : i32
    %c0_i32_0 = arith.constant 0 : i32
    %c0_i32_1 = arith.constant 0 : i32
    return %c0_i32, %c0_i32_0 : i32, i32
  }
  func.func @transform_13(%arg0: i32, %arg1: i32) -> (i32, i32) {
    %c0_i32 = arith.constant 0 : i32
    %c0_i32_0 = arith.constant 0 : i32
    %c0_i32_1 = arith.constant 0 : i32
    return %c0_i32, %c0_i32_0 : i32, i32
  }
  func.func @transform_14(%arg0: i32, %arg1: i32) -> (i32, i32) {
    %c0_i32 = arith.constant 0 : i32
    %c0_i32_0 = arith.constant 0 : i32
    %c0_i32_1 = arith.constant 0 : i32
    return %c0_i32, %c0_i32_0 : i32, i32
  }
  func.func @transform_15(%arg0: i32, %arg1: i32) -> (i32, i32) {
    %c0_i32 = arith.constant 0 : i32
    %c0_i32_0 = arith.constant 0 : i32
    %c0_i32_1 = arith.constant 0 : i32
    return %c0_i32, %c0_i32_0 : i32, i32
  }
  func.func @transform_16(%arg0: i32, %arg1: i32) -> (i32, i32) {
    %c0_i32 = arith.constant 0 : i32
    %c0_i32_0 = arith.constant 0 : i32
    %c0_i32_1 = arith.constant 0 : i32
    return %c0_i32, %c0_i32_0 : i32, i32
  }
  func.func @transform_17(%arg0: i32, %arg1: i32) -> (i32, i32, i32) {
    %c0_i32 = arith.constant 0 : i32
    %c0_i32_0 = arith.constant 0 : i32
    %c0_i32_1 = arith.constant 0 : i32
    %c0_i32_2 = arith.constant 0 : i32
    return %c0_i32, %c0_i32_0, %c0_i32_1 : i32, i32, i32
  }
  func.func @transform_18(%arg0: i32, %arg1: i32) -> (i32, i32) {
    %c0_i32 = arith.constant 0 : i32
    %c0_i32_0 = arith.constant 0 : i32
    %c0_i32_1 = arith.constant 0 : i32
    return %c0_i32, %c0_i32_0 : i32, i32
  }
  func.func @transform_19(%arg0: i32, %arg1: i32) -> (i32, i32) {
    %c0_i32 = arith.constant 0 : i32
    %c0_i32_0 = arith.constant 0 : i32
    %c0_i32_1 = arith.constant 0 : i32
    return %c0_i32, %c0_i32_0 : i32, i32
  }
  func.func @transform_20(%arg0: i32, %arg1: i32) -> (i32, i32) {
    %c0_i32 = arith.constant 0 : i32
    %c0_i32_0 = arith.constant 0 : i32
    %c0_i32_1 = arith.constant 0 : i32
    return %c0_i32, %c0_i32_0 : i32, i32
  }
  func.func @transform_21(%arg0: i32, %arg1: i32) -> (i32, i32) {
    %c0_i32 = arith.constant 0 : i32
    %c0_i32_0 = arith.constant 0 : i32
    %c0_i32_1 = arith.constant 0 : i32
    return %c0_i32, %c0_i32_0 : i32, i32
  }
  func.func @transform_22(%arg0: i32, %arg1: i32) -> (i32, i32) {
    %c0_i32 = arith.constant 0 : i32
    %c0_i32_0 = arith.constant 0 : i32
    %c0_i32_1 = arith.constant 0 : i32
    return %c0_i32, %c0_i32_0 : i32, i32
  }
  func.func @transform_23(%arg0: i32, %arg1: i32) -> (i32, i32) {
    %c0_i32 = arith.constant 0 : i32
    %c0_i32_0 = arith.constant 0 : i32
    %c0_i32_1 = arith.constant 0 : i32
    return %c0_i32, %c0_i32_0 : i32, i32
  }
  func.func @transform_24(%arg0: i32, %arg1: i32) -> (i32, i32) {
    %c0_i32 = arith.constant 0 : i32
    %c0_i32_0 = arith.constant 0 : i32
    %c0_i32_1 = arith.constant 0 : i32
    return %c0_i32, %c0_i32_0 : i32, i32
  }
  func.func @transform_25(%arg0: i32, %arg1: i32) -> (i32, i32) {
    %c0_i32 = arith.constant 0 : i32
    %c0_i32_0 = arith.constant 0 : i32
    %c0_i32_1 = arith.constant 0 : i32
    return %c0_i32, %c0_i32_0 : i32, i32
  }
  func.func @transform_26(%arg0: i32, %arg1: i32) -> (i32, i32) {
    %c0_i32 = arith.constant 0 : i32
    %c0_i32_0 = arith.constant 0 : i32
    %c0_i32_1 = arith.constant 0 : i32
    return %c0_i32, %c0_i32_0 : i32, i32
  }
  func.func @transform_27(%arg0: i32, %arg1: i32) -> (i32, i32, i32) {
    %c0_i32 = arith.constant 0 : i32
    %c0_i32_0 = arith.constant 0 : i32
    return %arg0, %arg1, %c0_i32 : i32, i32, i32
  }
  func.func @transform_28(%arg0: i32, %arg1: i32) -> (i32, i32, i32, i32) {
    %c0_i32 = arith.constant 0 : i32
    %c0_i32_0 = arith.constant 0 : i32
    %c0_i32_1 = arith.constant 0 : i32
    return %arg0, %c0_i32, %arg1, %c0_i32_0 : i32, i32, i32, i32
  }
}

</mosaic_0001>

<llo_original>
// kernel: tpu_custom_call.1
$region0: #{tpu_custom_call.1}
  #allocation0 [shape = 'u32[]', space=smem, size = 0x4, offset = 0x4, fixed_abs, tag = 'smem constant byte address 0x4 - core index']
  #allocation1 [shape = 'u32[144,128]{1,0:T(1,128)}', space=vmem, size = 0x12000, scoped, tag = 'internal scratch']
  %s0 = inlined_call_operand.vmem [shape: f32[2,16,32], index: 0, kind: input, shape index: {}]
  %s1 = inlined_call_operand.vmem [shape: f32[2,16,32], index: 1, kind: input, shape index: {}]
  %s2 = inlined_call_operand.vmem [shape: f32[2,16,32], index: 2, kind: input, shape index: {}]
  %s3 = inlined_call_operand.hbm [shape: f32[1,1,16,16], index: 3, kind: input, shape index: {}]
  %s4 = inlined_call_operand.hbm [shape: f32[2,1,1,16], index: 4, kind: input, shape index: {}]
  %s5 = inlined_call_operand.hbm [shape: f32[32,32], index: 5, kind: input, shape index: {}]
  %s6 = inlined_call_operand.hbm [shape: f32[1,32], index: 6, kind: input, shape index: {}]
  %s7 = inlined_call_operand.hbm [shape: f32[32,64], index: 7, kind: input, shape index: {}]
  %s8 = inlined_call_operand.hbm [shape: f32[1,64], index: 8, kind: input, shape index: {}]
  %s9 = inlined_call_operand.hbm [shape: f32[4,8,32], index: 9, kind: input, shape index: {}]
  %s10 = inlined_call_operand.hbm [shape: f32[1,32], index: 10, kind: input, shape index: {}]
  %s11 = inlined_call_operand.hbm [shape: f32[1,32], index: 11, kind: input, shape index: {}]
  %s12 = inlined_call_operand.hbm [shape: f32[1,32], index: 12, kind: input, shape index: {}]
  %s13 = inlined_call_operand.hbm [shape: f32[32,32], index: 13, kind: input, shape index: {}]
  %s14 = inlined_call_operand.hbm [shape: f32[1,32], index: 14, kind: input, shape index: {}]
  %s15 = inlined_call_operand.hbm [shape: f32[32,64], index: 15, kind: input, shape index: {}]
  %s16 = inlined_call_operand.hbm [shape: f32[1,64], index: 16, kind: input, shape index: {}]
  %s17 = inlined_call_operand.hbm [shape: f32[4,8,32], index: 17, kind: input, shape index: {}]
  %s18 = inlined_call_operand.hbm [shape: f32[1,32], index: 18, kind: input, shape index: {}]
  %s19 = inlined_call_operand.vmem [shape: f32[1,32], index: 19, kind: input, shape index: {}]
  %s20 = inlined_call_operand.vmem [shape: f32[1,32], index: 20, kind: input, shape index: {}]
  %s21 = inlined_call_operand.vmem [shape: f32[32,64], index: 21, kind: input, shape index: {}]
  %s22 = inlined_call_operand.vmem [shape: f32[1,64], index: 22, kind: input, shape index: {}]
  %s23 = inlined_call_operand.vmem [shape: f32[64,32], index: 23, kind: input, shape index: {}]
  %s24 = inlined_call_operand.vmem [shape: f32[1,32], index: 24, kind: input, shape index: {}]
  %s25 = inlined_call_operand.vmem [shape: f32[1,32], index: 25, kind: input, shape index: {}]
  %s26 = inlined_call_operand.vmem [shape: f32[1,32], index: 26, kind: input, shape index: {}]
  %s27 = inlined_call_operand.hbm [shape: f32[2,16,32], index: 27, kind: output, shape index: {0}]
  %s28 = inlined_call_operand.hbm [shape: f32[2,4,16,16], index: 28, kind: output, shape index: {1}]
  %29 = xla_tuple %s27, %s28
  %s30 = sld [smem:[#allocation0]]
  $region213: #{tpu_custom_call.1} parent=0
    _
  %s32 = ssub.s32 1, %s30
  %s33 = scalar_select 0, %s32, %s30
  $region1: #{tpu_custom_call.1} parent=0
    #allocation2 [shape = 'u8[8192]{0}', space=vmem, size = 0x2000, scoped, tag = 'input window, operand 3']
    #allocation3 [shape = 's32[2]{0}', space=sflag, size = 0x8, scoped, tag = 'scoped memory for tpu_custom_call.1']
    #allocation4 [shape = 's32[2]{0}', space=sflag, size = 0x8, scoped, tag = 'scoped memory for tpu_custom_call.1']
    #allocation5 [shape = 'u8[1024]{0}', space=vmem, size = 0x400, scoped, tag = 'input window, operand 4']
    #allocation6 [shape = 's32[2]{0}', space=sflag, size = 0x8, scoped, tag = 'scoped memory for tpu_custom_call.1']
    #allocation7 [shape = 'u8[16384]{0}', space=vmem, size = 0x4000, scoped, tag = 'input window, operand 5, single buffered']
    #allocation8 [shape = 'u8[512]{0}', space=vmem, size = 0x400, scoped, tag = 'input window, operand 6, single buffered']
    #allocation9 [shape = 's32[1]{0}', space=sflag, size = 0x4, scoped, tag = 'scoped memory for tpu_custom_call.1']
    #allocation10 [shape = 'u8[16384]{0}', space=vmem, size = 0x4000, scoped, tag = 'input window, operand 7, single buffered']
    #allocation11 [shape = 'u8[512]{0}', space=vmem, size = 0x400, scoped, tag = 'input window, operand 8, single buffered']
    #allocation12 [shape = 's32[1]{0}', space=sflag, size = 0x4, scoped, tag = 'scoped memory for tpu_custom_call.1']
    #allocation13 [shape = 'u8[16384]{0}', space=vmem, size = 0x4000, scoped, tag = 'input window, operand 9, single buffered']
    #allocation14 [shape = 'u8[512]{0}', space=vmem, size = 0x400, scoped, tag = 'input window, operand 10, single buffered']
    #allocation15 [shape = 's32[1]{0}', space=sflag, size = 0x4, scoped, tag = 'scoped memory for tpu_custom_call.1']
    #allocation16 [shape = 'u8[512]{0}', space=vmem, size = 0x400, scoped, tag = 'input window, operand 11, single buffered']
    #allocation17 [shape = 'u8[512]{0}', space=vmem, size = 0x400, scoped, tag = 'input window, operand 12, single buffered']
    #allocation18 [shape = 's32[1]{0}', space=sflag, size = 0x4, scoped, tag = 'scoped memory for tpu_custom_call.1']
    #allocation19 [shape = 'u8[16384]{0}', space=vmem, size = 0x4000, scoped, tag = 'input window, operand 13, single buffered']
    #allocation20 [shape = 'u8[512]{0}', space=vmem, size = 0x400, scoped, tag = 'input window, operand 14, single buffered']
    #allocation21 [shape = 's32[1]{0}', space=sflag, size = 0x4, scoped, tag = 'scoped memory for tpu_custom_call.1']
    #allocation22 [shape = 'u8[16384]{0}', space=vmem, size = 0x4000, scoped, tag = 'input window, operand 15, single buffered']
    #allocation23 [shape = 'u8[512]{0}', space=vmem, size = 0x400, scoped, tag = 'input window, operand 16, single buffered']
    #allocation24 [shape = 's32[1]{0}', space=sflag, size = 0x4, scoped, tag = 'scoped memory for tpu_custom_call.1']
    #allocation25 [shape = 'u8[16384]{0}', space=vmem, size = 0x4000, scoped, tag = 'input window, operand 17, single buffered']
    #allocation26 [shape = 'u8[512]{0}', space=vmem, size = 0x400, scoped, tag = 'input window, operand 18, single buffered']
    #allocation27 [shape = 's32[1]{0}', space=sflag, size = 0x4, scoped, tag = 'scoped memory for tpu_custom_call.1']
    #allocation28 [shape = 'u8[8192]{0}', space=vmem, size = 0x2000, scoped, tag = 'output window, operand 0']
    #allocation29 [shape = 'u8[32768]{0}', space=vmem, size = 0x8000, scoped, tag = 'output window, operand 1']
    #allocation30 [shape = 's32[2]{0}', space=sflag, size = 0x8, scoped, tag = 'scoped memory for tpu_custom_call.1']
    %34 = vsyncpa [#allocation3], 0
    %s35 = scalar_lea.sflag [#allocation3], 1
    %36 = vsyncpa %s35, 0
    %37 = vsyncpa [#allocation6], 0
    %s38 = scalar_lea.sflag [#allocation6], 1
    %39 = vsyncpa %s38, 0
    %40 = vsyncpa [#allocation9], 0
    %41 = vsyncpa [#allocation12], 0
    %42 = vsyncpa [#allocation15], 0
    %43 = vsyncpa [#allocation18], 0
    %44 = vsyncpa [#allocation21], 0
    %45 = vsyncpa [#allocation24], 0
    %46 = vsyncpa [#allocation27], 0
    %47 = vsyncpa [#allocation4], 0
    %s48 = scalar_lea.sflag [#allocation4], 1
    %49 = vsyncpa %s48, 0
    %50 = vsyncpa [#allocation30], 0
    %s51 = scalar_lea.sflag [#allocation30], 1
    %52 = vsyncpa %s51, 0
    loop: start=0, step=1, limit=6
    $region2: #{tpu_custom_call.1} parent=1 // loop_pre_header
      _
    $region3: #{tpu_custom_call.1} parent=1 // loop_header
      %s54 = sphi 0, %s58
      %p55 = scmp.ge.s32.totalorder %s54, 6
      %s61 = sphi 0, %s73
      %s62 = sphi 0, %s69
      %s63 = sphi 0, %s61
      %s64 = sphi 0, %s62
      %s65 = sphi 0, %s63
      %s66 = sphi 0, %s64
      %s78 = sphi 0, %s80
      %s81 = sphi 0, %s78
      %s82 = sphi 0, %s81
      %s98 = sphi 0, %s82
      %s104 = sphi 0, %s106
      %s107 = sphi 0, %s104
      %s108 = sphi 0, %s107
      %s124 = sphi 0, %s108
      %s130 = sphi 0, %s132
      %s133 = sphi 0, %s130
      %s134 = sphi 0, %s133
      %s150 = sphi 0, %s134
      %s156 = sphi 0, %s158
      %s159 = sphi 0, %s156
      %s160 = sphi 0, %s159
      %s176 = sphi 0, %s160
      %s182 = sphi 0, %s184
      %s185 = sphi 0, %s182
      %s186 = sphi 0, %s185
      %s202 = sphi 0, %s186
      %s206 = sphi 0, %s206
      %s208 = sphi 0, %s206
      %s209 = sphi 0, %s208
      %s223 = sphi 0, %s209
      %s227 = sphi 0, %s227
      %s229 = sphi 0, %s227
      %s230 = sphi 0, %s229
      %s244 = sphi 0, %s230
      %s248 = sphi 0, %s248
      %s250 = sphi 0, %s248
      %s251 = sphi 0, %s250
      %s265 = sphi 0, %s251
      %s269 = sphi 0, %s269
      %s271 = sphi 0, %s269
      %s272 = sphi 0, %s271
      %s286 = sphi 0, %s272
      %s290 = sphi 0, %s290
      %s292 = sphi 0, %s290
      %s293 = sphi 0, %s292
      %s307 = sphi 0, %s293
      %s311 = sphi 0, %s311
      %s313 = sphi 0, %s311
      %s314 = sphi 0, %s313
      %s328 = sphi 0, %s314
      %s332 = sphi 0, %s332
      %s334 = sphi 0, %s332
      %s335 = sphi 0, %s334
      %s349 = sphi 0, %s335
      %s353 = sphi 0, %s353
      %s355 = sphi 0, %s353
      %s356 = sphi 0, %s355
      %s370 = sphi 0, %s356
      %s374 = sphi 0, %s374
      %s376 = sphi 0, %s374
      %s377 = sphi 0, %s376
      %s391 = sphi 0, %s377
      %s395 = sphi 0, %s395
      %s397 = sphi 0, %s395
      %s398 = sphi 0, %s397
      %s412 = sphi 0, %s398
      %s416 = sphi 0, %s416
      %s418 = sphi 0, %s416
      %s419 = sphi 0, %s418
      %s433 = sphi 0, %s419
      %s437 = sphi 0, %s437
      %s439 = sphi 0, %s437
      %s440 = sphi 0, %s439
      %s454 = sphi 0, %s440
      %s458 = sphi 0, %s458
      %s460 = sphi 0, %s458
      %s461 = sphi 0, %s460
      %s475 = sphi 0, %s461
      %s479 = sphi 0, %s479
      %s481 = sphi 0, %s479
      %s482 = sphi 0, %s481
      %s496 = sphi 0, %s482
      %s500 = sphi 0, %s500
      %s502 = sphi 0, %s500
      %s503 = sphi 0, %s502
      %s517 = sphi 0, %s503
      %s521 = sphi 0, %s521
      %s523 = sphi 0, %s521
      %s524 = sphi 0, %s523
      %s538 = sphi 0, %s524
      %s542 = sphi 0, %s542
      %s544 = sphi 0, %s542
      %s545 = sphi 0, %s544
      %s559 = sphi 0, %s545
      %s563 = sphi 0, %s563
      %s565 = sphi 0, %s563
      %s566 = sphi 0, %s565
      %s580 = sphi 0, %s566
      %s584 = sphi 0, %s584
      %s586 = sphi 0, %s584
      %s587 = sphi 0, %s586
      %s601 = sphi 0, %s587
      %s605 = sphi 0, %s605
      %s607 = sphi 0, %s605
      %s608 = sphi 0, %s607
      %s622 = sphi 0, %s608
      %s626 = sphi 0, %s626
      %s628 = sphi 0, %s626
      %s629 = sphi 0, %s628
      %s643 = sphi 0, %s629
      %s647 = sphi 0, %s647
      %s649 = sphi 0, %s647
      %s650 = sphi 0, %s649
      %s664 = sphi 0, %s650
      %s672 = sphi 0, %s674
      %s675 = sphi 0, %s672
      %s676 = sphi 0, %s675
      %s692 = sphi 0, %s676
      %s700 = sphi 0, %s702
      %s703 = sphi 0, %s700
      %s704 = sphi 0, %s703
      %s720 = sphi 0, %s704
    $region4: #{tpu_custom_call.1} parent=1 // loop_header_branch
      %57 = sbr.rel (%p55) target = $region8
    $region5: #{tpu_custom_call.1} parent=1 // loop_body
      %s59 = ssub.s32 %s54, 1
      %s60 = ssub.s32 %s54, 2
      %s67 = sadd.s32 1, %s62
      %p68 = scmp.ge.s32.totalorder %s67, 2
      %s69 = scalar_select %p68, 0, %s67
      %s70 = sadd.s32 1, %s61
      %s71 = scalar_select %p68, %s70, %s61
      %p72 = scmp.ge.s32.totalorder %s71, 2
      %s73 = scalar_select %p72, 0, %s71
      %s74 = ssub.s32 %s61, %s73
      %s75 = ssub.s32 %s62, %s69
      %s76 = sor.u32 %s74, %s75
      %p77 = scmp.eq.s32.totalorder %s76, 0
      %s79 = sadd.s32 %s78, 1
      %s80 = scalar_select %p77, %s78, %s79
      %p83 = pneg %p77
      %p84 = scmp.eq.s32.totalorder %s54, 3
      %p85 = por %p83, %p84
      %p86 = scmp.ne.s32.totalorder %s78, %s81
      %p87 = scmp.eq.s32.totalorder %s54, 0
      %p88 = por %p86, %p87
      %p89 = scmp.ne.s32.totalorder %s78, %s81
      %p90 = scmp.eq.s32.totalorder %s59, 3
      %p91 = por %p89, %p90
      %p92 = scmp.ne.s32.totalorder %s81, %s82
      %p93 = scmp.eq.s32.totalorder %s59, 0
      %p94 = por %p92, %p93
      %p95 = scmp.ne.s32.totalorder %s81, %s82
      %p96 = scmp.eq.s32.totalorder %s60, 3
      %p97 = por %p95, %p96
      %p99 = scmp.ne.s32.totalorder %s82, %s98
      %p100 = scmp.eq.s32.totalorder %s60, 0
      %p101 = por %p99, %p100
      %s102 = ssub.s32 %s61, %s73
      %p103 = scmp.eq.s32.totalorder %s102, 0
      %s105 = sadd.s32 %s104, 1
      %s106 = scalar_select %p103, %s104, %s105
      %p109 = pneg %p103
      %p110 = scmp.eq.s32.totalorder %s54, 3
      %p111 = por %p109, %p110
      %p112 = scmp.ne.s32.totalorder %s104, %s107
      %p113 = scmp.eq.s32.totalorder %s54, 0
      %p114 = por %p112, %p113
      %p115 = scmp.ne.s32.totalorder %s104, %s107
      %p116 = scmp.eq.s32.totalorder %s59, 3
      %p117 = por %p115, %p116
      %p118 = scmp.ne.s32.totalorder %s107, %s108
      %p119 = scmp.eq.s32.totalorder %s59, 0
      %p120 = por %p118, %p119
      %p121 = scmp.ne.s32.totalorder %s107, %s108
      %p122 = scmp.eq.s32.totalorder %s60, 3
      %p123 = por %p121, %p122
      %p125 = scmp.ne.s32.totalorder %s108, %s124
      %p126 = scmp.eq.s32.totalorder %s60, 0
      %p127 = por %p125, %p126
      %s128 = ssub.s32 %s61, %s73
      %p129 = scmp.eq.s32.totalorder %s128, 0
      %s131 = sadd.s32 %s130, 1
      %s132 = scalar_select %p129, %s130, %s131
      %p135 = pneg %p129
      %p136 = scmp.eq.s32.totalorder %s54, 3
      %p137 = por %p135, %p136
      %p138 = scmp.ne.s32.totalorder %s130, %s133
      %p139 = scmp.eq.s32.totalorder %s54, 0
      %p140 = por %p138, %p139
      %p141 = scmp.ne.s32.totalorder %s130, %s133
      %p142 = scmp.eq.s32.totalorder %s59, 3
      %p143 = por %p141, %p142
      %p144 = scmp.ne.s32.totalorder %s133, %s134
      %p145 = scmp.eq.s32.totalorder %s59, 0
      %p146 = por %p144, %p145
      %p147 = scmp.ne.s32.totalorder %s133, %s134
      %p148 = scmp.eq.s32.totalorder %s60, 3
      %p149 = por %p147, %p148
      %p151 = scmp.ne.s32.totalorder %s134, %s150
      %p152 = scmp.eq.s32.totalorder %s60, 0
      %p153 = por %p151, %p152
      %s154 = ssub.s32 %s62, %s69
      %p155 = scmp.eq.s32.totalorder %s154, 0
      %s157 = sadd.s32 %s156, 1
      %s158 = scalar_select %p155, %s156, %s157
      %p161 = pneg %p155
      %p162 = scmp.eq.s32.totalorder %s54, 3
      %p163 = por %p161, %p162
      %p164 = scmp.ne.s32.totalorder %s156, %s159
      %p165 = scmp.eq.s32.totalorder %s54, 0
      %p166 = por %p164, %p165
      %p167 = scmp.ne.s32.totalorder %s156, %s159
      %p168 = scmp.eq.s32.totalorder %s59, 3
      %p169 = por %p167, %p168
      %p170 = scmp.ne.s32.totalorder %s159, %s160
      %p171 = scmp.eq.s32.totalorder %s59, 0
      %p172 = por %p170, %p171
      %p173 = scmp.ne.s32.totalorder %s159, %s160
      %p174 = scmp.eq.s32.totalorder %s60, 3
      %p175 = por %p173, %p174
      %p177 = scmp.ne.s32.totalorder %s160, %s176
      %p178 = scmp.eq.s32.totalorder %s60, 0
      %p179 = por %p177, %p178
      %s180 = ssub.s32 %s61, %s73
      %p181 = scmp.eq.s32.totalorder %s180, 0
      %s183 = sadd.s32 %s182, 1
      %s184 = scalar_select %p181, %s182, %s183
      %p187 = pneg %p181
      %p188 = scmp.eq.s32.totalorder %s54, 3
      %p189 = por %p187, %p188
      %p190 = scmp.ne.s32.totalorder %s182, %s185
      %p191 = scmp.eq.s32.totalorder %s54, 0
      %p192 = por %p190, %p191
      %p193 = scmp.ne.s32.totalorder %s182, %s185
      %p194 = scmp.eq.s32.totalorder %s59, 3
      %p195 = por %p193, %p194
      %p196 = scmp.ne.s32.totalorder %s185, %s186
      %p197 = scmp.eq.s32.totalorder %s59, 0
      %p198 = por %p196, %p197
      %p199 = scmp.ne.s32.totalorder %s185, %s186
      %p200 = scmp.eq.s32.totalorder %s60, 3
      %p201 = por %p199, %p200
      %p203 = scmp.ne.s32.totalorder %s186, %s202
      %p204 = scmp.eq.s32.totalorder %s60, 0
      %p205 = por %p203, %p204
      %s207 = sadd.s32 %s206, 1
      %p210 = scmp.eq.s32.totalorder %s54, 3
      %p211 = scmp.ne.s32.totalorder %s206, %s208
      %p212 = scmp.eq.s32.totalorder %s54, 0
      %p213 = por %p211, %p212
      %p214 = scmp.ne.s32.totalorder %s206, %s208
      %p215 = scmp.eq.s32.totalorder %s59, 3
      %p216 = por %p214, %p215
      %p217 = scmp.ne.s32.totalorder %s208, %s209
      %p218 = scmp.eq.s32.totalorder %s59, 0
      %p219 = por %p217, %p218
      %p220 = scmp.ne.s32.totalorder %s208, %s209
      %p221 = scmp.eq.s32.totalorder %s60, 3
      %p222 = por %p220, %p221
      %p224 = scmp.ne.s32.totalorder %s209, %s223
      %p225 = scmp.eq.s32.totalorder %s60, 0
      %p226 = por %p224, %p225
      %s228 = sadd.s32 %s227, 1
      %p231 = scmp.eq.s32.totalorder %s54, 3
      %p232 = scmp.ne.s32.totalorder %s227, %s229
      %p233 = scmp.eq.s32.totalorder %s54, 0
      %p234 = por %p232, %p233
      %p235 = scmp.ne.s32.totalorder %s227, %s229
      %p236 = scmp.eq.s32.totalorder %s59, 3
      %p237 = por %p235, %p236
      %p238 = scmp.ne.s32.totalorder %s229, %s230
      %p239 = scmp.eq.s32.totalorder %s59, 0
      %p240 = por %p238, %p239
      %p241 = scmp.ne.s32.totalorder %s229, %s230
      %p242 = scmp.eq.s32.totalorder %s60, 3
      %p243 = por %p241, %p242
      %p245 = scmp.ne.s32.totalorder %s230, %s244
      %p246 = scmp.eq.s32.totalorder %s60, 0
      %p247 = por %p245, %p246
      %s249 = sadd.s32 %s248, 1
      %p252 = scmp.eq.s32.totalorder %s54, 3
      %p253 = scmp.ne.s32.totalorder %s248, %s250
      %p254 = scmp.eq.s32.totalorder %s54, 0
      %p255 = por %p253, %p254
      %p256 = scmp.ne.s32.totalorder %s248, %s250
      %p257 = scmp.eq.s32.totalorder %s59, 3
      %p258 = por %p256, %p257
      %p259 = scmp.ne.s32.totalorder %s250, %s251
      %p260 = scmp.eq.s32.totalorder %s59, 0
      %p261 = por %p259, %p260
      %p262 = scmp.ne.s32.totalorder %s250, %s251
      %p263 = scmp.eq.s32.totalorder %s60, 3
      %p264 = por %p262, %p263
      %p266 = scmp.ne.s32.totalorder %s251, %s265
      %p267 = scmp.eq.s32.totalorder %s60, 0
      %p268 = por %p266, %p267
      %s270 = sadd.s32 %s269, 1
      %p273 = scmp.eq.s32.totalorder %s54, 3
      %p274 = scmp.ne.s32.totalorder %s269, %s271
      %p275 = scmp.eq.s32.totalorder %s54, 0
      %p276 = por %p274, %p275
      %p277 = scmp.ne.s32.totalorder %s269, %s271
      %p278 = scmp.eq.s32.totalorder %s59, 3
      %p279 = por %p277, %p278
      %p280 = scmp.ne.s32.totalorder %s271, %s272
      %p281 = scmp.eq.s32.totalorder %s59, 0
      %p282 = por %p280, %p281
      %p283 = scmp.ne.s32.totalorder %s271, %s272
      %p284 = scmp.eq.s32.totalorder %s60, 3
      %p285 = por %p283, %p284
      %p287 = scmp.ne.s32.totalorder %s272, %s286
      %p288 = scmp.eq.s32.totalorder %s60, 0
      %p289 = por %p287, %p288
      %s291 = sadd.s32 %s290, 1
      %p294 = scmp.eq.s32.totalorder %s54, 3
      %p295 = scmp.ne.s32.totalorder %s290, %s292
      %p296 = scmp.eq.s32.totalorder %s54, 0
      %p297 = por %p295, %p296
      %p298 = scmp.ne.s32.totalorder %s290, %s292
      %p299 = scmp.eq.s32.totalorder %s59, 3
      %p300 = por %p298, %p299
      %p301 = scmp.ne.s32.totalorder %s292, %s293
      %p302 = scmp.eq.s32.totalorder %s59, 0
      %p303 = por %p301, %p302
      %p304 = scmp.ne.s32.totalorder %s292, %s293
      %p305 = scmp.eq.s32.totalorder %s60, 3
      %p306 = por %p304, %p305
      %p308 = scmp.ne.s32.totalorder %s293, %s307
      %p309 = scmp.eq.s32.totalorder %s60, 0
      %p310 = por %p308, %p309
      %s312 = sadd.s32 %s311, 1
      %p315 = scmp.eq.s32.totalorder %s54, 3
      %p316 = scmp.ne.s32.totalorder %s311, %s313
      %p317 = scmp.eq.s32.totalorder %s54, 0
      %p318 = por %p316, %p317
      %p319 = scmp.ne.s32.totalorder %s311, %s313
      %p320 = scmp.eq.s32.totalorder %s59, 3
      %p321 = por %p319, %p320
      %p322 = scmp.ne.s32.totalorder %s313, %s314
      %p323 = scmp.eq.s32.totalorder %s59, 0
      %p324 = por %p322, %p323
      %p325 = scmp.ne.s32.totalorder %s313, %s314
      %p326 = scmp.eq.s32.totalorder %s60, 3
      %p327 = por %p325, %p326
      %p329 = scmp.ne.s32.totalorder %s314, %s328
      %p330 = scmp.eq.s32.totalorder %s60, 0
      %p331 = por %p329, %p330
      %s333 = sadd.s32 %s332, 1
      %p336 = scmp.eq.s32.totalorder %s54, 3
      %p337 = scmp.ne.s32.totalorder %s332, %s334
      %p338 = scmp.eq.s32.totalorder %s54, 0
      %p339 = por %p337, %p338
      %p340 = scmp.ne.s32.totalorder %s332, %s334
      %p341 = scmp.eq.s32.totalorder %s59, 3
      %p342 = por %p340, %p341
      %p343 = scmp.ne.s32.totalorder %s334, %s335
      %p344 = scmp.eq.s32.totalorder %s59, 0
      %p345 = por %p343, %p344
      %p346 = scmp.ne.s32.totalorder %s334, %s335
      %p347 = scmp.eq.s32.totalorder %s60, 3
      %p348 = por %p346, %p347
      %p350 = scmp.ne.s32.totalorder %s335, %s349
      %p351 = scmp.eq.s32.totalorder %s60, 0
      %p352 = por %p350, %p351
      %s354 = sadd.s32 %s353, 1
      %p357 = scmp.eq.s32.totalorder %s54, 3
      %p358 = scmp.ne.s32.totalorder %s353, %s355
      %p359 = scmp.eq.s32.totalorder %s54, 0
      %p360 = por %p358, %p359
      %p361 = scmp.ne.s32.totalorder %s353, %s355
      %p362 = scmp.eq.s32.totalorder %s59, 3
      %p363 = por %p361, %p362
      %p364 = scmp.ne.s32.totalorder %s355, %s356
      %p365 = scmp.eq.s32.totalorder %s59, 0
      %p366 = por %p364, %p365
      %p367 = scmp.ne.s32.totalorder %s355, %s356
      %p368 = scmp.eq.s32.totalorder %s60, 3
      %p369 = por %p367, %p368
      %p371 = scmp.ne.s32.totalorder %s356, %s370
      %p372 = scmp.eq.s32.totalorder %s60, 0
      %p373 = por %p371, %p372
      %s375 = sadd.s32 %s374, 1
      %p378 = scmp.eq.s32.totalorder %s54, 3
      %p379 = scmp.ne.s32.totalorder %s374, %s376
      %p380 = scmp.eq.s32.totalorder %s54, 0
      %p381 = por %p379, %p380
      %p382 = scmp.ne.s32.totalorder %s374, %s376
      %p383 = scmp.eq.s32.totalorder %s59, 3
      %p384 = por %p382, %p383
      %p385 = scmp.ne.s32.totalorder %s376, %s377
      %p386 = scmp.eq.s32.totalorder %s59, 0
      %p387 = por %p385, %p386
      %p388 = scmp.ne.s32.totalorder %s376, %s377
      %p389 = scmp.eq.s32.totalorder %s60, 3
      %p390 = por %p388, %p389
      %p392 = scmp.ne.s32.totalorder %s377, %s391
      %p393 = scmp.eq.s32.totalorder %s60, 0
      %p394 = por %p392, %p393
      %s396 = sadd.s32 %s395, 1
      %p399 = scmp.eq.s32.totalorder %s54, 3
      %p400 = scmp.ne.s32.totalorder %s395, %s397
      %p401 = scmp.eq.s32.totalorder %s54, 0
      %p402 = por %p400, %p401
      %p403 = scmp.ne.s32.totalorder %s395, %s397
      %p404 = scmp.eq.s32.totalorder %s59, 3
      %p405 = por %p403, %p404
      %p406 = scmp.ne.s32.totalorder %s397, %s398
      %p407 = scmp.eq.s32.totalorder %s59, 0
      %p408 = por %p406, %p407
      %p409 = scmp.ne.s32.totalorder %s397, %s398
      %p410 = scmp.eq.s32.totalorder %s60, 3
      %p411 = por %p409, %p410
      %p413 = scmp.ne.s32.totalorder %s398, %s412
      %p414 = scmp.eq.s32.totalorder %s60, 0
      %p415 = por %p413, %p414
      %s417 = sadd.s32 %s416, 1
      %p420 = scmp.eq.s32.totalorder %s54, 3
      %p421 = scmp.ne.s32.totalorder %s416, %s418
      %p422 = scmp.eq.s32.totalorder %s54, 0
      %p423 = por %p421, %p422
      %p424 = scmp.ne.s32.totalorder %s416, %s418
      %p425 = scmp.eq.s32.totalorder %s59, 3
      %p426 = por %p424, %p425
      %p427 = scmp.ne.s32.totalorder %s418, %s419
      %p428 = scmp.eq.s32.totalorder %s59, 0
      %p429 = por %p427, %p428
      %p430 = scmp.ne.s32.totalorder %s418, %s419
      %p431 = scmp.eq.s32.totalorder %s60, 3
      %p432 = por %p430, %p431
      %p434 = scmp.ne.s32.totalorder %s419, %s433
      %p435 = scmp.eq.s32.totalorder %s60, 0
      %p436 = por %p434, %p435
      %s438 = sadd.s32 %s437, 1
      %p441 = scmp.eq.s32.totalorder %s54, 3
      %p442 = scmp.ne.s32.totalorder %s437, %s439
      %p443 = scmp.eq.s32.totalorder %s54, 0
      %p444 = por %p442, %p443
      %p445 = scmp.ne.s32.totalorder %s437, %s439
      %p446 = scmp.eq.s32.totalorder %s59, 3
      %p447 = por %p445, %p446
      %p448 = scmp.ne.s32.totalorder %s439, %s440
      %p449 = scmp.eq.s32.totalorder %s59, 0
      %p450 = por %p448, %p449
      %p451 = scmp.ne.s32.totalorder %s439, %s440
      %p452 = scmp.eq.s32.totalorder %s60, 3
      %p453 = por %p451, %p452
      %p455 = scmp.ne.s32.totalorder %s440, %s454
      %p456 = scmp.eq.s32.totalorder %s60, 0
      %p457 = por %p455, %p456
      %s459 = sadd.s32 %s458, 1
      %p462 = scmp.eq.s32.totalorder %s54, 3
      %p463 = scmp.ne.s32.totalorder %s458, %s460
      %p464 = scmp.eq.s32.totalorder %s54, 0
      %p465 = por %p463, %p464
      %p466 = scmp.ne.s32.totalorder %s458, %s460
      %p467 = scmp.eq.s32.totalorder %s59, 3
      %p468 = por %p466, %p467
      %p469 = scmp.ne.s32.totalorder %s460, %s461
      %p470 = scmp.eq.s32.totalorder %s59, 0
      %p471 = por %p469, %p470
      %p472 = scmp.ne.s32.totalorder %s460, %s461
      %p473 = scmp.eq.s32.totalorder %s60, 3
      %p474 = por %p472, %p473
      %p476 = scmp.ne.s32.totalorder %s461, %s475
      %p477 = scmp.eq.s32.totalorder %s60, 0
      %p478 = por %p476, %p477
      %s480 = sadd.s32 %s479, 1
      %p483 = scmp.eq.s32.totalorder %s54, 3
      %p484 = scmp.ne.s32.totalorder %s479, %s481
      %p485 = scmp.eq.s32.totalorder %s54, 0
      %p486 = por %p484, %p485
      %p487 = scmp.ne.s32.totalorder %s479, %s481
      %p488 = scmp.eq.s32.totalorder %s59, 3
      %p489 = por %p487, %p488
      %p490 = scmp.ne.s32.totalorder %s481, %s482
      %p491 = scmp.eq.s32.totalorder %s59, 0
      %p492 = por %p490, %p491
      %p493 = scmp.ne.s32.totalorder %s481, %s482
      %p494 = scmp.eq.s32.totalorder %s60, 3
      %p495 = por %p493, %p494
      %p497 = scmp.ne.s32.totalorder %s482, %s496
      %p498 = scmp.eq.s32.totalorder %s60, 0
      %p499 = por %p497, %p498
      %s501 = sadd.s32 %s500, 1
      %p504 = scmp.eq.s32.totalorder %s54, 3
      %p505 = scmp.ne.s32.totalorder %s500, %s502
      %p506 = scmp.eq.s32.totalorder %s54, 0
      %p507 = por %p505, %p506
      %p508 = scmp.ne.s32.totalorder %s500, %s502
      %p509 = scmp.eq.s32.totalorder %s59, 3
      %p510 = por %p508, %p509
      %p511 = scmp.ne.s32.totalorder %s502, %s503
      %p512 = scmp.eq.s32.totalorder %s59, 0
      %p513 = por %p511, %p512
      %p514 = scmp.ne.s32.totalorder %s502, %s503
      %p515 = scmp.eq.s32.totalorder %s60, 3
      %p516 = por %p514, %p515
      %p518 = scmp.ne.s32.totalorder %s503, %s517
      %p519 = scmp.eq.s32.totalorder %s60, 0
      %p520 = por %p518, %p519
      %s522 = sadd.s32 %s521, 1
      %p525 = scmp.eq.s32.totalorder %s54, 3
      %p526 = scmp.ne.s32.totalorder %s521, %s523
      %p527 = scmp.eq.s32.totalorder %s54, 0
      %p528 = por %p526, %p527
      %p529 = scmp.ne.s32.totalorder %s521, %s523
      %p530 = scmp.eq.s32.totalorder %s59, 3
      %p531 = por %p529, %p530
      %p532 = scmp.ne.s32.totalorder %s523, %s524
      %p533 = scmp.eq.s32.totalorder %s59, 0
      %p534 = por %p532, %p533
      %p535 = scmp.ne.s32.totalorder %s523, %s524
      %p536 = scmp.eq.s32.totalorder %s60, 3
      %p537 = por %p535, %p536
      %p539 = scmp.ne.s32.totalorder %s524, %s538
      %p540 = scmp.eq.s32.totalorder %s60, 0
      %p541 = por %p539, %p540
      %s543 = sadd.s32 %s542, 1
      %p546 = scmp.eq.s32.totalorder %s54, 3
      %p547 = scmp.ne.s32.totalorder %s542, %s544
      %p548 = scmp.eq.s32.totalorder %s54, 0
      %p549 = por %p547, %p548
      %p550 = scmp.ne.s32.totalorder %s542, %s544
      %p551 = scmp.eq.s32.totalorder %s59, 3
      %p552 = por %p550, %p551
      %p553 = scmp.ne.s32.totalorder %s544, %s545
      %p554 = scmp.eq.s32.totalorder %s59, 0
      %p555 = por %p553, %p554
      %p556 = scmp.ne.s32.totalorder %s544, %s545
      %p557 = scmp.eq.s32.totalorder %s60, 3
      %p558 = por %p556, %p557
      %p560 = scmp.ne.s32.totalorder %s545, %s559
      %p561 = scmp.eq.s32.totalorder %s60, 0
      %p562 = por %p560, %p561
      %s564 = sadd.s32 %s563, 1
      %p567 = scmp.eq.s32.totalorder %s54, 3
      %p568 = scmp.ne.s32.totalorder %s563, %s565
      %p569 = scmp.eq.s32.totalorder %s54, 0
      %p570 = por %p568, %p569
      %p571 = scmp.ne.s32.totalorder %s563, %s565
      %p572 = scmp.eq.s32.totalorder %s59, 3
      %p573 = por %p571, %p572
      %p574 = scmp.ne.s32.totalorder %s565, %s566
      %p575 = scmp.eq.s32.totalorder %s59, 0
      %p576 = por %p574, %p575
      %p577 = scmp.ne.s32.totalorder %s565, %s566
      %p578 = scmp.eq.s32.totalorder %s60, 3
      %p579 = por %p577, %p578
      %p581 = scmp.ne.s32.totalorder %s566, %s580
      %p582 = scmp.eq.s32.totalorder %s60, 0
      %p583 = por %p581, %p582
      %s585 = sadd.s32 %s584, 1
      %p588 = scmp.eq.s32.totalorder %s54, 3
      %p589 = scmp.ne.s32.totalorder %s584, %s586
      %p590 = scmp.eq.s32.totalorder %s54, 0
      %p591 = por %p589, %p590
      %p592 = scmp.ne.s32.totalorder %s584, %s586
      %p593 = scmp.eq.s32.totalorder %s59, 3
      %p594 = por %p592, %p593
      %p595 = scmp.ne.s32.totalorder %s586, %s587
      %p596 = scmp.eq.s32.totalorder %s59, 0
      %p597 = por %p595, %p596
      %p598 = scmp.ne.s32.totalorder %s586, %s587
      %p599 = scmp.eq.s32.totalorder %s60, 3
      %p600 = por %p598, %p599
      %p602 = scmp.ne.s32.totalorder %s587, %s601
      %p603 = scmp.eq.s32.totalorder %s60, 0
      %p604 = por %p602, %p603
      %s606 = sadd.s32 %s605, 1
      %p609 = scmp.eq.s32.totalorder %s54, 3
      %p610 = scmp.ne.s32.totalorder %s605, %s607
      %p611 = scmp.eq.s32.totalorder %s54, 0
      %p612 = por %p610, %p611
      %p613 = scmp.ne.s32.totalorder %s605, %s607
      %p614 = scmp.eq.s32.totalorder %s59, 3
      %p615 = por %p613, %p614
      %p616 = scmp.ne.s32.totalorder %s607, %s608
      %p617 = scmp.eq.s32.totalorder %s59, 0
      %p618 = por %p616, %p617
      %p619 = scmp.ne.s32.totalorder %s607, %s608
      %p620 = scmp.eq.s32.totalorder %s60, 3
      %p621 = por %p619, %p620
      %p623 = scmp.ne.s32.totalorder %s608, %s622
      %p624 = scmp.eq.s32.totalorder %s60, 0
      %p625 = por %p623, %p624
      %s627 = sadd.s32 %s626, 1
      %p630 = scmp.eq.s32.totalorder %s54, 3
      %p631 = scmp.ne.s32.totalorder %s626, %s628
      %p632 = scmp.eq.s32.totalorder %s54, 0
      %p633 = por %p631, %p632
      %p634 = scmp.ne.s32.totalorder %s626, %s628
      %p635 = scmp.eq.s32.totalorder %s59, 3
      %p636 = por %p634, %p635
      %p637 = scmp.ne.s32.totalorder %s628, %s629
      %p638 = scmp.eq.s32.totalorder %s59, 0
      %p639 = por %p637, %p638
      %p640 = scmp.ne.s32.totalorder %s628, %s629
      %p641 = scmp.eq.s32.totalorder %s60, 3
      %p642 = por %p640, %p641
      %p644 = scmp.ne.s32.totalorder %s629, %s643
      %p645 = scmp.eq.s32.totalorder %s60, 0
      %p646 = por %p644, %p645
      %s648 = sadd.s32 %s647, 1
      %p651 = scmp.eq.s32.totalorder %s54, 3
      %p652 = scmp.ne.s32.totalorder %s647, %s649
      %p653 = scmp.eq.s32.totalorder %s54, 0
      %p654 = por %p652, %p653
      %p655 = scmp.ne.s32.totalorder %s647, %s649
      %p656 = scmp.eq.s32.totalorder %s59, 3
      %p657 = por %p655, %p656
      %p658 = scmp.ne.s32.totalorder %s649, %s650
      %p659 = scmp.eq.s32.totalorder %s59, 0
      %p660 = por %p658, %p659
      %p661 = scmp.ne.s32.totalorder %s649, %s650
      %p662 = scmp.eq.s32.totalorder %s60, 3
      %p663 = por %p661, %p662
      %p665 = scmp.ne.s32.totalorder %s650, %s664
      %p666 = scmp.eq.s32.totalorder %s60, 0
      %p667 = por %p665, %p666
      %s668 = ssub.s32 %s61, %s73
      %s669 = ssub.s32 %s62, %s69
      %s670 = sor.u32 %s668, %s669
      %p671 = scmp.eq.s32.totalorder %s670, 0
      %s673 = sadd.s32 %s672, 1
      %s674 = scalar_select %p671, %s672, %s673
      %p677 = pneg %p671
      %p678 = scmp.eq.s32.totalorder %s54, 3
      %p679 = por %p677, %p678
      %p680 = scmp.ne.s32.totalorder %s672, %s675
      %p681 = scmp.eq.s32.totalorder %s54, 0
      %p682 = por %p680, %p681
      %p683 = scmp.ne.s32.totalorder %s672, %s675
      %p684 = scmp.eq.s32.totalorder %s59, 3
      %p685 = por %p683, %p684
      %p686 = scmp.ne.s32.totalorder %s675, %s676
      %p687 = scmp.eq.s32.totalorder %s59, 0
      %p688 = por %p686, %p687
      %p689 = scmp.ne.s32.totalorder %s675, %s676
      %p690 = scmp.eq.s32.totalorder %s60, 3
      %p691 = por %p689, %p690
      %p693 = scmp.ne.s32.totalorder %s676, %s692
      %p694 = scmp.eq.s32.totalorder %s60, 0
      %p695 = por %p693, %p694
      %s696 = ssub.s32 %s61, %s73
      %s697 = ssub.s32 %s62, %s69
      %s698 = sor.u32 %s696, %s697
      %p699 = scmp.eq.s32.totalorder %s698, 0
      %s701 = sadd.s32 %s700, 1
      %s702 = scalar_select %p699, %s700, %s701
      %p705 = pneg %p699
      %p706 = scmp.eq.s32.totalorder %s54, 3
      %p707 = por %p705, %p706
      %p708 = scmp.ne.s32.totalorder %s700, %s703
      %p709 = scmp.eq.s32.totalorder %s54, 0
      %p710 = por %p708, %p709
      %p711 = scmp.ne.s32.totalorder %s700, %s703
      %p712 = scmp.eq.s32.totalorder %s59, 3
      %p713 = por %p711, %p712
      %p714 = scmp.ne.s32.totalorder %s703, %s704
      %p715 = scmp.eq.s32.totalorder %s59, 0
      %p716 = por %p714, %p715
      %p717 = scmp.ne.s32.totalorder %s703, %s704
      %p718 = scmp.eq.s32.totalorder %s60, 3
      %p719 = por %p717, %p718
      %p721 = scmp.ne.s32.totalorder %s704, %s720
      %p722 = scmp.eq.s32.totalorder %s60, 0
      %p723 = por %p721, %p722
      %p724 = scmp.le.s32.totalorder 1, %s54
      %p725 = scmp.lt.s32.totalorder %s54, 5
      %p726 = pnand %p724, %p725
      %p727 = pneg %p726
      // Predicated region
      $region9: #{tpu_custom_call.1} parent=5 // pred_check
        _
      $region10: #{tpu_custom_call.1} parent=5 // pred_check_branch
        %729 = sbr.rel (%p726) target = $region12
      $region11: #{tpu_custom_call.1} parent=5 // pred_region
        %s730 = ssub.s32 %s54, 1
        // Predicated region
        $region13: #{tpu_custom_call.1} parent=11 // pred_check
          %p731 = pneg %p219
        $region14: #{tpu_custom_call.1} parent=11 // pred_check_branch
          %733 = sbr.rel (%p731) target = $region16
        $region15: #{tpu_custom_call.1} parent=11 // pred_region
          %s735 = ssub.s32 512, 512
          %736 = vsyncadd [#allocation6], %s735
          %s737 = sshll.u32 [#allocation7], 4
          %s738 = int_to_ptr.vmem [resolvable:$true] %s737
          %743 = dma.hbm_to_vmem [thread:$0]  %s5, 512, %s738, [#allocation6], 128, 128, 8
        $region16: #{tpu_custom_call.1} parent=11 // pred_fallthru
          _
        // Predicated region
        $region17: #{tpu_custom_call.1} parent=11 // pred_check
          %p744 = pneg %p240
        $region18: #{tpu_custom_call.1} parent=11 // pred_check_branch
          %746 = sbr.rel (%p744) target = $region20
        $region19: #{tpu_custom_call.1} parent=11 // pred_region
          %s748 = ssub.s32 16, 16
          %749 = vsyncadd [#allocation9], %s748
          %s751 = sshll.u32 [#allocation8], 4
          %s752 = int_to_ptr.vmem [resolvable:$true] %s751
          %754 = dma.hbm_to_vmem [thread:$0]  %s6, 16, %s752, [#allocation9]
        $region20: #{tpu_custom_call.1} parent=11 // pred_fallthru
          _
        // Predicated region
        $region21: #{tpu_custom_call.1} parent=11 // pred_check
          %p755 = pneg %p261
        $region22: #{tpu_custom_call.1} parent=11 // pred_check_branch
          %757 = sbr.rel (%p755) target = $region24
        $region23: #{tpu_custom_call.1} parent=11 // pred_region
          %s759 = ssub.s32 512, 512
          %760 = vsyncadd [#allocation9], %s759
          %s761 = sshll.u32 [#allocation10], 4
          %s762 = int_to_ptr.vmem [resolvable:$true] %s761
          %767 = dma.hbm_to_vmem [thread:$0]  %s7, 512, %s762, [#allocation9], 128, 128, 8
        $region24: #{tpu_custom_call.1} parent=11 // pred_fallthru
          _
        // Predicated region
        $region25: #{tpu_custom_call.1} parent=11 // pred_check
          %p768 = pneg %p282
        $region26: #{tpu_custom_call.1} parent=11 // pred_check_branch
          %770 = sbr.rel (%p768) target = $region28
        $region27: #{tpu_custom_call.1} parent=11 // pred_region
          %s772 = ssub.s32 16, 16
          %773 = vsyncadd [#allocation12], %s772
          %s775 = sshll.u32 [#allocation11], 4
          %s776 = int_to_ptr.vmem [resolvable:$true] %s775
          %778 = dma.hbm_to_vmem [thread:$0]  %s8, 16, %s776, [#allocation12]
        $region28: #{tpu_custom_call.1} parent=11 // pred_fallthru
          _
        // Predicated region
        $region29: #{tpu_custom_call.1} parent=11 // pred_check
          %p779 = pneg %p303
        $region30: #{tpu_custom_call.1} parent=11 // pred_check_branch
          %781 = sbr.rel (%p779) target = $region32
        $region31: #{tpu_custom_call.1} parent=11 // pred_region
          %s783 = ssub.s32 512, 512
          %784 = vsyncadd [#allocation12], %s783
          %s785 = sshll.u32 [#allocation13], 4
          %s786 = int_to_ptr.vmem [resolvable:$true] %s785
          %791 = dma.hbm_to_vmem [thread:$0]  %s9, 512, %s786, [#allocation12], 128, 128, 8
        $region32: #{tpu_custom_call.1} parent=11 // pred_fallthru
          _
        // Predicated region
        $region33: #{tpu_custom_call.1} parent=11 // pred_check
          %p792 = pneg %p324
        $region34: #{tpu_custom_call.1} parent=11 // pred_check_branch
          %794 = sbr.rel (%p792) target = $region36
        $region35: #{tpu_custom_call.1} parent=11 // pred_region
          %s796 = ssub.s32 16, 16
          %797 = vsyncadd [#allocation15], %s796
          %s799 = sshll.u32 [#allocation14], 4
          %s800 = int_to_ptr.vmem [resolvable:$true] %s799
          %802 = dma.hbm_to_vmem [thread:$0]  %s10, 16, %s800, [#allocation15]
        $region36: #{tpu_custom_call.1} parent=11 // pred_fallthru
          _
        // Predicated region
        $region37: #{tpu_custom_call.1} parent=11 // pred_check
          %p803 = pneg %p345
        $region38: #{tpu_custom_call.1} parent=11 // pred_check_branch
          %805 = sbr.rel (%p803) target = $region40
        $region39: #{tpu_custom_call.1} parent=11 // pred_region
          %s807 = ssub.s32 16, 16
          %808 = vsyncadd [#allocation15], %s807
          %s810 = sshll.u32 [#allocation16], 4
          %s811 = int_to_ptr.vmem [resolvable:$true] %s810
          %813 = dma.hbm_to_vmem [thread:$0]  %s11, 16, %s811, [#allocation15]
        $region40: #{tpu_custom_call.1} parent=11 // pred_fallthru
          _
        // Predicated region
        $region41: #{tpu_custom_call.1} parent=11 // pred_check
          %p814 = pneg %p366
        $region42: #{tpu_custom_call.1} parent=11 // pred_check_branch
          %816 = sbr.rel (%p814) target = $region44
        $region43: #{tpu_custom_call.1} parent=11 // pred_region
          %s818 = ssub.s32 16, 16
          %819 = vsyncadd [#allocation18], %s818
          %s821 = sshll.u32 [#allocation17], 4
          %s822 = int_to_ptr.vmem [resolvable:$true] %s821
          %824 = dma.hbm_to_vmem [thread:$0]  %s12, 16, %s822, [#allocation18]
        $region44: #{tpu_custom_call.1} parent=11 // pred_fallthru
          _
        // Predicated region
        $region45: #{tpu_custom_call.1} parent=11 // pred_check
          %p825 = pneg %p387
        $region46: #{tpu_custom_call.1} parent=11 // pred_check_branch
          %827 = sbr.rel (%p825) target = $region48
        $region47: #{tpu_custom_call.1} parent=11 // pred_region
          %s829 = ssub.s32 512, 512
          %830 = vsyncadd [#allocation18], %s829
          %s831 = sshll.u32 [#allocation19], 4
          %s832 = int_to_ptr.vmem [resolvable:$true] %s831
          %837 = dma.hbm_to_vmem [thread:$0]  %s13, 512, %s832, [#allocation18], 128, 128, 8
        $region48: #{tpu_custom_call.1} parent=11 // pred_fallthru
          _
        // Predicated region
        $region49: #{tpu_custom_call.1} parent=11 // pred_check
          %p838 = pneg %p408
        $region50: #{tpu_custom_call.1} parent=11 // pred_check_branch
          %840 = sbr.rel (%p838) target = $region52
        $region51: #{tpu_custom_call.1} parent=11 // pred_region
          %s842 = ssub.s32 16, 16
          %843 = vsyncadd [#allocation21], %s842
          %s845 = sshll.u32 [#allocation20], 4
          %s846 = int_to_ptr.vmem [resolvable:$true] %s845
          %848 = dma.hbm_to_vmem [thread:$0]  %s14, 16, %s846, [#allocation21]
        $region52: #{tpu_custom_call.1} parent=11 // pred_fallthru
          _
        // Predicated region
        $region53: #{tpu_custom_call.1} parent=11 // pred_check
          %p849 = pneg %p429
        $region54: #{tpu_custom_call.1} parent=11 // pred_check_branch
          %851 = sbr.rel (%p849) target = $region56
        $region55: #{tpu_custom_call.1} parent=11 // pred_region
          %s853 = ssub.s32 512, 512
          %854 = vsyncadd [#allocation21], %s853
          %s855 = sshll.u32 [#allocation22], 4
          %s856 = int_to_ptr.vmem [resolvable:$true] %s855
          %861 = dma.hbm_to_vmem [thread:$0]  %s15, 512, %s856, [#allocation21], 128, 128, 8
        $region56: #{tpu_custom_call.1} parent=11 // pred_fallthru
          _
        // Predicated region
        $region57: #{tpu_custom_call.1} parent=11 // pred_check
          %p862 = pneg %p450
        $region58: #{tpu_custom_call.1} parent=11 // pred_check_branch
          %864 = sbr.rel (%p862) target = $region60
        $region59: #{tpu_custom_call.1} parent=11 // pred_region
          %s866 = ssub.s32 16, 16
          %867 = vsyncadd [#allocation24], %s866
          %s869 = sshll.u32 [#allocation23], 4
          %s870 = int_to_ptr.vmem [resolvable:$true] %s869
          %872 = dma.hbm_to_vmem [thread:$0]  %s16, 16, %s870, [#allocation24]
        $region60: #{tpu_custom_call.1} parent=11 // pred_fallthru
          _
        // Predicated region
        $region61: #{tpu_custom_call.1} parent=11 // pred_check
          %p873 = pneg %p471
        $region62: #{tpu_custom_call.1} parent=11 // pred_check_branch
          %875 = sbr.rel (%p873) target = $region64
        $region63: #{tpu_custom_call.1} parent=11 // pred_region
          %s877 = ssub.s32 512, 512
          %878 = vsyncadd [#allocation24], %s877
          %s879 = sshll.u32 [#allocation25], 4
          %s880 = int_to_ptr.vmem [resolvable:$true] %s879
          %885 = dma.hbm_to_vmem [thread:$0]  %s17, 512, %s880, [#allocation24], 128, 128, 8
        $region64: #{tpu_custom_call.1} parent=11 // pred_fallthru
          _
        // Predicated region
        $region65: #{tpu_custom_call.1} parent=11 // pred_check
          %p886 = pneg %p492
        $region66: #{tpu_custom_call.1} parent=11 // pred_check_branch
          %888 = sbr.rel (%p886) target = $region68
        $region67: #{tpu_custom_call.1} parent=11 // pred_region
          %s890 = ssub.s32 16, 16
          %891 = vsyncadd [#allocation27], %s890
          %s893 = sshll.u32 [#allocation26], 4
          %s894 = int_to_ptr.vmem [resolvable:$true] %s893
          %896 = dma.hbm_to_vmem [thread:$0]  %s18, 16, %s894, [#allocation27]
        $region68: #{tpu_custom_call.1} parent=11 // pred_fallthru
          _
        // Predicated region
        $region69: #{tpu_custom_call.1} parent=11 // pred_check
          %p897 = pneg %p513
        $region70: #{tpu_custom_call.1} parent=11 // pred_check_branch
          %899 = sbr.rel (%p897) target = $region72
        $region71: #{tpu_custom_call.1} parent=11 // pred_region
          _
        $region72: #{tpu_custom_call.1} parent=11 // pred_fallthru
          _
        // Predicated region
        $region73: #{tpu_custom_call.1} parent=11 // pred_check
          %p900 = pneg %p534
        $region74: #{tpu_custom_call.1} parent=11 // pred_check_branch
          %902 = sbr.rel (%p900) target = $region76
        $region75: #{tpu_custom_call.1} parent=11 // pred_region
          _
        $region76: #{tpu_custom_call.1} parent=11 // pred_fallthru
          _
        // Predicated region
        $region77: #{tpu_custom_call.1} parent=11 // pred_check
          %p903 = pneg %p555
        $region78: #{tpu_custom_call.1} parent=11 // pred_check_branch
          %905 = sbr.rel (%p903) target = $region80
        $region79: #{tpu_custom_call.1} parent=11 // pred_region
          _
        $region80: #{tpu_custom_call.1} parent=11 // pred_fallthru
          _
        // Predicated region
        $region81: #{tpu_custom_call.1} parent=11 // pred_check
          %p906 = pneg %p576
        $region82: #{tpu_custom_call.1} parent=11 // pred_check_branch
          %908 = sbr.rel (%p906) target = $region84
        $region83: #{tpu_custom_call.1} parent=11 // pred_region
          _
        $region84: #{tpu_custom_call.1} parent=11 // pred_fallthru
          _
        // Predicated region
        $region85: #{tpu_custom_call.1} parent=11 // pred_check
          %p909 = pneg %p597
        $region86: #{tpu_custom_call.1} parent=11 // pred_check_branch
          %911 = sbr.rel (%p909) target = $region88
        $region87: #{tpu_custom_call.1} parent=11 // pred_region
          _
        $region88: #{tpu_custom_call.1} parent=11 // pred_fallthru
          _
        // Predicated region
        $region89: #{tpu_custom_call.1} parent=11 // pred_check
          %p912 = pneg %p618
        $region90: #{tpu_custom_call.1} parent=11 // pred_check_branch
          %914 = sbr.rel (%p912) target = $region92
        $region91: #{tpu_custom_call.1} parent=11 // pred_region
          _
        $region92: #{tpu_custom_call.1} parent=11 // pred_fallthru
          _
        // Predicated region
        $region93: #{tpu_custom_call.1} parent=11 // pred_check
          %p915 = pneg %p639
        $region94: #{tpu_custom_call.1} parent=11 // pred_check_branch
          %917 = sbr.rel (%p915) target = $region96
        $region95: #{tpu_custom_call.1} parent=11 // pred_region
          _
        $region96: #{tpu_custom_call.1} parent=11 // pred_fallthru
          _
        // Predicated region
        $region97: #{tpu_custom_call.1} parent=11 // pred_check
          %p918 = pneg %p660
        $region98: #{tpu_custom_call.1} parent=11 // pred_check_branch
          %920 = sbr.rel (%p918) target = $region100
        $region99: #{tpu_custom_call.1} parent=11 // pred_region
          _
        $region100: #{tpu_custom_call.1} parent=11 // pred_fallthru
          _
      $region12: #{tpu_custom_call.1} parent=5 // pred_fallthru
        _
      %p921 = scmp.lt.s32.totalorder %s54, 4
      // Predicated region
      $region101: #{tpu_custom_call.1} parent=5 // pred_check
        %p922 = pneg %p921
      $region102: #{tpu_custom_call.1} parent=5 // pred_check_branch
        %924 = sbr.rel (%p922) target = $region104
      $region103: #{tpu_custom_call.1} parent=5 // pred_region
        // Predicated region
        $region105: #{tpu_custom_call.1} parent=103 // pred_check
          %p925 = pneg %p88
        $region106: #{tpu_custom_call.1} parent=103 // pred_check_branch
          %927 = sbr.rel (%p925) target = $region108
        $region107: #{tpu_custom_call.1} parent=103 // pred_region
          %p928 = scmp.lt.s32.totalorder %s61, 1
          %s929 = scalar_select %p928, %s61, 1
          %p930 = scmp.lt.s32.totalorder %s62, 1
          %s931 = scalar_select %p930, %s62, 1
          %s932 = smul.addr %s929, 2
          %s933 = sadd.s32 %s931, %s932
          %s934 = smul.addr %s933, 8
          %s935 = scalar_lea.vmem %s0, %s934
        $region108: #{tpu_custom_call.1} parent=103 // pred_fallthru
          _
        // Predicated region
        $region109: #{tpu_custom_call.1} parent=103 // pred_check
          %p936 = pneg %p114
        $region110: #{tpu_custom_call.1} parent=103 // pred_check_branch
          %938 = sbr.rel (%p936) target = $region112
        $region111: #{tpu_custom_call.1} parent=103 // pred_region
          %p939 = scmp.lt.s32.totalorder %s61, 1
          %s940 = scalar_select %p939, %s61, 1
          %s941 = smul.addr %s940, 2
          %s942 = smul.addr %s941, 8
          %s943 = scalar_lea.vmem %s1, %s942
        $region112: #{tpu_custom_call.1} parent=103 // pred_fallthru
          _
        // Predicated region
        $region113: #{tpu_custom_call.1} parent=103 // pred_check
          %p944 = pneg %p140
        $region114: #{tpu_custom_call.1} parent=103 // pred_check_branch
          %946 = sbr.rel (%p944) target = $region116
        $region115: #{tpu_custom_call.1} parent=103 // pred_region
          %p947 = scmp.lt.s32.totalorder %s61, 1
          %s948 = scalar_select %p947, %s61, 1
          %s949 = smul.addr %s948, 2
          %s950 = smul.addr %s949, 8
          %s951 = scalar_lea.vmem %s2, %s950
        $region116: #{tpu_custom_call.1} parent=103 // pred_fallthru
          _
        // Predicated region
        $region117: #{tpu_custom_call.1} parent=103 // pred_check
          %p952 = pneg %p166
        $region118: #{tpu_custom_call.1} parent=103 // pred_check_branch
          %954 = sbr.rel (%p952) target = $region120
        $region119: #{tpu_custom_call.1} parent=103 // pred_region
          %s955 = sand.u32 %s156, 1
          %s956 = scalar_lea.sflag [#allocation3], %s955
          %s957 = sand.u32 %s156, 1
          %s958 = smul.addr %s957, 8
          %s959 = scalar_lea.vmem [#allocation2], %s958
          %s961 = ssub.s32 128, 128
          %962 = vsyncadd %s956, %s961
          %s963 = smul.addr %s62, 128
          %s964 = scalar_lea.hbm %s3, %s963
          %s966 = sshll.u32 %s959, 4
          %s967 = int_to_ptr.vmem [resolvable:$true] %s966
          %969 = dma.hbm_to_vmem [thread:$0]  %s964, 128, %s967, %s956
        $region120: #{tpu_custom_call.1} parent=103 // pred_fallthru
          _
        // Predicated region
        $region121: #{tpu_custom_call.1} parent=103 // pred_check
          %p970 = pneg %p192
        $region122: #{tpu_custom_call.1} parent=103 // pred_check_branch
          %972 = sbr.rel (%p970) target = $region124
        $region123: #{tpu_custom_call.1} parent=103 // pred_region
          %s973 = sand.u32 %s54, 1
          %s974 = scalar_lea.sflag [#allocation6], %s973
          %s975 = sand.u32 %s182, 1
          %s976 = scalar_lea.vmem [#allocation5], %s975
          %s978 = ssub.s32 16, 16
          %979 = vsyncadd %s974, %s978
          %s980 = smul.addr %s61, 16
          %s981 = scalar_lea.hbm %s4, %s980
          %s983 = sshll.u32 %s976, 4
          %s984 = int_to_ptr.vmem [resolvable:$true] %s983
          %986 = dma.hbm_to_vmem [thread:$0]  %s981, 16, %s984, %s974
        $region124: #{tpu_custom_call.1} parent=103 // pred_fallthru
          _
      $region104: #{tpu_custom_call.1} parent=5 // pred_fallthru
        _
      %p987 = scmp.le.s32.totalorder 1, %s54
      %p988 = scmp.lt.s32.totalorder %s54, 5
      %p989 = pnand %p987, %p988
      %p990 = pneg %p989
      // Predicated region
      $region125: #{tpu_custom_call.1} parent=5 // pred_check
        _
      $region126: #{tpu_custom_call.1} parent=5 // pred_check_branch
        %992 = sbr.rel (%p989) target = $region128
      $region127: #{tpu_custom_call.1} parent=5 // pred_region
        %s993 = ssub.s32 %s54, 1
        %s994 = sand.u32 %s159, 1
        %s995 = scalar_lea.sflag [#allocation3], %s994
        %s996 = sand.u32 %s159, 1
        %s997 = smul.addr %s996, 8
        %s998 = scalar_lea.vmem [#allocation2], %s997
        // Predicated region
        $region129: #{tpu_custom_call.1} parent=127 // pred_check
          %p999 = pneg %p172
        $region130: #{tpu_custom_call.1} parent=127 // pred_check_branch
          %1001 = sbr.rel (%p999) target = $region132
        $region131: #{tpu_custom_call.1} parent=127 // pred_region
          %1002 = dma.done %s995, 128
        $region132: #{tpu_custom_call.1} parent=127 // pred_fallthru
          _
        %s1003 = sand.u32 %s59, 1
        %s1004 = scalar_lea.sflag [#allocation6], %s1003
        %s1005 = sand.u32 %s185, 1
        %s1006 = scalar_lea.vmem [#allocation5], %s1005
        // Predicated region
        $region133: #{tpu_custom_call.1} parent=127 // pred_check
          %p1007 = pneg %p198
        $region134: #{tpu_custom_call.1} parent=127 // pred_check_branch
          %1009 = sbr.rel (%p1007) target = $region136
        $region135: #{tpu_custom_call.1} parent=127 // pred_region
          %1010 = dma.done %s1004, 16
        $region136: #{tpu_custom_call.1} parent=127 // pred_fallthru
          _
        // Predicated region
        $region137: #{tpu_custom_call.1} parent=127 // pred_check
          %p1011 = pneg %p219
        $region138: #{tpu_custom_call.1} parent=127 // pred_check_branch
          %1013 = sbr.rel (%p1011) target = $region140
        $region139: #{tpu_custom_call.1} parent=127 // pred_region
          %1014 = dma.done [#allocation6], 512
        $region140: #{tpu_custom_call.1} parent=127 // pred_fallthru
          _
        // Predicated region
        $region141: #{tpu_custom_call.1} parent=127 // pred_check
          %p1015 = pneg %p240
        $region142: #{tpu_custom_call.1} parent=127 // pred_check_branch
          %1017 = sbr.rel (%p1015) target = $region144
        $region143: #{tpu_custom_call.1} parent=127 // pred_region
          %1018 = dma.done [#allocation9], 16
        $region144: #{tpu_custom_call.1} parent=127 // pred_fallthru
          _
        // Predicated region
        $region145: #{tpu_custom_call.1} parent=127 // pred_check
          %p1019 = pneg %p261
        $region146: #{tpu_custom_call.1} parent=127 // pred_check_branch
          %1021 = sbr.rel (%p1019) target = $region148
        $region147: #{tpu_custom_call.1} parent=127 // pred_region
          %1022 = dma.done [#allocation9], 512
        $region148: #{tpu_custom_call.1} parent=127 // pred_fallthru
          _
        // Predicated region
        $region149: #{tpu_custom_call.1} parent=127 // pred_check
          %p1023 = pneg %p282
        $region150: #{tpu_custom_call.1} parent=127 // pred_check_branch
          %1025 = sbr.rel (%p1023) target = $region152
        $region151: #{tpu_custom_call.1} parent=127 // pred_region
          %1026 = dma.done [#allocation12], 16
        $region152: #{tpu_custom_call.1} parent=127 // pred_fallthru
          _
        // Predicated region
        $region153: #{tpu_custom_call.1} parent=127 // pred_check
          %p1027 = pneg %p303
        $region154: #{tpu_custom_call.1} parent=127 // pred_check_branch
          %1029 = sbr.rel (%p1027) target = $region156
        $region155: #{tpu_custom_call.1} parent=127 // pred_region
          %1030 = dma.done [#allocation12], 512
        $region156: #{tpu_custom_call.1} parent=127 // pred_fallthru
          _
        // Predicated region
        $region157: #{tpu_custom_call.1} parent=127 // pred_check
          %p1031 = pneg %p324
        $region158: #{tpu_custom_call.1} parent=127 // pred_check_branch
          %1033 = sbr.rel (%p1031) target = $region160
        $region159: #{tpu_custom_call.1} parent=127 // pred_region
          %1034 = dma.done [#allocation15], 16
        $region160: #{tpu_custom_call.1} parent=127 // pred_fallthru
          _
        // Predicated region
        $region161: #{tpu_custom_call.1} parent=127 // pred_check
          %p1035 = pneg %p345
        $region162: #{tpu_custom_call.1} parent=127 // pred_check_branch
          %1037 = sbr.rel (%p1035) target = $region164
        $region163: #{tpu_custom_call.1} parent=127 // pred_region
          %1038 = dma.done [#allocation15], 16
        $region164: #{tpu_custom_call.1} parent=127 // pred_fallthru
          _
        // Predicated region
        $region165: #{tpu_custom_call.1} parent=127 // pred_check
          %p1039 = pneg %p366
        $region166: #{tpu_custom_call.1} parent=127 // pred_check_branch
          %1041 = sbr.rel (%p1039) target = $region168
        $region167: #{tpu_custom_call.1} parent=127 // pred_region
          %1042 = dma.done [#allocation18], 16
        $region168: #{tpu_custom_call.1} parent=127 // pred_fallthru
          _
        // Predicated region
        $region169: #{tpu_custom_call.1} parent=127 // pred_check
          %p1043 = pneg %p387
        $region170: #{tpu_custom_call.1} parent=127 // pred_check_branch
          %1045 = sbr.rel (%p1043) target = $region172
        $region171: #{tpu_custom_call.1} parent=127 // pred_region
          %1046 = dma.done [#allocation18], 512
        $region172: #{tpu_custom_call.1} parent=127 // pred_fallthru
          _
        // Predicated region
        $region173: #{tpu_custom_call.1} parent=127 // pred_check
          %p1047 = pneg %p408
        $region174: #{tpu_custom_call.1} parent=127 // pred_check_branch
          %1049 = sbr.rel (%p1047) target = $region176
        $region175: #{tpu_custom_call.1} parent=127 // pred_region
          %1050 = dma.done [#allocation21], 16
        $region176: #{tpu_custom_call.1} parent=127 // pred_fallthru
          _
        // Predicated region
        $region177: #{tpu_custom_call.1} parent=127 // pred_check
          %p1051 = pneg %p429
        $region178: #{tpu_custom_call.1} parent=127 // pred_check_branch
          %1053 = sbr.rel (%p1051) target = $region180
        $region179: #{tpu_custom_call.1} parent=127 // pred_region
          %1054 = dma.done [#allocation21], 512
        $region180: #{tpu_custom_call.1} parent=127 // pred_fallthru
          _
        // Predicated region
        $region181: #{tpu_custom_call.1} parent=127 // pred_check
          %p1055 = pneg %p450
        $region182: #{tpu_custom_call.1} parent=127 // pred_check_branch
          %1057 = sbr.rel (%p1055) target = $region184
        $region183: #{tpu_custom_call.1} parent=127 // pred_region
          %1058 = dma.done [#allocation24], 16
        $region184: #{tpu_custom_call.1} parent=127 // pred_fallthru
          _
        // Predicated region
        $region185: #{tpu_custom_call.1} parent=127 // pred_check
          %p1059 = pneg %p471
        $region186: #{tpu_custom_call.1} parent=127 // pred_check_branch
          %1061 = sbr.rel (%p1059) target = $region188
        $region187: #{tpu_custom_call.1} parent=127 // pred_region
          %1062 = dma.done [#allocation24], 512
        $region188: #{tpu_custom_call.1} parent=127 // pred_fallthru
          _
        // Predicated region
        $region189: #{tpu_custom_call.1} parent=127 // pred_check
          %p1063 = pneg %p492
        $region190: #{tpu_custom_call.1} parent=127 // pred_check_branch
          %1065 = sbr.rel (%p1063) target = $region192
        $region191: #{tpu_custom_call.1} parent=127 // pred_region
          %1066 = dma.done [#allocation27], 16
        $region192: #{tpu_custom_call.1} parent=127 // pred_fallthru
          _
        %p1067 = scmp.lt.s32.totalorder %s63, 1
        %s1068 = scalar_select %p1067, %s63, 1
        %p1069 = scmp.lt.s32.totalorder %s64, 1
        %s1070 = scalar_select %p1069, %s64, 1
        %s1071 = smul.addr %s1068, 2
        %s1072 = sadd.s32 %s1070, %s1071
        %s1073 = smul.addr %s1072, 8
        %s1074 = scalar_lea.vmem %s0, %s1073
        %p1075 = pneg %p94
        %p1076 = pneg %p91
        %p1077 = scmp.lt.s32.totalorder %s63, 1
        %s1078 = scalar_select %p1077, %s63, 1
        %s1079 = smul.addr %s1078, 2
        %s1080 = smul.addr %s1079, 8
        %s1081 = scalar_lea.vmem %s1, %s1080
        %p1082 = pneg %p120
        %p1083 = pneg %p117
        %p1084 = scmp.lt.s32.totalorder %s63, 1
        %s1085 = scalar_select %p1084, %s63, 1
        %s1086 = smul.addr %s1085, 2
        %s1087 = smul.addr %s1086, 8
        %s1088 = scalar_lea.vmem %s2, %s1087
        %p1089 = pneg %p146
        %p1090 = pneg %p143
        %s1091 = sand.u32 %s159, 1
        %s1092 = scalar_lea.sflag [#allocation3], %s1091
        %s1093 = sand.u32 %s159, 1
        %s1094 = smul.addr %s1093, 8
        %s1095 = scalar_lea.vmem [#allocation2], %s1094
        %p1096 = pneg %p172
        %p1097 = pneg %p169
        %s1098 = sand.u32 %s59, 1
        %s1099 = scalar_lea.sflag [#allocation6], %s1098
        %s1100 = sand.u32 %s185, 1
        %s1101 = scalar_lea.vmem [#allocation5], %s1100
        %p1102 = pneg %p198
        %p1103 = pneg %p195
        %p1104 = pneg %p219
        %p1105 = pneg %p216
        %p1106 = pneg %p240
        %p1107 = pneg %p237
        %p1108 = pneg %p261
        %p1109 = pneg %p258
        %p1110 = pneg %p282
        %p1111 = pneg %p279
        %p1112 = pneg %p303
        %p1113 = pneg %p300
        %p1114 = pneg %p324
        %p1115 = pneg %p321
        %p1116 = pneg %p345
        %p1117 = pneg %p342
        %p1118 = pneg %p366
        %p1119 = pneg %p363
        %p1120 = pneg %p387
        %p1121 = pneg %p384
        %p1122 = pneg %p408
        %p1123 = pneg %p405
        %p1124 = pneg %p429
        %p1125 = pneg %p426
        %p1126 = pneg %p450
        %p1127 = pneg %p447
        %p1128 = pneg %p471
        %p1129 = pneg %p468
        %p1130 = pneg %p492
        %p1131 = pneg %p489
        %p1132 = pneg %p513
        %p1133 = pneg %p510
        %p1134 = pneg %p534
        %p1135 = pneg %p531
        %p1136 = pneg %p555
        %p1137 = pneg %p552
        %p1138 = pneg %p576
        %p1139 = pneg %p573
        %p1140 = pneg %p597
        %p1141 = pneg %p594
        %p1142 = pneg %p618
        %p1143 = pneg %p615
        %p1144 = pneg %p639
        %p1145 = pneg %p636
        %p1146 = pneg %p660
        %p1147 = pneg %p657
        %p1148 = pneg %p688
        %p1149 = pneg %p685
        %s1150 = sand.u32 %s675, 1
        %s1151 = scalar_lea.sflag [#allocation4], %s1150
        %s1152 = sand.u32 %s675, 1
        %s1153 = smul.addr %s1152, 8
        %s1154 = scalar_lea.vmem [#allocation28], %s1153
        %p1155 = pneg %p716
        %p1156 = pneg %p713
        %s1157 = sand.u32 %s703, 1
        %s1158 = scalar_lea.sflag [#allocation30], %s1157
        %s1159 = sand.u32 %s703, 1
        %s1160 = smul.addr %s1159, 32
        %s1161 = scalar_lea.vmem [#allocation29], %s1160
        %p1162 = scmp.lt.s32.totalorder %s63, 1
        %s1163 = scalar_select %p1162, %s63, 1
        %p1164 = scmp.lt.s32.totalorder %s64, 1
        %s1165 = scalar_select %p1164, %s64, 1
        %s1166 = smul.addr %s1163, 2
        %s1167 = sadd.s32 %s1165, %s1166
        %s1168 = smul.addr %s1167, 8
        %s1169 = scalar_lea.vmem %s0, %s1168
        %p1170 = scmp.lt.s32.totalorder %s63, 1
        %s1171 = scalar_select %p1170, %s63, 1
        %s1172 = smul.addr %s1171, 2
        %s1173 = smul.addr %s1172, 8
        %s1174 = scalar_lea.vmem %s1, %s1173
        %p1175 = scmp.lt.s32.totalorder %s63, 1
        %s1176 = scalar_select %p1175, %s63, 1
        %s1177 = smul.addr %s1176, 2
        %s1178 = smul.addr %s1177, 8
        %s1179 = scalar_lea.vmem %s2, %s1178
        %v1180 = vld [vmem:[%s1169] sm:$0xff]
        %v1181 = vld [vmem:[%s1174] sm:$0xff]
        %v1182 = vld [vmem:[%s1174 + $0x8] sm:$0xff]
        %v1183 = vld [vmem:[%s1179] sm:$0xff]
        %v1184 = vld [vmem:[%s1179 + $0x8] sm:$0xff]
        %v1185 = vld [vmem:[#allocation7] sm:$0xff]
        %v1186 = vld [vmem:[#allocation7 + $0x8] sm:$0xff]
        %v1187 = vld [vmem:[#allocation7 + $0x10] sm:$0xff]
        %v1188 = vld [vmem:[#allocation7 + $0x18] sm:$0xff]
        %v1189 = vld [vmem:[#allocation8] sm:$0x1]
        %v1191 = vlaneseq
        %v1192 = vshrl.u32 %v1191, 7
        %v1193 = vsub.s32 0, %v1192
        %v1194 = vrot.slane %v1189, %v1193
        %vm1196 = vcmask 261120
        %v1198 = vsel %vm1196, %v1180, 0
        %1200 = vmatprep.subr.mxu0 0.0
        %1201 = vmatpush1.msra.mxu0 0.0
        %1202 = vmatprep.subr.mxu0 0.0
        %1203 = vmatpush1.msra.mxu0 0.0
        %1204 = vmatprep.subr.mxu0 0.0
        %1205 = vmatpush1.msra.mxu0 0.0
        %1206 = vmatprep.subr.mxu0 0.0
        %1207 = vmatpush1.msra.mxu0 0.0
        %1208 = vmatprep.subr.mxu0 0.0
        %1209 = vmatpush1.msra.mxu0 0.0
        %1210 = vmatprep.subr.mxu0 0.0
        %1211 = vmatpush1.msra.mxu0 0.0
        %1212 = vmatprep.subr.mxu0 0.0
        %1213 = vmatpush1.msra.mxu0 0.0
        %1214 = vmatprep.subr.mxu0 0.0
        %1215 = vmatpush1.msra.mxu0 0.0
        %1216 = vmatprep.subr.mxu0 0.0
        %1217 = vmatpush1.msra.mxu0 0.0
        %1218 = vmatprep.subr.mxu0 0.0
        %1219 = vmatpush1.msra.mxu0 0.0
        %1220 = vmatprep.subr.mxu0 0.0
        %1221 = vmatpush1.msra.mxu0 0.0
        %1222 = vmatprep.subr.mxu0 0.0
        %1223 = vmatpush1.msra.mxu0 0.0
        %1224 = vmatprep.subr.mxu0 0.0
        %1225 = vmatpush1.msra.mxu0 %v1188
        %1226 = vmatprep.subr.mxu0 0.0
        %1227 = vmatpush1.msra.mxu0 %v1187
        %1228 = vmatprep.subr.mxu0 0.0
        %1229 = vmatpush1.msra.mxu0 %v1186
        %1230 = vmatprep.subr.mxu0 0.0
        %1231 = vmatpush1.msra.mxu0 %v1185
        %1232 = vmatprep.subr.mxu0 0.0
        %1233 = vmatpush2.msra.mxu0 0.0
        %1234 = vmatprep.subr.mxu0 0.0
        %1235 = vmatpush2.msra.mxu0 0.0
        %1236 = vmatprep.subr.mxu0 0.0
        %1237 = vmatpush2.msra.mxu0 0.0
        %1238 = vmatprep.subr.mxu0 0.0
        %1239 = vmatpush2.msra.mxu0 0.0
        %1240 = vmatprep.subr.mxu0 0.0
        %1241 = vmatpush2.msra.mxu0 0.0
        %1242 = vmatprep.subr.mxu0 0.0
        %1243 = vmatpush2.msra.mxu0 0.0
        %1244 = vmatprep.subr.mxu0 0.0
        %1245 = vmatpush2.msra.mxu0 0.0
        %1246 = vmatprep.subr.mxu0 0.0
        %1247 = vmatpush2.msra.mxu0 0.0
        %1248 = vmatprep.subr.mxu0 0.0
        %1249 = vmatpush2.msra.mxu0 0.0
        %1250 = vmatprep.subr.mxu0 0.0
        %1251 = vmatpush2.msra.mxu0 0.0
        %1252 = vmatprep.subr.mxu0 0.0
        %1253 = vmatpush2.msra.mxu0 0.0
        %1254 = vmatprep.subr.mxu0 0.0
        %1255 = vmatpush2.msra.mxu0 0.0
        %1256 = vmatprep.subr.mxu0 0.0
        %1257 = vmatpush2.msra.mxu0 0.0
        %1258 = vmatprep.subr.mxu0 0.0
        %1259 = vmatpush2.msra.mxu0 0.0
        %1260 = vmatprep.subr.mxu0 0.0
        %1261 = vmatpush2.msra.mxu0 0.0
        %1262 = vmatprep.subr.mxu0 0.0
        %1263 = vmatpush2.msra.mxu0 0.0
        %1264 = vmatprep.mubr.f32.mxu0 0.0
        %1265 = vmatmul.mubr.f32.gmra.mxu0 %v1198
        %v1266 = vpop.f32.mrf.mxu0
        %v1267 = vadd.f32 %v1194, %v1266
        %v1268 = vpop.f32.mrf.mxu0
        %1269 = vdwg.mxu0
        %v1270 = vld [vmem:[#allocation10] sm:$0xff]
        %v1271 = vld [vmem:[#allocation10 + $0x8] sm:$0xff]
        %v1272 = vld [vmem:[#allocation10 + $0x10] sm:$0xff]
        %v1273 = vld [vmem:[#allocation10 + $0x18] sm:$0xff]
        %v1274 = vld [vmem:[#allocation11] sm:$0x1]
        %v1276 = vlaneseq
        %v1277 = vshrl.u32 %v1276, 7
        %v1278 = vsub.s32 0, %v1277
        %v1279 = vrot.slane %v1274, %v1278
        %v1282 = vsel %vm1196, %v1181, 0
        %v1285 = vsel %vm1196, %v1182, 0
        %1287 = vmatprep.subr.mxu0 0.0
        %1288 = vmatpush1.msra.mxu0 0.0
        %1289 = vmatprep.subr.mxu0 0.0
        %1290 = vmatpush1.msra.mxu0 0.0
        %1291 = vmatprep.subr.mxu0 0.0
        %1292 = vmatpush1.msra.mxu0 0.0
        %1293 = vmatprep.subr.mxu0 0.0
        %1294 = vmatpush1.msra.mxu0 0.0
        %1295 = vmatprep.subr.mxu0 0.0
        %1296 = vmatpush1.msra.mxu0 0.0
        %1297 = vmatprep.subr.mxu0 0.0
        %1298 = vmatpush1.msra.mxu0 0.0
        %1299 = vmatprep.subr.mxu0 0.0
        %1300 = vmatpush1.msra.mxu0 0.0
        %1301 = vmatprep.subr.mxu0 0.0
        %1302 = vmatpush1.msra.mxu0 0.0
        %1303 = vmatprep.subr.mxu0 0.0
        %1304 = vmatpush1.msra.mxu0 0.0
        %1305 = vmatprep.subr.mxu0 0.0
        %1306 = vmatpush1.msra.mxu0 0.0
        %1307 = vmatprep.subr.mxu0 0.0
        %1308 = vmatpush1.msra.mxu0 0.0
        %1309 = vmatprep.subr.mxu0 0.0
        %1310 = vmatpush1.msra.mxu0 0.0
        %1311 = vmatprep.subr.mxu0 0.0
        %1312 = vmatpush1.msra.mxu0 %v1273
        %1313 = vmatprep.subr.mxu0 0.0
        %1314 = vmatpush1.msra.mxu0 %v1272
        %1315 = vmatprep.subr.mxu0 0.0
        %1316 = vmatpush1.msra.mxu0 %v1271
        %1317 = vmatprep.subr.mxu0 0.0
        %1318 = vmatpush1.msra.mxu0 %v1270
        %1319 = vmatprep.subr.mxu0 0.0
        %1320 = vmatpush2.msra.mxu0 0.0
        %1321 = vmatprep.subr.mxu0 0.0
        %1322 = vmatpush2.msra.mxu0 0.0
        %1323 = vmatprep.subr.mxu0 0.0
        %1324 = vmatpush2.msra.mxu0 0.0
        %1325 = vmatprep.subr.mxu0 0.0
        %1326 = vmatpush2.msra.mxu0 0.0
        %1327 = vmatprep.subr.mxu0 0.0
        %1328 = vmatpush2.msra.mxu0 0.0
        %1329 = vmatprep.subr.mxu0 0.0
        %1330 = vmatpush2.msra.mxu0 0.0
        %1331 = vmatprep.subr.mxu0 0.0
        %1332 = vmatpush2.msra.mxu0 0.0
        %1333 = vmatprep.subr.mxu0 0.0
        %1334 = vmatpush2.msra.mxu0 0.0
        %1335 = vmatprep.subr.mxu0 0.0
        %1336 = vmatpush2.msra.mxu0 0.0
        %1337 = vmatprep.subr.mxu0 0.0
        %1338 = vmatpush2.msra.mxu0 0.0
        %1339 = vmatprep.subr.mxu0 0.0
        %1340 = vmatpush2.msra.mxu0 0.0
        %1341 = vmatprep.subr.mxu0 0.0
        %1342 = vmatpush2.msra.mxu0 0.0
        %1343 = vmatprep.subr.mxu0 0.0
        %1344 = vmatpush2.msra.mxu0 0.0
        %1345 = vmatprep.subr.mxu0 0.0
        %1346 = vmatpush2.msra.mxu0 0.0
        %1347 = vmatprep.subr.mxu0 0.0
        %1348 = vmatpush2.msra.mxu0 0.0
        %1349 = vmatprep.subr.mxu0 0.0
        %1350 = vmatpush2.msra.mxu0 0.0
        %1351 = vmatprep.mubr.f32.mxu0 0.0
        %1352 = vmatmul.mubr.f32.gmra.mxu0 %v1282
        %v1353 = vpop.f32.mrf.mxu0
        %v1354 = vadd.f32 %v1279, %v1353
        %v1355 = vpop.f32.mrf.mxu0
        %1356 = vmatprep.mubr.f32.mxu0 0.0
        %1357 = vmatmul.mubr.f32.gmra.mxu0 %v1285
        %v1358 = vpop.f32.mrf.mxu0
        %v1359 = vadd.f32 %v1279, %v1358
        %v1360 = vpop.f32.mrf.mxu0
        %1361 = vdwg.mxu0
        %v1362 = vld [vmem:[%s998] sm:$0xff]
        %vm1363 = vcmask 64512
        %v1365 = vsel %vm1363, %v1267, 0
        %v1368 = vsel %vm1363, %v1354, 0
        %v1371 = vsel %vm1363, %v1359, 0
        %1373 = vmatprep.subr.mxu0 0.0
        %1374 = vmatpush1.xpose.msra.mxu0 0.0
        %1375 = vmatprep.subr.mxu0 0.0
        %1376 = vmatpush1.xpose.msra.mxu0 0.0
        %1377 = vmatprep.subr.mxu0 0.0
        %1378 = vmatpush1.xpose.msra.mxu0 0.0
        %1379 = vmatprep.subr.mxu0 0.0
        %1380 = vmatpush1.xpose.msra.mxu0 0.0
        %1381 = vmatprep.subr.mxu0 0.0
        %1382 = vmatpush1.xpose.msra.mxu0 0.0
        %1383 = vmatprep.subr.mxu0 0.0
        %1384 = vmatpush1.xpose.msra.mxu0 0.0
        %1385 = vmatprep.subr.mxu0 0.0
        %1386 = vmatpush1.xpose.msra.mxu0 0.0
        %1387 = vmatprep.subr.mxu0 0.0
        %1388 = vmatpush1.xpose.msra.mxu0 0.0
        %1389 = vmatprep.subr.mxu0 0.0
        %1390 = vmatpush1.xpose.msra.mxu0 0.0
        %1391 = vmatprep.subr.mxu0 0.0
        %1392 = vmatpush1.xpose.msra.mxu0 0.0
        %1393 = vmatprep.subr.mxu0 0.0
        %1394 = vmatpush1.xpose.msra.mxu0 0.0
        %1395 = vmatprep.subr.mxu0 0.0
        %1396 = vmatpush1.xpose.msra.mxu0 0.0
        %1397 = vmatprep.subr.mxu0 0.0
        %1398 = vmatpush1.xpose.msra.mxu0 0.0
        %1399 = vmatprep.subr.mxu0 0.0
        %1400 = vmatpush1.xpose.msra.mxu0 0.0
        %1401 = vmatprep.subr.mxu0 0.0
        %1402 = vmatpush1.xpose.msra.mxu0 %v1371
        %1403 = vmatprep.subr.mxu0 0.0
        %1404 = vmatpush1.xpose.msra.mxu0 %v1368
        %1405 = vmatprep.subr.mxu0 0.0
        %1406 = vmatpush2.xpose.msra.mxu0 0.0
        %1407 = vmatprep.subr.mxu0 0.0
        %1408 = vmatpush2.xpose.msra.mxu0 0.0
        %1409 = vmatprep.subr.mxu0 0.0
        %1410 = vmatpush2.xpose.msra.mxu0 0.0
        %1411 = vmatprep.subr.mxu0 0.0
        %1412 = vmatpush2.xpose.msra.mxu0 0.0
        %1413 = vmatprep.subr.mxu0 0.0
        %1414 = vmatpush2.xpose.msra.mxu0 0.0
        %1415 = vmatprep.subr.mxu0 0.0
        %1416 = vmatpush2.xpose.msra.mxu0 0.0
        %1417 = vmatprep.subr.mxu0 0.0
        %1418 = vmatpush2.xpose.msra.mxu0 0.0
        %1419 = vmatprep.subr.mxu0 0.0
        %1420 = vmatpush2.xpose.msra.mxu0 0.0
        %1421 = vmatprep.subr.mxu0 0.0
        %1422 = vmatpush2.xpose.msra.mxu0 0.0
        %1423 = vmatprep.subr.mxu0 0.0
        %1424 = vmatpush2.xpose.msra.mxu0 0.0
        %1425 = vmatprep.subr.mxu0 0.0
        %1426 = vmatpush2.xpose.msra.mxu0 0.0
        %1427 = vmatprep.subr.mxu0 0.0
        %1428 = vmatpush2.xpose.msra.mxu0 0.0
        %1429 = vmatprep.subr.mxu0 0.0
        %1430 = vmatpush2.xpose.msra.mxu0 0.0
        %1431 = vmatprep.subr.mxu0 0.0
        %1432 = vmatpush2.xpose.msra.mxu0 0.0
        %1433 = vmatprep.subr.mxu0 0.0
        %1434 = vmatpush2.xpose.msra.mxu0 0.0
        %1435 = vmatprep.subr.mxu0 0.0
        %1436 = vmatpush2.xpose.msra.mxu0 0.0
        %1437 = vmatprep.mubr.f32.mxu0 0.0
        %1438 = vmatmul.mubr.f32.gmra.mxu0 %v1365
        %v1439 = vpop.f32.mrf.mxu0
        %v1440 = vadd.f32 0.0, %v1439
        %v1441 = vpop.f32.mrf.mxu0
        %1442 = vdwg.mxu0
        %vm1443 = vcmp.ne.f32.partialorder %v1362, 0.0
        %v1444 = vsel %vm1443, %v1440, -1e+10
        %vm1445 = vcmask 130048
        %v1446 = vsel %vm1445, %v1444, -inf
        %1447 = vmax.xlane.f32.xlu0 %v1446
        %v1448 = vpop.xlane.xlu0 %1447
        %v1449 = vsub.f32 %v1444, %v1448
        %v1450 = vmul.f32 %v1449, 1.442695
        %v1451 = vpow.pop %v1450
        %v1452 = vsel %vm1445, %v1451, 0.0
        %1453 = vadd.xlane.f32.xlu0 %v1452
        %v1454 = vpop.xlane.xlu0 %1453
        %v1455 = vrcp.pop %v1454
        %v1456 = vmul.f32 %v1451, %v1455
        %1457 = vrot.lane.b32.xlu0 %v1354, 96
        %v1458 = vpop.permute.xlu0 %1457
        %1459 = vrot.lane.b32.xlu0 %v1359, 96
        %v1460 = vpop.permute.xlu0 %1459
        %v1464 = vsel %vm1445, %v1456, 0
        %1466 = vmatprep.subr.mxu0 0.0
        %1467 = vmatpush1.msra.mxu0 0.0
        %1468 = vmatprep.subr.mxu0 0.0
        %1469 = vmatpush1.msra.mxu0 0.0
        %1470 = vmatprep.subr.mxu0 0.0
        %1471 = vmatpush1.msra.mxu0 0.0
        %1472 = vmatprep.subr.mxu0 0.0
        %1473 = vmatpush1.msra.mxu0 0.0
        %1474 = vmatprep.subr.mxu0 0.0
        %1475 = vmatpush1.msra.mxu0 0.0
        %1476 = vmatprep.subr.mxu0 0.0
        %1477 = vmatpush1.msra.mxu0 0.0
        %1478 = vmatprep.subr.mxu0 0.0
        %1479 = vmatpush1.msra.mxu0 0.0
        %1480 = vmatprep.subr.mxu0 0.0
        %1481 = vmatpush1.msra.mxu0 0.0
        %1482 = vmatprep.subr.mxu0 0.0
        %1483 = vmatpush1.msra.mxu0 0.0
        %1484 = vmatprep.subr.mxu0 0.0
        %1485 = vmatpush1.msra.mxu0 0.0
        %1486 = vmatprep.subr.mxu0 0.0
        %1487 = vmatpush1.msra.mxu0 0.0
        %1488 = vmatprep.subr.mxu0 0.0
        %1489 = vmatpush1.msra.mxu0 0.0
        %1490 = vmatprep.subr.mxu0 0.0
        %1491 = vmatpush1.msra.mxu0 0.0
        %1492 = vmatprep.subr.mxu0 0.0
        %1493 = vmatpush1.msra.mxu0 0.0
        %1494 = vmatprep.subr.mxu0 0.0
        %1495 = vmatpush1.msra.mxu0 %v1460
        %1496 = vmatprep.subr.mxu0 0.0
        %1497 = vmatpush1.msra.mxu0 %v1458
        %1498 = vmatprep.subr.mxu0 0.0
        %1499 = vmatpush2.msra.mxu0 0.0
        %1500 = vmatprep.subr.mxu0 0.0
        %1501 = vmatpush2.msra.mxu0 0.0
        %1502 = vmatprep.subr.mxu0 0.0
        %1503 = vmatpush2.msra.mxu0 0.0
        %1504 = vmatprep.subr.mxu0 0.0
        %1505 = vmatpush2.msra.mxu0 0.0
        %1506 = vmatprep.subr.mxu0 0.0
        %1507 = vmatpush2.msra.mxu0 0.0
        %1508 = vmatprep.subr.mxu0 0.0
        %1509 = vmatpush2.msra.mxu0 0.0
        %1510 = vmatprep.subr.mxu0 0.0
        %1511 = vmatpush2.msra.mxu0 0.0
        %1512 = vmatprep.subr.mxu0 0.0
        %1513 = vmatpush2.msra.mxu0 0.0
        %1514 = vmatprep.subr.mxu0 0.0
        %1515 = vmatpush2.msra.mxu0 0.0
        %1516 = vmatprep.subr.mxu0 0.0
        %1517 = vmatpush2.msra.mxu0 0.0
        %1518 = vmatprep.subr.mxu0 0.0
        %1519 = vmatpush2.msra.mxu0 0.0
        %1520 = vmatprep.subr.mxu0 0.0
        %1521 = vmatpush2.msra.mxu0 0.0
        %1522 = vmatprep.subr.mxu0 0.0
        %1523 = vmatpush2.msra.mxu0 0.0
        %1524 = vmatprep.subr.mxu0 0.0
        %1525 = vmatpush2.msra.mxu0 0.0
        %1526 = vmatprep.subr.mxu0 0.0
        %1527 = vmatpush2.msra.mxu0 0.0
        %1528 = vmatprep.subr.mxu0 0.0
        %1529 = vmatpush2.msra.mxu0 0.0
        %1530 = vmatprep.mubr.f32.mxu0 0.0
        %1531 = vmatmul.mubr.f32.gmra.mxu0 %v1464
        %v1532 = vpop.f32.mrf.mxu0
        %v1533 = vadd.f32 0.0, %v1532
        %v1534 = vpop.f32.mrf.mxu0
        %1535 = vdwg.mxu0
        %v1536 = vld [vmem:[#allocation13] sm:$0xff]
        %1537 = vrot.lane.b32.xlu0 %v1267, 120
        %v1538 = vpop.permute.xlu0 %1537
        %1539 = vrot.lane.b32.xlu0 %v1354, 120
        %v1540 = vpop.permute.xlu0 %1539
        %1541 = vrot.lane.b32.xlu0 %v1359, 120
        %v1542 = vpop.permute.xlu0 %1541
        %v1543 = vsel %vm1363, %v1538, 0
        %v1545 = vsel %vm1363, %v1540, 0
        %v1547 = vsel %vm1363, %v1542, 0
        %1549 = vmatprep.subr.mxu0 0.0
        %1550 = vmatpush1.xpose.msra.mxu0 0.0
        %1551 = vmatprep.subr.mxu0 0.0
        %1552 = vmatpush1.xpose.msra.mxu0 0.0
        %1553 = vmatprep.subr.mxu0 0.0
        %1554 = vmatpush1.xpose.msra.mxu0 0.0
        %1555 = vmatprep.subr.mxu0 0.0
        %1556 = vmatpush1.xpose.msra.mxu0 0.0
        %1557 = vmatprep.subr.mxu0 0.0
        %1558 = vmatpush1.xpose.msra.mxu0 0.0
        %1559 = vmatprep.subr.mxu0 0.0
        %1560 = vmatpush1.xpose.msra.mxu0 0.0
        %1561 = vmatprep.subr.mxu0 0.0
        %1562 = vmatpush1.xpose.msra.mxu0 0.0
        %1563 = vmatprep.subr.mxu0 0.0
        %1564 = vmatpush1.xpose.msra.mxu0 0.0
        %1565 = vmatprep.subr.mxu0 0.0
        %1566 = vmatpush1.xpose.msra.mxu0 0.0
        %1567 = vmatprep.subr.mxu0 0.0
        %1568 = vmatpush1.xpose.msra.mxu0 0.0
        %1569 = vmatprep.subr.mxu0 0.0
        %1570 = vmatpush1.xpose.msra.mxu0 0.0
        %1571 = vmatprep.subr.mxu0 0.0
        %1572 = vmatpush1.xpose.msra.mxu0 0.0
        %1573 = vmatprep.subr.mxu0 0.0
        %1574 = vmatpush1.xpose.msra.mxu0 0.0
        %1575 = vmatprep.subr.mxu0 0.0
        %1576 = vmatpush1.xpose.msra.mxu0 0.0
        %1577 = vmatprep.subr.mxu0 0.0
        %1578 = vmatpush1.xpose.msra.mxu0 %v1547
        %1579 = vmatprep.subr.mxu0 0.0
        %1580 = vmatpush1.xpose.msra.mxu0 %v1545
        %1581 = vmatprep.subr.mxu0 0.0
        %1582 = vmatpush2.xpose.msra.mxu0 0.0
        %1583 = vmatprep.subr.mxu0 0.0
        %1584 = vmatpush2.xpose.msra.mxu0 0.0
        %1585 = vmatprep.subr.mxu0 0.0
        %1586 = vmatpush2.xpose.msra.mxu0 0.0
        %1587 = vmatprep.subr.mxu0 0.0
        %1588 = vmatpush2.xpose.msra.mxu0 0.0
        %1589 = vmatprep.subr.mxu0 0.0
        %1590 = vmatpush2.xpose.msra.mxu0 0.0
        %1591 = vmatprep.subr.mxu0 0.0
        %1592 = vmatpush2.xpose.msra.mxu0 0.0
        %1593 = vmatprep.subr.mxu0 0.0
        %1594 = vmatpush2.xpose.msra.mxu0 0.0
        %1595 = vmatprep.subr.mxu0 0.0
        %1596 = vmatpush2.xpose.msra.mxu0 0.0
        %1597 = vmatprep.subr.mxu0 0.0
        %1598 = vmatpush2.xpose.msra.mxu0 0.0
        %1599 = vmatprep.subr.mxu0 0.0
        %1600 = vmatpush2.xpose.msra.mxu0 0.0
        %1601 = vmatprep.subr.mxu0 0.0
        %1602 = vmatpush2.xpose.msra.mxu0 0.0
        %1603 = vmatprep.subr.mxu0 0.0
        %1604 = vmatpush2.xpose.msra.mxu0 0.0
        %1605 = vmatprep.subr.mxu0 0.0
        %1606 = vmatpush2.xpose.msra.mxu0 0.0
        %1607 = vmatprep.subr.mxu0 0.0
        %1608 = vmatpush2.xpose.msra.mxu0 0.0
        %1609 = vmatprep.subr.mxu0 0.0
        %1610 = vmatpush2.xpose.msra.mxu0 0.0
        %1611 = vmatprep.subr.mxu0 0.0
        %1612 = vmatpush2.xpose.msra.mxu0 0.0
        %1613 = vmatprep.mubr.f32.mxu0 0.0
        %1614 = vmatmul.mubr.f32.gmra.mxu0 %v1543
        %v1615 = vpop.f32.mrf.mxu0
        %v1616 = vadd.f32 0.0, %v1615
        %v1617 = vpop.f32.mrf.mxu0
        %1618 = vdwg.mxu0
        %v1619 = vsel %vm1443, %v1616, -1e+10
        %v1620 = vsel %vm1445, %v1619, -inf
        %1621 = vmax.xlane.f32.xlu0 %v1620
        %v1622 = vpop.xlane.xlu0 %1621
        %v1623 = vsub.f32 %v1619, %v1622
        %v1624 = vmul.f32 %v1623, 1.442695
        %v1625 = vpow.pop %v1624
        %v1626 = vsel %vm1445, %v1625, 0.0
        %1627 = vadd.xlane.f32.xlu0 %v1626
        %v1628 = vpop.xlane.xlu0 %1627
        %v1629 = vrcp.pop %v1628
        %v1630 = vmul.f32 %v1625, %v1629
        %1631 = vrot.lane.b32.xlu0 %v1354, 88
        %v1632 = vpop.permute.xlu0 %1631
        %1633 = vrot.lane.b32.xlu0 %v1359, 88
        %v1634 = vpop.permute.xlu0 %1633
        %v1638 = vsel %vm1445, %v1630, 0
        %1640 = vmatprep.subr.mxu0 0.0
        %1641 = vmatpush1.msra.mxu0 0.0
        %1642 = vmatprep.subr.mxu0 0.0
        %1643 = vmatpush1.msra.mxu0 0.0
        %1644 = vmatprep.subr.mxu0 0.0
        %1645 = vmatpush1.msra.mxu0 0.0
        %1646 = vmatprep.subr.mxu0 0.0
        %1647 = vmatpush1.msra.mxu0 0.0
        %1648 = vmatprep.subr.mxu0 0.0
        %1649 = vmatpush1.msra.mxu0 0.0
        %1650 = vmatprep.subr.mxu0 0.0
        %1651 = vmatpush1.msra.mxu0 0.0
        %1652 = vmatprep.subr.mxu0 0.0
        %1653 = vmatpush1.msra.mxu0 0.0
        %1654 = vmatprep.subr.mxu0 0.0
        %1655 = vmatpush1.msra.mxu0 0.0
        %1656 = vmatprep.subr.mxu0 0.0
        %1657 = vmatpush1.msra.mxu0 0.0
        %1658 = vmatprep.subr.mxu0 0.0
        %1659 = vmatpush1.msra.mxu0 0.0
        %1660 = vmatprep.subr.mxu0 0.0
        %1661 = vmatpush1.msra.mxu0 0.0
        %1662 = vmatprep.subr.mxu0 0.0
        %1663 = vmatpush1.msra.mxu0 0.0
        %1664 = vmatprep.subr.mxu0 0.0
        %1665 = vmatpush1.msra.mxu0 0.0
        %1666 = vmatprep.subr.mxu0 0.0
        %1667 = vmatpush1.msra.mxu0 0.0
        %1668 = vmatprep.subr.mxu0 0.0
        %1669 = vmatpush1.msra.mxu0 %v1634
        %1670 = vmatprep.subr.mxu0 0.0
        %1671 = vmatpush1.msra.mxu0 %v1632
        %1672 = vmatprep.subr.mxu0 0.0
        %1673 = vmatpush2.msra.mxu0 0.0
        %1674 = vmatprep.subr.mxu0 0.0
        %1675 = vmatpush2.msra.mxu0 0.0
        %1676 = vmatprep.subr.mxu0 0.0
        %1677 = vmatpush2.msra.mxu0 0.0
        %1678 = vmatprep.subr.mxu0 0.0
        %1679 = vmatpush2.msra.mxu0 0.0
        %1680 = vmatprep.subr.mxu0 0.0
        %1681 = vmatpush2.msra.mxu0 0.0
        %1682 = vmatprep.subr.mxu0 0.0
        %1683 = vmatpush2.msra.mxu0 0.0
        %1684 = vmatprep.subr.mxu0 0.0
        %1685 = vmatpush2.msra.mxu0 0.0
        %1686 = vmatprep.subr.mxu0 0.0
        %1687 = vmatpush2.msra.mxu0 0.0
        %1688 = vmatprep.subr.mxu0 0.0
        %1689 = vmatpush2.msra.mxu0 0.0
        %1690 = vmatprep.subr.mxu0 0.0
        %1691 = vmatpush2.msra.mxu0 0.0
        %1692 = vmatprep.subr.mxu0 0.0
        %1693 = vmatpush2.msra.mxu0 0.0
        %1694 = vmatprep.subr.mxu0 0.0
        %1695 = vmatpush2.msra.mxu0 0.0
        %1696 = vmatprep.subr.mxu0 0.0
        %1697 = vmatpush2.msra.mxu0 0.0
        %1698 = vmatprep.subr.mxu0 0.0
        %1699 = vmatpush2.msra.mxu0 0.0
        %1700 = vmatprep.subr.mxu0 0.0
        %1701 = vmatpush2.msra.mxu0 0.0
        %1702 = vmatprep.subr.mxu0 0.0
        %1703 = vmatpush2.msra.mxu0 0.0
        %1704 = vmatprep.mubr.f32.mxu0 0.0
        %1705 = vmatmul.mubr.f32.gmra.mxu0 %v1638
        %v1706 = vpop.f32.mrf.mxu0
        %v1707 = vadd.f32 0.0, %v1706
        %v1708 = vpop.f32.mrf.mxu0
        %1709 = vdwg.mxu0
        %s1710 = scalar_lea.vmem [#allocation13], 8
        %v1711 = vld [vmem:[%s1710] sm:$0xff]
        %v1713 = vsel %vm1363, %v1707, 0
        %1715 = vmatprep.subr.mxu0 0.0
        %1716 = vmatpush1.msra.mxu0 0.0
        %1717 = vmatprep.subr.mxu0 0.0
        %1718 = vmatpush1.msra.mxu0 0.0
        %1719 = vmatprep.subr.mxu0 0.0
        %1720 = vmatpush1.msra.mxu0 0.0
        %1721 = vmatprep.subr.mxu0 0.0
        %1722 = vmatpush1.msra.mxu0 0.0
        %1723 = vmatprep.subr.mxu0 0.0
        %1724 = vmatpush1.msra.mxu0 0.0
        %1725 = vmatprep.subr.mxu0 0.0
        %1726 = vmatpush1.msra.mxu0 0.0
        %1727 = vmatprep.subr.mxu0 0.0
        %1728 = vmatpush1.msra.mxu0 0.0
        %1729 = vmatprep.subr.mxu0 0.0
        %1730 = vmatpush1.msra.mxu0 0.0
        %1731 = vmatprep.subr.mxu0 0.0
        %1732 = vmatpush1.msra.mxu0 0.0
        %1733 = vmatprep.subr.mxu0 0.0
        %1734 = vmatpush1.msra.mxu0 0.0
        %1735 = vmatprep.subr.mxu0 0.0
        %1736 = vmatpush1.msra.mxu0 0.0
        %1737 = vmatprep.subr.mxu0 0.0
        %1738 = vmatpush1.msra.mxu0 0.0
        %1739 = vmatprep.subr.mxu0 0.0
        %1740 = vmatpush1.msra.mxu0 0.0
        %1741 = vmatprep.subr.mxu0 0.0
        %1742 = vmatpush1.msra.mxu0 0.0
        %1743 = vmatprep.subr.mxu0 0.0
        %1744 = vmatpush1.msra.mxu0 0.0
        %1745 = vmatprep.subr.mxu0 0.0
        %1746 = vmatpush1.msra.mxu0 %v1711
        %1747 = vmatprep.subr.mxu0 0.0
        %1748 = vmatpush2.msra.mxu0 0.0
        %1749 = vmatprep.subr.mxu0 0.0
        %1750 = vmatpush2.msra.mxu0 0.0
        %1751 = vmatprep.subr.mxu0 0.0
        %1752 = vmatpush2.msra.mxu0 0.0
        %1753 = vmatprep.subr.mxu0 0.0
        %1754 = vmatpush2.msra.mxu0 0.0
        %1755 = vmatprep.subr.mxu0 0.0
        %1756 = vmatpush2.msra.mxu0 0.0
        %1757 = vmatprep.subr.mxu0 0.0
        %1758 = vmatpush2.msra.mxu0 0.0
        %1759 = vmatprep.subr.mxu0 0.0
        %1760 = vmatpush2.msra.mxu0 0.0
        %1761 = vmatprep.subr.mxu0 0.0
        %1762 = vmatpush2.msra.mxu0 0.0
        %1763 = vmatprep.subr.mxu0 0.0
        %1764 = vmatpush2.msra.mxu0 0.0
        %1765 = vmatprep.subr.mxu0 0.0
        %1766 = vmatpush2.msra.mxu0 0.0
        %1767 = vmatprep.subr.mxu0 0.0
        %1768 = vmatpush2.msra.mxu0 0.0
        %1769 = vmatprep.subr.mxu0 0.0
        %1770 = vmatpush2.msra.mxu0 0.0
        %1771 = vmatprep.subr.mxu0 0.0
        %1772 = vmatpush2.msra.mxu0 0.0
        %1773 = vmatprep.subr.mxu0 0.0
        %1774 = vmatpush2.msra.mxu0 0.0
        %1775 = vmatprep.subr.mxu0 0.0
        %1776 = vmatpush2.msra.mxu0 0.0
        %1777 = vmatprep.subr.mxu0 0.0
        %1778 = vmatpush2.msra.mxu0 0.0
        %1779 = vmatprep.mubr.f32.mxu0 0.0
        %1780 = vmatmul.mubr.f32.gmra.mxu0 %v1713
        %v1781 = vpop.f32.mrf.mxu0
        %v1782 = vadd.f32 0.0, %v1781
        %v1783 = vpop.f32.mrf.mxu0
        %1784 = vdwg.mxu0
        %v1786 = vsel %vm1363, %v1533, 0
        %1788 = vmatprep.subr.mxu0 0.0
        %1789 = vmatpush1.msra.mxu0 0.0
        %1790 = vmatprep.subr.mxu0 0.0
        %1791 = vmatpush1.msra.mxu0 0.0
        %1792 = vmatprep.subr.mxu0 0.0
        %1793 = vmatpush1.msra.mxu0 0.0
        %1794 = vmatprep.subr.mxu0 0.0
        %1795 = vmatpush1.msra.mxu0 0.0
        %1796 = vmatprep.subr.mxu0 0.0
        %1797 = vmatpush1.msra.mxu0 0.0
        %1798 = vmatprep.subr.mxu0 0.0
        %1799 = vmatpush1.msra.mxu0 0.0
        %1800 = vmatprep.subr.mxu0 0.0
        %1801 = vmatpush1.msra.mxu0 0.0
        %1802 = vmatprep.subr.mxu0 0.0
        %1803 = vmatpush1.msra.mxu0 0.0
        %1804 = vmatprep.subr.mxu0 0.0
        %1805 = vmatpush1.msra.mxu0 0.0
        %1806 = vmatprep.subr.mxu0 0.0
        %1807 = vmatpush1.msra.mxu0 0.0
        %1808 = vmatprep.subr.mxu0 0.0
        %1809 = vmatpush1.msra.mxu0 0.0
        %1810 = vmatprep.subr.mxu0 0.0
        %1811 = vmatpush1.msra.mxu0 0.0
        %1812 = vmatprep.subr.mxu0 0.0
        %1813 = vmatpush1.msra.mxu0 0.0
        %1814 = vmatprep.subr.mxu0 0.0
        %1815 = vmatpush1.msra.mxu0 0.0
        %1816 = vmatprep.subr.mxu0 0.0
        %1817 = vmatpush1.msra.mxu0 0.0
        %1818 = vmatprep.subr.mxu0 0.0
        %1819 = vmatpush1.msra.mxu0 %v1536
        %1820 = vmatprep.subr.mxu0 0.0
        %1821 = vmatpush2.msra.mxu0 0.0
        %1822 = vmatprep.subr.mxu0 0.0
        %1823 = vmatpush2.msra.mxu0 0.0
        %1824 = vmatprep.subr.mxu0 0.0
        %1825 = vmatpush2.msra.mxu0 0.0
        %1826 = vmatprep.subr.mxu0 0.0
        %1827 = vmatpush2.msra.mxu0 0.0
        %1828 = vmatprep.subr.mxu0 0.0
        %1829 = vmatpush2.msra.mxu0 0.0
        %1830 = vmatprep.subr.mxu0 0.0
        %1831 = vmatpush2.msra.mxu0 0.0
        %1832 = vmatprep.subr.mxu0 0.0
        %1833 = vmatpush2.msra.mxu0 0.0
        %1834 = vmatprep.subr.mxu0 0.0
        %1835 = vmatpush2.msra.mxu0 0.0
        %1836 = vmatprep.subr.mxu0 0.0
        %1837 = vmatpush2.msra.mxu0 0.0
        %1838 = vmatprep.subr.mxu0 0.0
        %1839 = vmatpush2.msra.mxu0 0.0
        %1840 = vmatprep.subr.mxu0 0.0
        %1841 = vmatpush2.msra.mxu0 0.0
        %1842 = vmatprep.subr.mxu0 0.0
        %1843 = vmatpush2.msra.mxu0 0.0
        %1844 = vmatprep.subr.mxu0 0.0
        %1845 = vmatpush2.msra.mxu0 0.0
        %1846 = vmatprep.subr.mxu0 0.0
        %1847 = vmatpush2.msra.mxu0 0.0
        %1848 = vmatprep.subr.mxu0 0.0
        %1849 = vmatpush2.msra.mxu0 0.0
        %1850 = vmatprep.subr.mxu0 0.0
        %1851 = vmatpush2.msra.mxu0 0.0
        %1852 = vmatprep.mubr.f32.mxu0 0.0
        %1853 = vmatmul.mubr.f32.gmra.mxu0 %v1786
        %v1854 = vpop.f32.mrf.mxu0
        %v1855 = vadd.f32 %v1782, %v1854
        %v1856 = vpop.f32.mrf.mxu0
        %1857 = vdwg.mxu0
        %1858 = vrot.lane.b32.xlu0 %v1267, 112
        %v1859 = vpop.permute.xlu0 %1858
        %1860 = vrot.lane.b32.xlu0 %v1354, 112
        %v1861 = vpop.permute.xlu0 %1860
        %1862 = vrot.lane.b32.xlu0 %v1359, 112
        %v1863 = vpop.permute.xlu0 %1862
        %v1864 = vsel %vm1363, %v1859, 0
        %v1866 = vsel %vm1363, %v1861, 0
        %v1868 = vsel %vm1363, %v1863, 0
        %1870 = vmatprep.subr.mxu0 0.0
        %1871 = vmatpush1.xpose.msra.mxu0 0.0
        %1872 = vmatprep.subr.mxu0 0.0
        %1873 = vmatpush1.xpose.msra.mxu0 0.0
        %1874 = vmatprep.subr.mxu0 0.0
        %1875 = vmatpush1.xpose.msra.mxu0 0.0
        %1876 = vmatprep.subr.mxu0 0.0
        %1877 = vmatpush1.xpose.msra.mxu0 0.0
        %1878 = vmatprep.subr.mxu0 0.0
        %1879 = vmatpush1.xpose.msra.mxu0 0.0
        %1880 = vmatprep.subr.mxu0 0.0
        %1881 = vmatpush1.xpose.msra.mxu0 0.0
        %1882 = vmatprep.subr.mxu0 0.0
        %1883 = vmatpush1.xpose.msra.mxu0 0.0
        %1884 = vmatprep.subr.mxu0 0.0
        %1885 = vmatpush1.xpose.msra.mxu0 0.0
        %1886 = vmatprep.subr.mxu0 0.0
        %1887 = vmatpush1.xpose.msra.mxu0 0.0
        %1888 = vmatprep.subr.mxu0 0.0
        %1889 = vmatpush1.xpose.msra.mxu0 0.0
        %1890 = vmatprep.subr.mxu0 0.0
        %1891 = vmatpush1.xpose.msra.mxu0 0.0
        %1892 = vmatprep.subr.mxu0 0.0
        %1893 = vmatpush1.xpose.msra.mxu0 0.0
        %1894 = vmatprep.subr.mxu0 0.0
        %1895 = vmatpush1.xpose.msra.mxu0 0.0
        %1896 = vmatprep.subr.mxu0 0.0
        %1897 = vmatpush1.xpose.msra.mxu0 0.0
        %1898 = vmatprep.subr.mxu0 0.0
        %1899 = vmatpush1.xpose.msra.mxu0 %v1868
        %1900 = vmatprep.subr.mxu0 0.0
        %1901 = vmatpush1.xpose.msra.mxu0 %v1866
        %1902 = vmatprep.subr.mxu0 0.0
        %1903 = vmatpush2.xpose.msra.mxu0 0.0
        %1904 = vmatprep.subr.mxu0 0.0
        %1905 = vmatpush2.xpose.msra.mxu0 0.0
        %1906 = vmatprep.subr.mxu0 0.0
        %1907 = vmatpush2.xpose.msra.mxu0 0.0
        %1908 = vmatprep.subr.mxu0 0.0
        %1909 = vmatpush2.xpose.msra.mxu0 0.0
        %1910 = vmatprep.subr.mxu0 0.0
        %1911 = vmatpush2.xpose.msra.mxu0 0.0
        %1912 = vmatprep.subr.mxu0 0.0
        %1913 = vmatpush2.xpose.msra.mxu0 0.0
        %1914 = vmatprep.subr.mxu0 0.0
        %1915 = vmatpush2.xpose.msra.mxu0 0.0
        %1916 = vmatprep.subr.mxu0 0.0
        %1917 = vmatpush2.xpose.msra.mxu0 0.0
        %1918 = vmatprep.subr.mxu0 0.0
        %1919 = vmatpush2.xpose.msra.mxu0 0.0
        %1920 = vmatprep.subr.mxu0 0.0
        %1921 = vmatpush2.xpose.msra.mxu0 0.0
        %1922 = vmatprep.subr.mxu0 0.0
        %1923 = vmatpush2.xpose.msra.mxu0 0.0
        %1924 = vmatprep.subr.mxu0 0.0
        %1925 = vmatpush2.xpose.msra.mxu0 0.0
        %1926 = vmatprep.subr.mxu0 0.0
        %1927 = vmatpush2.xpose.msra.mxu0 0.0
        %1928 = vmatprep.subr.mxu0 0.0
        %1929 = vmatpush2.xpose.msra.mxu0 0.0
        %1930 = vmatprep.subr.mxu0 0.0
        %1931 = vmatpush2.xpose.msra.mxu0 0.0
        %1932 = vmatprep.subr.mxu0 0.0
        %1933 = vmatpush2.xpose.msra.mxu0 0.0
        %1934 = vmatprep.mubr.f32.mxu0 0.0
        %1935 = vmatmul.mubr.f32.gmra.mxu0 %v1864
        %v1936 = vpop.f32.mrf.mxu0
        %v1937 = vadd.f32 0.0, %v1936
        %v1938 = vpop.f32.mrf.mxu0
        %1939 = vdwg.mxu0
        %v1940 = vsel %vm1443, %v1937, -1e+10
        %v1941 = vsel %vm1445, %v1940, -inf
        %1942 = vmax.xlane.f32.xlu0 %v1941
        %v1943 = vpop.xlane.xlu0 %1942
        %v1944 = vsub.f32 %v1940, %v1943
        %v1945 = vmul.f32 %v1944, 1.442695
        %v1946 = vpow.pop %v1945
        %v1947 = vsel %vm1445, %v1946, 0.0
        %1948 = vadd.xlane.f32.xlu0 %v1947
        %v1949 = vpop.xlane.xlu0 %1948
        %v1950 = vrcp.pop %v1949
        %v1951 = vmul.f32 %v1946, %v1950
        %1952 = vrot.lane.b32.xlu0 %v1354, 80
        %v1953 = vpop.permute.xlu0 %1952
        %1954 = vrot.lane.b32.xlu0 %v1359, 80
        %v1955 = vpop.permute.xlu0 %1954
        %v1959 = vsel %vm1445, %v1951, 0
        %1961 = vmatprep.subr.mxu0 0.0
        %1962 = vmatpush1.msra.mxu0 0.0
        %1963 = vmatprep.subr.mxu0 0.0
        %1964 = vmatpush1.msra.mxu0 0.0
        %1965 = vmatprep.subr.mxu0 0.0
        %1966 = vmatpush1.msra.mxu0 0.0
        %1967 = vmatprep.subr.mxu0 0.0
        %1968 = vmatpush1.msra.mxu0 0.0
        %1969 = vmatprep.subr.mxu0 0.0
        %1970 = vmatpush1.msra.mxu0 0.0
        %1971 = vmatprep.subr.mxu0 0.0
        %1972 = vmatpush1.msra.mxu0 0.0
        %1973 = vmatprep.subr.mxu0 0.0
        %1974 = vmatpush1.msra.mxu0 0.0
        %1975 = vmatprep.subr.mxu0 0.0
        %1976 = vmatpush1.msra.mxu0 0.0
        %1977 = vmatprep.subr.mxu0 0.0
        %1978 = vmatpush1.msra.mxu0 0.0
        %1979 = vmatprep.subr.mxu0 0.0
        %1980 = vmatpush1.msra.mxu0 0.0
        %1981 = vmatprep.subr.mxu0 0.0
        %1982 = vmatpush1.msra.mxu0 0.0
        %1983 = vmatprep.subr.mxu0 0.0
        %1984 = vmatpush1.msra.mxu0 0.0
        %1985 = vmatprep.subr.mxu0 0.0
        %1986 = vmatpush1.msra.mxu0 0.0
        %1987 = vmatprep.subr.mxu0 0.0
        %1988 = vmatpush1.msra.mxu0 0.0
        %1989 = vmatprep.subr.mxu0 0.0
        %1990 = vmatpush1.msra.mxu0 %v1955
        %1991 = vmatprep.subr.mxu0 0.0
        %1992 = vmatpush1.msra.mxu0 %v1953
        %1993 = vmatprep.subr.mxu0 0.0
        %1994 = vmatpush2.msra.mxu0 0.0
        %1995 = vmatprep.subr.mxu0 0.0
        %1996 = vmatpush2.msra.mxu0 0.0
        %1997 = vmatprep.subr.mxu0 0.0
        %1998 = vmatpush2.msra.mxu0 0.0
        %1999 = vmatprep.subr.mxu0 0.0
        %2000 = vmatpush2.msra.mxu0 0.0
        %2001 = vmatprep.subr.mxu0 0.0
        %2002 = vmatpush2.msra.mxu0 0.0
        %2003 = vmatprep.subr.mxu0 0.0
        %2004 = vmatpush2.msra.mxu0 0.0
        %2005 = vmatprep.subr.mxu0 0.0
        %2006 = vmatpush2.msra.mxu0 0.0
        %2007 = vmatprep.subr.mxu0 0.0
        %2008 = vmatpush2.msra.mxu0 0.0
        %2009 = vmatprep.subr.mxu0 0.0
        %2010 = vmatpush2.msra.mxu0 0.0
        %2011 = vmatprep.subr.mxu0 0.0
        %2012 = vmatpush2.msra.mxu0 0.0
        %2013 = vmatprep.subr.mxu0 0.0
        %2014 = vmatpush2.msra.mxu0 0.0
        %2015 = vmatprep.subr.mxu0 0.0
        %2016 = vmatpush2.msra.mxu0 0.0
        %2017 = vmatprep.subr.mxu0 0.0
        %2018 = vmatpush2.msra.mxu0 0.0
        %2019 = vmatprep.subr.mxu0 0.0
        %2020 = vmatpush2.msra.mxu0 0.0
        %2021 = vmatprep.subr.mxu0 0.0
        %2022 = vmatpush2.msra.mxu0 0.0
        %2023 = vmatprep.subr.mxu0 0.0
        %2024 = vmatpush2.msra.mxu0 0.0
        %2025 = vmatprep.mubr.f32.mxu0 0.0
        %2026 = vmatmul.mubr.f32.gmra.mxu0 %v1959
        %v2027 = vpop.f32.mrf.mxu0
        %v2028 = vadd.f32 0.0, %v2027
        %v2029 = vpop.f32.mrf.mxu0
        %2030 = vdwg.mxu0
        %s2031 = scalar_lea.vmem [#allocation13], 16
        %v2032 = vld [vmem:[%s2031] sm:$0xff]
        %v2034 = vsel %vm1363, %v2028, 0
        %2036 = vmatprep.subr.mxu0 0.0
        %2037 = vmatpush1.msra.mxu0 0.0
        %2038 = vmatprep.subr.mxu0 0.0
        %2039 = vmatpush1.msra.mxu0 0.0
        %2040 = vmatprep.subr.mxu0 0.0
        %2041 = vmatpush1.msra.mxu0 0.0
        %2042 = vmatprep.subr.mxu0 0.0
        %2043 = vmatpush1.msra.mxu0 0.0
        %2044 = vmatprep.subr.mxu0 0.0
        %2045 = vmatpush1.msra.mxu0 0.0
        %2046 = vmatprep.subr.mxu0 0.0
        %2047 = vmatpush1.msra.mxu0 0.0
        %2048 = vmatprep.subr.mxu0 0.0
        %2049 = vmatpush1.msra.mxu0 0.0
        %2050 = vmatprep.subr.mxu0 0.0
        %2051 = vmatpush1.msra.mxu0 0.0
        %2052 = vmatprep.subr.mxu0 0.0
        %2053 = vmatpush1.msra.mxu0 0.0
        %2054 = vmatprep.subr.mxu0 0.0
        %2055 = vmatpush1.msra.mxu0 0.0
        %2056 = vmatprep.subr.mxu0 0.0
        %2057 = vmatpush1.msra.mxu0 0.0
        %2058 = vmatprep.subr.mxu0 0.0
        %2059 = vmatpush1.msra.mxu0 0.0
        %2060 = vmatprep.subr.mxu0 0.0
        %2061 = vmatpush1.msra.mxu0 0.0
        %2062 = vmatprep.subr.mxu0 0.0
        %2063 = vmatpush1.msra.mxu0 0.0
        %2064 = vmatprep.subr.mxu0 0.0
        %2065 = vmatpush1.msra.mxu0 0.0
        %2066 = vmatprep.subr.mxu0 0.0
        %2067 = vmatpush1.msra.mxu0 %v2032
        %2068 = vmatprep.subr.mxu0 0.0
        %2069 = vmatpush2.msra.mxu0 0.0
        %2070 = vmatprep.subr.mxu0 0.0
        %2071 = vmatpush2.msra.mxu0 0.0
        %2072 = vmatprep.subr.mxu0 0.0
        %2073 = vmatpush2.msra.mxu0 0.0
        %2074 = vmatprep.subr.mxu0 0.0
        %2075 = vmatpush2.msra.mxu0 0.0
        %2076 = vmatprep.subr.mxu0 0.0
        %2077 = vmatpush2.msra.mxu0 0.0
        %2078 = vmatprep.subr.mxu0 0.0
        %2079 = vmatpush2.msra.mxu0 0.0
        %2080 = vmatprep.subr.mxu0 0.0
        %2081 = vmatpush2.msra.mxu0 0.0
        %2082 = vmatprep.subr.mxu0 0.0
        %2083 = vmatpush2.msra.mxu0 0.0
        %2084 = vmatprep.subr.mxu0 0.0
        %2085 = vmatpush2.msra.mxu0 0.0
        %2086 = vmatprep.subr.mxu0 0.0
        %2087 = vmatpush2.msra.mxu0 0.0
        %2088 = vmatprep.subr.mxu0 0.0
        %2089 = vmatpush2.msra.mxu0 0.0
        %2090 = vmatprep.subr.mxu0 0.0
        %2091 = vmatpush2.msra.mxu0 0.0
        %2092 = vmatprep.subr.mxu0 0.0
        %2093 = vmatpush2.msra.mxu0 0.0
        %2094 = vmatprep.subr.mxu0 0.0
        %2095 = vmatpush2.msra.mxu0 0.0
        %2096 = vmatprep.subr.mxu0 0.0
        %2097 = vmatpush2.msra.mxu0 0.0
        %2098 = vmatprep.subr.mxu0 0.0
        %2099 = vmatpush2.msra.mxu0 0.0
        %2100 = vmatprep.mubr.f32.mxu0 0.0
        %2101 = vmatmul.mubr.f32.gmra.mxu0 %v2034
        %v2102 = vpop.f32.mrf.mxu0
        %v2103 = vadd.f32 0.0, %v2102
        %v2104 = vpop.f32.mrf.mxu0
        %2105 = vdwg.mxu0
        %v2106 = vadd.f32 %v1855, %v2103
        %2107 = vrot.lane.b32.xlu0 %v1267, 104
        %v2108 = vpop.permute.xlu0 %2107
        %2109 = vrot.lane.b32.xlu0 %v1354, 104
        %v2110 = vpop.permute.xlu0 %2109
        %2111 = vrot.lane.b32.xlu0 %v1359, 104
        %v2112 = vpop.permute.xlu0 %2111
        %v2113 = vsel %vm1363, %v2108, 0
        %v2115 = vsel %vm1363, %v2110, 0
        %v2117 = vsel %vm1363, %v2112, 0
        %2119 = vmatprep.subr.mxu0 0.0
        %2120 = vmatpush1.xpose.msra.mxu0 0.0
        %2121 = vmatprep.subr.mxu0 0.0
        %2122 = vmatpush1.xpose.msra.mxu0 0.0
        %2123 = vmatprep.subr.mxu0 0.0
        %2124 = vmatpush1.xpose.msra.mxu0 0.0
        %2125 = vmatprep.subr.mxu0 0.0
        %2126 = vmatpush1.xpose.msra.mxu0 0.0
        %2127 = vmatprep.subr.mxu0 0.0
        %2128 = vmatpush1.xpose.msra.mxu0 0.0
        %2129 = vmatprep.subr.mxu0 0.0
        %2130 = vmatpush1.xpose.msra.mxu0 0.0
        %2131 = vmatprep.subr.mxu0 0.0
        %2132 = vmatpush1.xpose.msra.mxu0 0.0
        %2133 = vmatprep.subr.mxu0 0.0
        %2134 = vmatpush1.xpose.msra.mxu0 0.0
        %2135 = vmatprep.subr.mxu0 0.0
        %2136 = vmatpush1.xpose.msra.mxu0 0.0
        %2137 = vmatprep.subr.mxu0 0.0
        %2138 = vmatpush1.xpose.msra.mxu0 0.0
        %2139 = vmatprep.subr.mxu0 0.0
        %2140 = vmatpush1.xpose.msra.mxu0 0.0
        %2141 = vmatprep.subr.mxu0 0.0
        %2142 = vmatpush1.xpose.msra.mxu0 0.0
        %2143 = vmatprep.subr.mxu0 0.0
        %2144 = vmatpush1.xpose.msra.mxu0 0.0
        %2145 = vmatprep.subr.mxu0 0.0
        %2146 = vmatpush1.xpose.msra.mxu0 0.0
        %2147 = vmatprep.subr.mxu0 0.0
        %2148 = vmatpush1.xpose.msra.mxu0 %v2117
        %2149 = vmatprep.subr.mxu0 0.0
        %2150 = vmatpush1.xpose.msra.mxu0 %v2115
        %2151 = vmatprep.subr.mxu0 0.0
        %2152 = vmatpush2.xpose.msra.mxu0 0.0
        %2153 = vmatprep.subr.mxu0 0.0
        %2154 = vmatpush2.xpose.msra.mxu0 0.0
        %2155 = vmatprep.subr.mxu0 0.0
        %2156 = vmatpush2.xpose.msra.mxu0 0.0
        %2157 = vmatprep.subr.mxu0 0.0
        %2158 = vmatpush2.xpose.msra.mxu0 0.0
        %2159 = vmatprep.subr.mxu0 0.0
        %2160 = vmatpush2.xpose.msra.mxu0 0.0
        %2161 = vmatprep.subr.mxu0 0.0
        %2162 = vmatpush2.xpose.msra.mxu0 0.0
        %2163 = vmatprep.subr.mxu0 0.0
        %2164 = vmatpush2.xpose.msra.mxu0 0.0
        %2165 = vmatprep.subr.mxu0 0.0
        %2166 = vmatpush2.xpose.msra.mxu0 0.0
        %2167 = vmatprep.subr.mxu0 0.0
        %2168 = vmatpush2.xpose.msra.mxu0 0.0
        %2169 = vmatprep.subr.mxu0 0.0
        %2170 = vmatpush2.xpose.msra.mxu0 0.0
        %2171 = vmatprep.subr.mxu0 0.0
        %2172 = vmatpush2.xpose.msra.mxu0 0.0
        %2173 = vmatprep.subr.mxu0 0.0
        %2174 = vmatpush2.xpose.msra.mxu0 0.0
        %2175 = vmatprep.subr.mxu0 0.0
        %2176 = vmatpush2.xpose.msra.mxu0 0.0
        %2177 = vmatprep.subr.mxu0 0.0
        %2178 = vmatpush2.xpose.msra.mxu0 0.0
        %2179 = vmatprep.subr.mxu0 0.0
        %2180 = vmatpush2.xpose.msra.mxu0 0.0
        %2181 = vmatprep.subr.mxu0 0.0
        %2182 = vmatpush2.xpose.msra.mxu0 0.0
        %2183 = vmatprep.mubr.f32.mxu0 0.0
        %2184 = vmatmul.mubr.f32.gmra.mxu0 %v2113
        %v2185 = vpop.f32.mrf.mxu0
        %v2186 = vadd.f32 0.0, %v2185
        %v2187 = vpop.f32.mrf.mxu0
        %2188 = vdwg.mxu0
        %v2189 = vsel %vm1443, %v2186, -1e+10
        %v2190 = vsel %vm1445, %v2189, -inf
        %2191 = vmax.xlane.f32.xlu0 %v2190
        %v2192 = vpop.xlane.xlu0 %2191
        %v2193 = vsub.f32 %v2189, %v2192
        %v2194 = vmul.f32 %v2193, 1.442695
        %v2195 = vpow.pop %v2194
        %v2196 = vsel %vm1445, %v2195, 0.0
        %2197 = vadd.xlane.f32.xlu0 %v2196
        %v2198 = vpop.xlane.xlu0 %2197
        %v2199 = vrcp.pop %v2198
        %v2200 = vmul.f32 %v2195, %v2199
        %2201 = vrot.lane.b32.xlu0 %v1354, 72
        %v2202 = vpop.permute.xlu0 %2201
        %2203 = vrot.lane.b32.xlu0 %v1359, 72
        %v2204 = vpop.permute.xlu0 %2203
        %v2208 = vsel %vm1445, %v2200, 0
        %2210 = vmatprep.subr.mxu0 0.0
        %2211 = vmatpush1.msra.mxu0 0.0
        %2212 = vmatprep.subr.mxu0 0.0
        %2213 = vmatpush1.msra.mxu0 0.0
        %2214 = vmatprep.subr.mxu0 0.0
        %2215 = vmatpush1.msra.mxu0 0.0
        %2216 = vmatprep.subr.mxu0 0.0
        %2217 = vmatpush1.msra.mxu0 0.0
        %2218 = vmatprep.subr.mxu0 0.0
        %2219 = vmatpush1.msra.mxu0 0.0
        %2220 = vmatprep.subr.mxu0 0.0
        %2221 = vmatpush1.msra.mxu0 0.0
        %2222 = vmatprep.subr.mxu0 0.0
        %2223 = vmatpush1.msra.mxu0 0.0
        %2224 = vmatprep.subr.mxu0 0.0
        %2225 = vmatpush1.msra.mxu0 0.0
        %2226 = vmatprep.subr.mxu0 0.0
        %2227 = vmatpush1.msra.mxu0 0.0
        %2228 = vmatprep.subr.mxu0 0.0
        %2229 = vmatpush1.msra.mxu0 0.0
        %2230 = vmatprep.subr.mxu0 0.0
        %2231 = vmatpush1.msra.mxu0 0.0
        %2232 = vmatprep.subr.mxu0 0.0
        %2233 = vmatpush1.msra.mxu0 0.0
        %2234 = vmatprep.subr.mxu0 0.0
        %2235 = vmatpush1.msra.mxu0 0.0
        %2236 = vmatprep.subr.mxu0 0.0
        %2237 = vmatpush1.msra.mxu0 0.0
        %2238 = vmatprep.subr.mxu0 0.0
        %2239 = vmatpush1.msra.mxu0 %v2204
        %2240 = vmatprep.subr.mxu0 0.0
        %2241 = vmatpush1.msra.mxu0 %v2202
        %2242 = vmatprep.subr.mxu0 0.0
        %2243 = vmatpush2.msra.mxu0 0.0
        %2244 = vmatprep.subr.mxu0 0.0
        %2245 = vmatpush2.msra.mxu0 0.0
        %2246 = vmatprep.subr.mxu0 0.0
        %2247 = vmatpush2.msra.mxu0 0.0
        %2248 = vmatprep.subr.mxu0 0.0
        %2249 = vmatpush2.msra.mxu0 0.0
        %2250 = vmatprep.subr.mxu0 0.0
        %2251 = vmatpush2.msra.mxu0 0.0
        %2252 = vmatprep.subr.mxu0 0.0
        %2253 = vmatpush2.msra.mxu0 0.0
        %2254 = vmatprep.subr.mxu0 0.0
        %2255 = vmatpush2.msra.mxu0 0.0
        %2256 = vmatprep.subr.mxu0 0.0
        %2257 = vmatpush2.msra.mxu0 0.0
        %2258 = vmatprep.subr.mxu0 0.0
        %2259 = vmatpush2.msra.mxu0 0.0
        %2260 = vmatprep.subr.mxu0 0.0
        %2261 = vmatpush2.msra.mxu0 0.0
        %2262 = vmatprep.subr.mxu0 0.0
        %2263 = vmatpush2.msra.mxu0 0.0
        %2264 = vmatprep.subr.mxu0 0.0
        %2265 = vmatpush2.msra.mxu0 0.0
        %2266 = vmatprep.subr.mxu0 0.0
        %2267 = vmatpush2.msra.mxu0 0.0
        %2268 = vmatprep.subr.mxu0 0.0
        %2269 = vmatpush2.msra.mxu0 0.0
        %2270 = vmatprep.subr.mxu0 0.0
        %2271 = vmatpush2.msra.mxu0 0.0
        %2272 = vmatprep.subr.mxu0 0.0
        %2273 = vmatpush2.msra.mxu0 0.0
        %2274 = vmatprep.mubr.f32.mxu0 0.0
        %2275 = vmatmul.mubr.f32.gmra.mxu0 %v2208
        %v2276 = vpop.f32.mrf.mxu0
        %v2277 = vadd.f32 0.0, %v2276
        %v2278 = vpop.f32.mrf.mxu0
        %2279 = vdwg.mxu0
        %s2280 = scalar_lea.vmem [#allocation13], 24
        %v2281 = vld [vmem:[%s2280] sm:$0xff]
        %v2283 = vsel %vm1363, %v2277, 0
        %2285 = vmatprep.subr.mxu0 0.0
        %2286 = vmatpush1.msra.mxu0 0.0
        %2287 = vmatprep.subr.mxu0 0.0
        %2288 = vmatpush1.msra.mxu0 0.0
        %2289 = vmatprep.subr.mxu0 0.0
        %2290 = vmatpush1.msra.mxu0 0.0
        %2291 = vmatprep.subr.mxu0 0.0
        %2292 = vmatpush1.msra.mxu0 0.0
        %2293 = vmatprep.subr.mxu0 0.0
        %2294 = vmatpush1.msra.mxu0 0.0
        %2295 = vmatprep.subr.mxu0 0.0
        %2296 = vmatpush1.msra.mxu0 0.0
        %2297 = vmatprep.subr.mxu0 0.0
        %2298 = vmatpush1.msra.mxu0 0.0
        %2299 = vmatprep.subr.mxu0 0.0
        %2300 = vmatpush1.msra.mxu0 0.0
        %2301 = vmatprep.subr.mxu0 0.0
        %2302 = vmatpush1.msra.mxu0 0.0
        %2303 = vmatprep.subr.mxu0 0.0
        %2304 = vmatpush1.msra.mxu0 0.0
        %2305 = vmatprep.subr.mxu0 0.0
        %2306 = vmatpush1.msra.mxu0 0.0
        %2307 = vmatprep.subr.mxu0 0.0
        %2308 = vmatpush1.msra.mxu0 0.0
        %2309 = vmatprep.subr.mxu0 0.0
        %2310 = vmatpush1.msra.mxu0 0.0
        %2311 = vmatprep.subr.mxu0 0.0
        %2312 = vmatpush1.msra.mxu0 0.0
        %2313 = vmatprep.subr.mxu0 0.0
        %2314 = vmatpush1.msra.mxu0 0.0
        %2315 = vmatprep.subr.mxu0 0.0
        %2316 = vmatpush1.msra.mxu0 %v2281
        %2317 = vmatprep.subr.mxu0 0.0
        %2318 = vmatpush2.msra.mxu0 0.0
        %2319 = vmatprep.subr.mxu0 0.0
        %2320 = vmatpush2.msra.mxu0 0.0
        %2321 = vmatprep.subr.mxu0 0.0
        %2322 = vmatpush2.msra.mxu0 0.0
        %2323 = vmatprep.subr.mxu0 0.0
        %2324 = vmatpush2.msra.mxu0 0.0
        %2325 = vmatprep.subr.mxu0 0.0
        %2326 = vmatpush2.msra.mxu0 0.0
        %2327 = vmatprep.subr.mxu0 0.0
        %2328 = vmatpush2.msra.mxu0 0.0
        %2329 = vmatprep.subr.mxu0 0.0
        %2330 = vmatpush2.msra.mxu0 0.0
        %2331 = vmatprep.subr.mxu0 0.0
        %2332 = vmatpush2.msra.mxu0 0.0
        %2333 = vmatprep.subr.mxu0 0.0
        %2334 = vmatpush2.msra.mxu0 0.0
        %2335 = vmatprep.subr.mxu0 0.0
        %2336 = vmatpush2.msra.mxu0 0.0
        %2337 = vmatprep.subr.mxu0 0.0
        %2338 = vmatpush2.msra.mxu0 0.0
        %2339 = vmatprep.subr.mxu0 0.0
        %2340 = vmatpush2.msra.mxu0 0.0
        %2341 = vmatprep.subr.mxu0 0.0
        %2342 = vmatpush2.msra.mxu0 0.0
        %2343 = vmatprep.subr.mxu0 0.0
        %2344 = vmatpush2.msra.mxu0 0.0
        %2345 = vmatprep.subr.mxu0 0.0
        %2346 = vmatpush2.msra.mxu0 0.0
        %2347 = vmatprep.subr.mxu0 0.0
        %2348 = vmatpush2.msra.mxu0 0.0
        %2349 = vmatprep.mubr.f32.mxu0 0.0
        %2350 = vmatmul.mubr.f32.gmra.mxu0 %v2283
        %v2351 = vpop.f32.mrf.mxu0
        %v2352 = vadd.f32 0.0, %v2351
        %v2353 = vpop.f32.mrf.mxu0
        %2354 = vdwg.mxu0
        %v2355 = vadd.f32 %v2106, %v2352
        %v2356 = vld [vmem:[#allocation14] sm:$0x1]
        %v2358 = vlaneseq
        %v2359 = vshrl.u32 %v2358, 7
        %v2360 = vsub.s32 0, %v2359
        %v2361 = vrot.slane %v2356, %v2360
        %v2363 = vadd.f32 %v2355, %v2361
        %v2364 = vadd.f32 %v1180, %v2363
        %v2365 = vsel %vm1196, %v2364, 0.0
        %2366 = vadd.xlane.f32.xlu0 %v2365
        %v2367 = vpop.xlane.xlu0 %2366
        %v2368 = vrcp.pop 32.0
        %v2369 = vmul.f32 %v2367, %v2368
        %v2370 = vsub.f32 %v2364, %v2369
        %v2371 = vmul.f32 %v2370, %v2370
        %v2372 = vsel %vm1196, %v2371, 0.0
        %2373 = vadd.xlane.f32.xlu0 %v2372
        %v2374 = vpop.xlane.xlu0 %2373
        %v2375 = vmul.f32 %v2374, %v2368
        %v2376 = vadd.f32 %v2375, 1e-05
        %v2377 = vrsqrt.pop %v2376
        %v2378 = vmul.f32 %v2370, %v2377
        %v2379 = vld [vmem:[#allocation16] sm:$0x1]
        %v2381 = vlaneseq
        %v2382 = vshrl.u32 %v2381, 7
        %v2383 = vsub.s32 0, %v2382
        %v2384 = vrot.slane %v2379, %v2383
        %v2386 = vmul.f32 %v2378, %v2384
        %v2387 = vld [vmem:[#allocation17] sm:$0x1]
        %v2389 = vlaneseq
        %v2390 = vshrl.u32 %v2389, 7
        %v2391 = vsub.s32 0, %v2390
        %v2392 = vrot.slane %v2387, %v2391
        %v2394 = vadd.f32 %v2386, %v2392
        %v2395 = vld [vmem:[#allocation19] sm:$0xff]
        %v2396 = vld [vmem:[#allocation19 + $0x8] sm:$0xff]
        %v2397 = vld [vmem:[#allocation19 + $0x10] sm:$0xff]
        %v2398 = vld [vmem:[#allocation19 + $0x18] sm:$0xff]
        %v2399 = vld [vmem:[#allocation20] sm:$0x1]
        %v2401 = vlaneseq
        %v2402 = vshrl.u32 %v2401, 7
        %v2403 = vsub.s32 0, %v2402
        %v2404 = vrot.slane %v2399, %v2403
        %v2407 = vsel %vm1196, %v2394, 0
        %2409 = vmatprep.subr.mxu0 0.0
        %2410 = vmatpush1.msra.mxu0 0.0
        %2411 = vmatprep.subr.mxu0 0.0
        %2412 = vmatpush1.msra.mxu0 0.0
        %2413 = vmatprep.subr.mxu0 0.0
        %2414 = vmatpush1.msra.mxu0 0.0
        %2415 = vmatprep.subr.mxu0 0.0
        %2416 = vmatpush1.msra.mxu0 0.0
        %2417 = vmatprep.subr.mxu0 0.0
        %2418 = vmatpush1.msra.mxu0 0.0
        %2419 = vmatprep.subr.mxu0 0.0
        %2420 = vmatpush1.msra.mxu0 0.0
        %2421 = vmatprep.subr.mxu0 0.0
        %2422 = vmatpush1.msra.mxu0 0.0
        %2423 = vmatprep.subr.mxu0 0.0
        %2424 = vmatpush1.msra.mxu0 0.0
        %2425 = vmatprep.subr.mxu0 0.0
        %2426 = vmatpush1.msra.mxu0 0.0
        %2427 = vmatprep.subr.mxu0 0.0
        %2428 = vmatpush1.msra.mxu0 0.0
        %2429 = vmatprep.subr.mxu0 0.0
        %2430 = vmatpush1.msra.mxu0 0.0
        %2431 = vmatprep.subr.mxu0 0.0
        %2432 = vmatpush1.msra.mxu0 0.0
        %2433 = vmatprep.subr.mxu0 0.0
        %2434 = vmatpush1.msra.mxu0 %v2398
        %2435 = vmatprep.subr.mxu0 0.0
        %2436 = vmatpush1.msra.mxu0 %v2397
        %2437 = vmatprep.subr.mxu0 0.0
        %2438 = vmatpush1.msra.mxu0 %v2396
        %2439 = vmatprep.subr.mxu0 0.0
        %2440 = vmatpush1.msra.mxu0 %v2395
        %2441 = vmatprep.subr.mxu0 0.0
        %2442 = vmatpush2.msra.mxu0 0.0
        %2443 = vmatprep.subr.mxu0 0.0
        %2444 = vmatpush2.msra.mxu0 0.0
        %2445 = vmatprep.subr.mxu0 0.0
        %2446 = vmatpush2.msra.mxu0 0.0
        %2447 = vmatprep.subr.mxu0 0.0
        %2448 = vmatpush2.msra.mxu0 0.0
        %2449 = vmatprep.subr.mxu0 0.0
        %2450 = vmatpush2.msra.mxu0 0.0
        %2451 = vmatprep.subr.mxu0 0.0
        %2452 = vmatpush2.msra.mxu0 0.0
        %2453 = vmatprep.subr.mxu0 0.0
        %2454 = vmatpush2.msra.mxu0 0.0
        %2455 = vmatprep.subr.mxu0 0.0
        %2456 = vmatpush2.msra.mxu0 0.0
        %2457 = vmatprep.subr.mxu0 0.0
        %2458 = vmatpush2.msra.mxu0 0.0
        %2459 = vmatprep.subr.mxu0 0.0
        %2460 = vmatpush2.msra.mxu0 0.0
        %2461 = vmatprep.subr.mxu0 0.0
        %2462 = vmatpush2.msra.mxu0 0.0
        %2463 = vmatprep.subr.mxu0 0.0
        %2464 = vmatpush2.msra.mxu0 0.0
        %2465 = vmatprep.subr.mxu0 0.0
        %2466 = vmatpush2.msra.mxu0 0.0
        %2467 = vmatprep.subr.mxu0 0.0
        %2468 = vmatpush2.msra.mxu0 0.0
        %2469 = vmatprep.subr.mxu0 0.0
        %2470 = vmatpush2.msra.mxu0 0.0
        %2471 = vmatprep.subr.mxu0 0.0
        %2472 = vmatpush2.msra.mxu0 0.0
        %2473 = vmatprep.mubr.f32.mxu0 0.0
        %2474 = vmatmul.mubr.f32.gmra.mxu0 %v2407
        %v2475 = vpop.f32.mrf.mxu0
        %v2476 = vadd.f32 %v2404, %v2475
        %v2477 = vpop.f32.mrf.mxu0
        %2478 = vdwg.mxu0
        %v2479 = vld [vmem:[#allocation22] sm:$0xff]
        %v2480 = vld [vmem:[#allocation22 + $0x8] sm:$0xff]
        %v2481 = vld [vmem:[#allocation22 + $0x10] sm:$0xff]
        %v2482 = vld [vmem:[#allocation22 + $0x18] sm:$0xff]
        %v2483 = vld [vmem:[#allocation23] sm:$0x1]
        %v2485 = vlaneseq
        %v2486 = vshrl.u32 %v2485, 7
        %v2487 = vsub.s32 0, %v2486
        %v2488 = vrot.slane %v2483, %v2487
        %v2491 = vsel %vm1196, %v1183, 0
        %v2494 = vsel %vm1196, %v1184, 0
        %2496 = vmatprep.subr.mxu0 0.0
        %2497 = vmatpush1.msra.mxu0 0.0
        %2498 = vmatprep.subr.mxu0 0.0
        %2499 = vmatpush1.msra.mxu0 0.0
        %2500 = vmatprep.subr.mxu0 0.0
        %2501 = vmatpush1.msra.mxu0 0.0
        %2502 = vmatprep.subr.mxu0 0.0
        %2503 = vmatpush1.msra.mxu0 0.0
        %2504 = vmatprep.subr.mxu0 0.0
        %2505 = vmatpush1.msra.mxu0 0.0
        %2506 = vmatprep.subr.mxu0 0.0
        %2507 = vmatpush1.msra.mxu0 0.0
        %2508 = vmatprep.subr.mxu0 0.0
        %2509 = vmatpush1.msra.mxu0 0.0
        %2510 = vmatprep.subr.mxu0 0.0
        %2511 = vmatpush1.msra.mxu0 0.0
        %2512 = vmatprep.subr.mxu0 0.0
        %2513 = vmatpush1.msra.mxu0 0.0
        %2514 = vmatprep.subr.mxu0 0.0
        %2515 = vmatpush1.msra.mxu0 0.0
        %2516 = vmatprep.subr.mxu0 0.0
        %2517 = vmatpush1.msra.mxu0 0.0
        %2518 = vmatprep.subr.mxu0 0.0
        %2519 = vmatpush1.msra.mxu0 0.0
        %2520 = vmatprep.subr.mxu0 0.0
        %2521 = vmatpush1.msra.mxu0 %v2482
        %2522 = vmatprep.subr.mxu0 0.0
        %2523 = vmatpush1.msra.mxu0 %v2481
        %2524 = vmatprep.subr.mxu0 0.0
        %2525 = vmatpush1.msra.mxu0 %v2480
        %2526 = vmatprep.subr.mxu0 0.0
        %2527 = vmatpush1.msra.mxu0 %v2479
        %2528 = vmatprep.subr.mxu0 0.0
        %2529 = vmatpush2.msra.mxu0 0.0
        %2530 = vmatprep.subr.mxu0 0.0
        %2531 = vmatpush2.msra.mxu0 0.0
        %2532 = vmatprep.subr.mxu0 0.0
        %2533 = vmatpush2.msra.mxu0 0.0
        %2534 = vmatprep.subr.mxu0 0.0
        %2535 = vmatpush2.msra.mxu0 0.0
        %2536 = vmatprep.subr.mxu0 0.0
        %2537 = vmatpush2.msra.mxu0 0.0
        %2538 = vmatprep.subr.mxu0 0.0
        %2539 = vmatpush2.msra.mxu0 0.0
        %2540 = vmatprep.subr.mxu0 0.0
        %2541 = vmatpush2.msra.mxu0 0.0
        %2542 = vmatprep.subr.mxu0 0.0
        %2543 = vmatpush2.msra.mxu0 0.0
        %2544 = vmatprep.subr.mxu0 0.0
        %2545 = vmatpush2.msra.mxu0 0.0
        %2546 = vmatprep.subr.mxu0 0.0
        %2547 = vmatpush2.msra.mxu0 0.0
        %2548 = vmatprep.subr.mxu0 0.0
        %2549 = vmatpush2.msra.mxu0 0.0
        %2550 = vmatprep.subr.mxu0 0.0
        %2551 = vmatpush2.msra.mxu0 0.0
        %2552 = vmatprep.subr.mxu0 0.0
        %2553 = vmatpush2.msra.mxu0 0.0
        %2554 = vmatprep.subr.mxu0 0.0
        %2555 = vmatpush2.msra.mxu0 0.0
        %2556 = vmatprep.subr.mxu0 0.0
        %2557 = vmatpush2.msra.mxu0 0.0
        %2558 = vmatprep.subr.mxu0 0.0
        %2559 = vmatpush2.msra.mxu0 0.0
        %2560 = vmatprep.mubr.f32.mxu0 0.0
        %2561 = vmatmul.mubr.f32.gmra.mxu0 %v2491
        %v2562 = vpop.f32.mrf.mxu0
        %v2563 = vadd.f32 %v2488, %v2562
        %v2564 = vpop.f32.mrf.mxu0
        %2565 = vmatprep.mubr.f32.mxu0 0.0
        %2566 = vmatmul.mubr.f32.gmra.mxu0 %v2494
        %v2567 = vpop.f32.mrf.mxu0
        %v2568 = vadd.f32 %v2488, %v2567
        %v2569 = vpop.f32.mrf.mxu0
        %2570 = vdwg.mxu0
        %v2571 = vld [vmem:[%s1006] sm:$0x1]
        %v2573 = vlaneseq
        %v2574 = vshrl.u32 %v2573, 7
        %v2575 = vsub.s32 0, %v2574
        %v2576 = vrot.slane %v2571, %v2575
        %v2579 = vsel %vm1363, %v2476, 0
        %v2582 = vsel %vm1363, %v2563, 0
        %v2585 = vsel %vm1363, %v2568, 0
        %2587 = vmatprep.subr.mxu0 0.0
        %2588 = vmatpush1.xpose.msra.mxu0 0.0
        %2589 = vmatprep.subr.mxu0 0.0
        %2590 = vmatpush1.xpose.msra.mxu0 0.0
        %2591 = vmatprep.subr.mxu0 0.0
        %2592 = vmatpush1.xpose.msra.mxu0 0.0
        %2593 = vmatprep.subr.mxu0 0.0
        %2594 = vmatpush1.xpose.msra.mxu0 0.0
        %2595 = vmatprep.subr.mxu0 0.0
        %2596 = vmatpush1.xpose.msra.mxu0 0.0
        %2597 = vmatprep.subr.mxu0 0.0
        %2598 = vmatpush1.xpose.msra.mxu0 0.0
        %2599 = vmatprep.subr.mxu0 0.0
        %2600 = vmatpush1.xpose.msra.mxu0 0.0
        %2601 = vmatprep.subr.mxu0 0.0
        %2602 = vmatpush1.xpose.msra.mxu0 0.0
        %2603 = vmatprep.subr.mxu0 0.0
        %2604 = vmatpush1.xpose.msra.mxu0 0.0
        %2605 = vmatprep.subr.mxu0 0.0
        %2606 = vmatpush1.xpose.msra.mxu0 0.0
        %2607 = vmatprep.subr.mxu0 0.0
        %2608 = vmatpush1.xpose.msra.mxu0 0.0
        %2609 = vmatprep.subr.mxu0 0.0
        %2610 = vmatpush1.xpose.msra.mxu0 0.0
        %2611 = vmatprep.subr.mxu0 0.0
        %2612 = vmatpush1.xpose.msra.mxu0 0.0
        %2613 = vmatprep.subr.mxu0 0.0
        %2614 = vmatpush1.xpose.msra.mxu0 0.0
        %2615 = vmatprep.subr.mxu0 0.0
        %2616 = vmatpush1.xpose.msra.mxu0 %v2585
        %2617 = vmatprep.subr.mxu0 0.0
        %2618 = vmatpush1.xpose.msra.mxu0 %v2582
        %2619 = vmatprep.subr.mxu0 0.0
        %2620 = vmatpush2.xpose.msra.mxu0 0.0
        %2621 = vmatprep.subr.mxu0 0.0
        %2622 = vmatpush2.xpose.msra.mxu0 0.0
        %2623 = vmatprep.subr.mxu0 0.0
        %2624 = vmatpush2.xpose.msra.mxu0 0.0
        %2625 = vmatprep.subr.mxu0 0.0
        %2626 = vmatpush2.xpose.msra.mxu0 0.0
        %2627 = vmatprep.subr.mxu0 0.0
        %2628 = vmatpush2.xpose.msra.mxu0 0.0
        %2629 = vmatprep.subr.mxu0 0.0
        %2630 = vmatpush2.xpose.msra.mxu0 0.0
        %2631 = vmatprep.subr.mxu0 0.0
        %2632 = vmatpush2.xpose.msra.mxu0 0.0
        %2633 = vmatprep.subr.mxu0 0.0
        %2634 = vmatpush2.xpose.msra.mxu0 0.0
        %2635 = vmatprep.subr.mxu0 0.0
        %2636 = vmatpush2.xpose.msra.mxu0 0.0
        %2637 = vmatprep.subr.mxu0 0.0
        %2638 = vmatpush2.xpose.msra.mxu0 0.0
        %2639 = vmatprep.subr.mxu0 0.0
        %2640 = vmatpush2.xpose.msra.mxu0 0.0
        %2641 = vmatprep.subr.mxu0 0.0
        %2642 = vmatpush2.xpose.msra.mxu0 0.0
        %2643 = vmatprep.subr.mxu0 0.0
        %2644 = vmatpush2.xpose.msra.mxu0 0.0
        %2645 = vmatprep.subr.mxu0 0.0
        %2646 = vmatpush2.xpose.msra.mxu0 0.0
        %2647 = vmatprep.subr.mxu0 0.0
        %2648 = vmatpush2.xpose.msra.mxu0 0.0
        %2649 = vmatprep.subr.mxu0 0.0
        %2650 = vmatpush2.xpose.msra.mxu0 0.0
        %2651 = vmatprep.mubr.f32.mxu0 0.0
        %2652 = vmatmul.mubr.f32.gmra.mxu0 %v2579
        %v2653 = vpop.f32.mrf.mxu0
        %v2654 = vadd.f32 0.0, %v2653
        %v2655 = vpop.f32.mrf.mxu0
        %2656 = vdwg.mxu0
        %vm2657 = vcmp.ne.f32.partialorder %v2576, 0.0
        %v2658 = vsel %vm2657, %v2654, -1e+10
        %v2659 = vsel %vm1445, %v2658, -inf
        %2660 = vmax.xlane.f32.xlu0 %v2659
        %v2661 = vpop.xlane.xlu0 %2660
        %v2662 = vsub.f32 %v2658, %v2661
        %v2663 = vmul.f32 %v2662, 1.442695
        %v2664 = vpow.pop %v2663
        %v2665 = vsel %vm1445, %v2664, 0.0
        %2666 = vadd.xlane.f32.xlu0 %v2665
        %v2667 = vpop.xlane.xlu0 %2666
        %v2668 = vrcp.pop %v2667
        %v2669 = vmul.f32 %v2664, %v2668
        %2670 = vst.msk [vmem:[%s1161] sm:$0xff] %vm1445, %v2669
        %2671 = vrot.lane.b32.xlu0 %v2563, 96
        %v2672 = vpop.permute.xlu0 %2671
        %2673 = vrot.lane.b32.xlu0 %v2568, 96
        %v2674 = vpop.permute.xlu0 %2673
        %v2678 = vsel %vm1445, %v2669, 0
        %2680 = vmatprep.subr.mxu0 0.0
        %2681 = vmatpush1.msra.mxu0 0.0
        %2682 = vmatprep.subr.mxu0 0.0
        %2683 = vmatpush1.msra.mxu0 0.0
        %2684 = vmatprep.subr.mxu0 0.0
        %2685 = vmatpush1.msra.mxu0 0.0
        %2686 = vmatprep.subr.mxu0 0.0
        %2687 = vmatpush1.msra.mxu0 0.0
        %2688 = vmatprep.subr.mxu0 0.0
        %2689 = vmatpush1.msra.mxu0 0.0
        %2690 = vmatprep.subr.mxu0 0.0
        %2691 = vmatpush1.msra.mxu0 0.0
        %2692 = vmatprep.subr.mxu0 0.0
        %2693 = vmatpush1.msra.mxu0 0.0
        %2694 = vmatprep.subr.mxu0 0.0
        %2695 = vmatpush1.msra.mxu0 0.0
        %2696 = vmatprep.subr.mxu0 0.0
        %2697 = vmatpush1.msra.mxu0 0.0
        %2698 = vmatprep.subr.mxu0 0.0
        %2699 = vmatpush1.msra.mxu0 0.0
        %2700 = vmatprep.subr.mxu0 0.0
        %2701 = vmatpush1.msra.mxu0 0.0
        %2702 = vmatprep.subr.mxu0 0.0
        %2703 = vmatpush1.msra.mxu0 0.0
        %2704 = vmatprep.subr.mxu0 0.0
        %2705 = vmatpush1.msra.mxu0 0.0
        %2706 = vmatprep.subr.mxu0 0.0
        %2707 = vmatpush1.msra.mxu0 0.0
        %2708 = vmatprep.subr.mxu0 0.0
        %2709 = vmatpush1.msra.mxu0 %v2674
        %2710 = vmatprep.subr.mxu0 0.0
        %2711 = vmatpush1.msra.mxu0 %v2672
        %2712 = vmatprep.subr.mxu0 0.0
        %2713 = vmatpush2.msra.mxu0 0.0
        %2714 = vmatprep.subr.mxu0 0.0
        %2715 = vmatpush2.msra.mxu0 0.0
        %2716 = vmatprep.subr.mxu0 0.0
        %2717 = vmatpush2.msra.mxu0 0.0
        %2718 = vmatprep.subr.mxu0 0.0
        %2719 = vmatpush2.msra.mxu0 0.0
        %2720 = vmatprep.subr.mxu0 0.0
        %2721 = vmatpush2.msra.mxu0 0.0
        %2722 = vmatprep.subr.mxu0 0.0
        %2723 = vmatpush2.msra.mxu0 0.0
        %2724 = vmatprep.subr.mxu0 0.0
        %2725 = vmatpush2.msra.mxu0 0.0
        %2726 = vmatprep.subr.mxu0 0.0
        %2727 = vmatpush2.msra.mxu0 0.0
        %2728 = vmatprep.subr.mxu0 0.0
        %2729 = vmatpush2.msra.mxu0 0.0
        %2730 = vmatprep.subr.mxu0 0.0
        %2731 = vmatpush2.msra.mxu0 0.0
        %2732 = vmatprep.subr.mxu0 0.0
        %2733 = vmatpush2.msra.mxu0 0.0
        %2734 = vmatprep.subr.mxu0 0.0
        %2735 = vmatpush2.msra.mxu0 0.0
        %2736 = vmatprep.subr.mxu0 0.0
        %2737 = vmatpush2.msra.mxu0 0.0
        %2738 = vmatprep.subr.mxu0 0.0
        %2739 = vmatpush2.msra.mxu0 0.0
        %2740 = vmatprep.subr.mxu0 0.0
        %2741 = vmatpush2.msra.mxu0 0.0
        %2742 = vmatprep.subr.mxu0 0.0
        %2743 = vmatpush2.msra.mxu0 0.0
        %2744 = vmatprep.mubr.f32.mxu0 0.0
        %2745 = vmatmul.mubr.f32.gmra.mxu0 %v2678
        %v2746 = vpop.f32.mrf.mxu0
        %v2747 = vadd.f32 0.0, %v2746
        %v2748 = vpop.f32.mrf.mxu0
        %2749 = vdwg.mxu0
        %v2750 = vld [vmem:[#allocation25] sm:$0xff]
        %2751 = vrot.lane.b32.xlu0 %v2476, 120
        %v2752 = vpop.permute.xlu0 %2751
        %2753 = vrot.lane.b32.xlu0 %v2563, 120
        %v2754 = vpop.permute.xlu0 %2753
        %2755 = vrot.lane.b32.xlu0 %v2568, 120
        %v2756 = vpop.permute.xlu0 %2755
        %v2757 = vsel %vm1363, %v2752, 0
        %v2759 = vsel %vm1363, %v2754, 0
        %v2761 = vsel %vm1363, %v2756, 0
        %2763 = vmatprep.subr.mxu0 0.0
        %2764 = vmatpush1.xpose.msra.mxu0 0.0
        %2765 = vmatprep.subr.mxu0 0.0
        %2766 = vmatpush1.xpose.msra.mxu0 0.0
        %2767 = vmatprep.subr.mxu0 0.0
        %2768 = vmatpush1.xpose.msra.mxu0 0.0
        %2769 = vmatprep.subr.mxu0 0.0
        %2770 = vmatpush1.xpose.msra.mxu0 0.0
        %2771 = vmatprep.subr.mxu0 0.0
        %2772 = vmatpush1.xpose.msra.mxu0 0.0
        %2773 = vmatprep.subr.mxu0 0.0
        %2774 = vmatpush1.xpose.msra.mxu0 0.0
        %2775 = vmatprep.subr.mxu0 0.0
        %2776 = vmatpush1.xpose.msra.mxu0 0.0
        %2777 = vmatprep.subr.mxu0 0.0
        %2778 = vmatpush1.xpose.msra.mxu0 0.0
        %2779 = vmatprep.subr.mxu0 0.0
        %2780 = vmatpush1.xpose.msra.mxu0 0.0
        %2781 = vmatprep.subr.mxu0 0.0
        %2782 = vmatpush1.xpose.msra.mxu0 0.0
        %2783 = vmatprep.subr.mxu0 0.0
        %2784 = vmatpush1.xpose.msra.mxu0 0.0
        %2785 = vmatprep.subr.mxu0 0.0
        %2786 = vmatpush1.xpose.msra.mxu0 0.0
        %2787 = vmatprep.subr.mxu0 0.0
        %2788 = vmatpush1.xpose.msra.mxu0 0.0
        %2789 = vmatprep.subr.mxu0 0.0
        %2790 = vmatpush1.xpose.msra.mxu0 0.0
        %2791 = vmatprep.subr.mxu0 0.0
        %2792 = vmatpush1.xpose.msra.mxu0 %v2761
        %2793 = vmatprep.subr.mxu0 0.0
        %2794 = vmatpush1.xpose.msra.mxu0 %v2759
        %2795 = vmatprep.subr.mxu0 0.0
        %2796 = vmatpush2.xpose.msra.mxu0 0.0
        %2797 = vmatprep.subr.mxu0 0.0
        %2798 = vmatpush2.xpose.msra.mxu0 0.0
        %2799 = vmatprep.subr.mxu0 0.0
        %2800 = vmatpush2.xpose.msra.mxu0 0.0
        %2801 = vmatprep.subr.mxu0 0.0
        %2802 = vmatpush2.xpose.msra.mxu0 0.0
        %2803 = vmatprep.subr.mxu0 0.0
        %2804 = vmatpush2.xpose.msra.mxu0 0.0
        %2805 = vmatprep.subr.mxu0 0.0
        %2806 = vmatpush2.xpose.msra.mxu0 0.0
        %2807 = vmatprep.subr.mxu0 0.0
        %2808 = vmatpush2.xpose.msra.mxu0 0.0
        %2809 = vmatprep.subr.mxu0 0.0
        %2810 = vmatpush2.xpose.msra.mxu0 0.0
        %2811 = vmatprep.subr.mxu0 0.0
        %2812 = vmatpush2.xpose.msra.mxu0 0.0
        %2813 = vmatprep.subr.mxu0 0.0
        %2814 = vmatpush2.xpose.msra.mxu0 0.0
        %2815 = vmatprep.subr.mxu0 0.0
        %2816 = vmatpush2.xpose.msra.mxu0 0.0
        %2817 = vmatprep.subr.mxu0 0.0
        %2818 = vmatpush2.xpose.msra.mxu0 0.0
        %2819 = vmatprep.subr.mxu0 0.0
        %2820 = vmatpush2.xpose.msra.mxu0 0.0
        %2821 = vmatprep.subr.mxu0 0.0
        %2822 = vmatpush2.xpose.msra.mxu0 0.0
        %2823 = vmatprep.subr.mxu0 0.0
        %2824 = vmatpush2.xpose.msra.mxu0 0.0
        %2825 = vmatprep.subr.mxu0 0.0
        %2826 = vmatpush2.xpose.msra.mxu0 0.0
        %2827 = vmatprep.mubr.f32.mxu0 0.0
        %2828 = vmatmul.mubr.f32.gmra.mxu0 %v2757
        %v2829 = vpop.f32.mrf.mxu0
        %v2830 = vadd.f32 0.0, %v2829
        %v2831 = vpop.f32.mrf.mxu0
        %2832 = vdwg.mxu0
        %v2833 = vsel %vm2657, %v2830, -1e+10
        %v2834 = vsel %vm1445, %v2833, -inf
        %2835 = vmax.xlane.f32.xlu0 %v2834
        %v2836 = vpop.xlane.xlu0 %2835
        %v2837 = vsub.f32 %v2833, %v2836
        %v2838 = vmul.f32 %v2837, 1.442695
        %v2839 = vpow.pop %v2838
        %v2840 = vsel %vm1445, %v2839, 0.0
        %2841 = vadd.xlane.f32.xlu0 %v2840
        %v2842 = vpop.xlane.xlu0 %2841
        %v2843 = vrcp.pop %v2842
        %v2844 = vmul.f32 %v2839, %v2843
        %s2845 = scalar_lea.vmem %s1161, 8 [#allocation29]
        %2846 = vst.msk [vmem:[%s2845] sm:$0xff] %vm1445, %v2844
        %2847 = vrot.lane.b32.xlu0 %v2563, 88
        %v2848 = vpop.permute.xlu0 %2847
        %2849 = vrot.lane.b32.xlu0 %v2568, 88
        %v2850 = vpop.permute.xlu0 %2849
        %v2854 = vsel %vm1445, %v2844, 0
        %2856 = vmatprep.subr.mxu0 0.0
        %2857 = vmatpush1.msra.mxu0 0.0
        %2858 = vmatprep.subr.mxu0 0.0
        %2859 = vmatpush1.msra.mxu0 0.0
        %2860 = vmatprep.subr.mxu0 0.0
        %2861 = vmatpush1.msra.mxu0 0.0
        %2862 = vmatprep.subr.mxu0 0.0
        %2863 = vmatpush1.msra.mxu0 0.0
        %2864 = vmatprep.subr.mxu0 0.0
        %2865 = vmatpush1.msra.mxu0 0.0
        %2866 = vmatprep.subr.mxu0 0.0
        %2867 = vmatpush1.msra.mxu0 0.0
        %2868 = vmatprep.subr.mxu0 0.0
        %2869 = vmatpush1.msra.mxu0 0.0
        %2870 = vmatprep.subr.mxu0 0.0
        %2871 = vmatpush1.msra.mxu0 0.0
        %2872 = vmatprep.subr.mxu0 0.0
        %2873 = vmatpush1.msra.mxu0 0.0
        %2874 = vmatprep.subr.mxu0 0.0
        %2875 = vmatpush1.msra.mxu0 0.0
        %2876 = vmatprep.subr.mxu0 0.0
        %2877 = vmatpush1.msra.mxu0 0.0
        %2878 = vmatprep.subr.mxu0 0.0
        %2879 = vmatpush1.msra.mxu0 0.0
        %2880 = vmatprep.subr.mxu0 0.0
        %2881 = vmatpush1.msra.mxu0 0.0
        %2882 = vmatprep.subr.mxu0 0.0
        %2883 = vmatpush1.msra.mxu0 0.0
        %2884 = vmatprep.subr.mxu0 0.0
        %2885 = vmatpush1.msra.mxu0 %v2850
        %2886 = vmatprep.subr.mxu0 0.0
        %2887 = vmatpush1.msra.mxu0 %v2848
        %2888 = vmatprep.subr.mxu0 0.0
        %2889 = vmatpush2.msra.mxu0 0.0
        %2890 = vmatprep.subr.mxu0 0.0
        %2891 = vmatpush2.msra.mxu0 0.0
        %2892 = vmatprep.subr.mxu0 0.0
        %2893 = vmatpush2.msra.mxu0 0.0
        %2894 = vmatprep.subr.mxu0 0.0
        %2895 = vmatpush2.msra.mxu0 0.0
        %2896 = vmatprep.subr.mxu0 0.0
        %2897 = vmatpush2.msra.mxu0 0.0
        %2898 = vmatprep.subr.mxu0 0.0
        %2899 = vmatpush2.msra.mxu0 0.0
        %2900 = vmatprep.subr.mxu0 0.0
        %2901 = vmatpush2.msra.mxu0 0.0
        %2902 = vmatprep.subr.mxu0 0.0
        %2903 = vmatpush2.msra.mxu0 0.0
        %2904 = vmatprep.subr.mxu0 0.0
        %2905 = vmatpush2.msra.mxu0 0.0
        %2906 = vmatprep.subr.mxu0 0.0
        %2907 = vmatpush2.msra.mxu0 0.0
        %2908 = vmatprep.subr.mxu0 0.0
        %2909 = vmatpush2.msra.mxu0 0.0
        %2910 = vmatprep.subr.mxu0 0.0
        %2911 = vmatpush2.msra.mxu0 0.0
        %2912 = vmatprep.subr.mxu0 0.0
        %2913 = vmatpush2.msra.mxu0 0.0
        %2914 = vmatprep.subr.mxu0 0.0
        %2915 = vmatpush2.msra.mxu0 0.0
        %2916 = vmatprep.subr.mxu0 0.0
        %2917 = vmatpush2.msra.mxu0 0.0
        %2918 = vmatprep.subr.mxu0 0.0
        %2919 = vmatpush2.msra.mxu0 0.0
        %2920 = vmatprep.mubr.f32.mxu0 0.0
        %2921 = vmatmul.mubr.f32.gmra.mxu0 %v2854
        %v2922 = vpop.f32.mrf.mxu0
        %v2923 = vadd.f32 0.0, %v2922
        %v2924 = vpop.f32.mrf.mxu0
        %2925 = vdwg.mxu0
        %s2926 = scalar_lea.vmem [#allocation25], 8
        %v2927 = vld [vmem:[%s2926] sm:$0xff]
        %v2929 = vsel %vm1363, %v2923, 0
        %2931 = vmatprep.subr.mxu0 0.0
        %2932 = vmatpush1.msra.mxu0 0.0
        %2933 = vmatprep.subr.mxu0 0.0
        %2934 = vmatpush1.msra.mxu0 0.0
        %2935 = vmatprep.subr.mxu0 0.0
        %2936 = vmatpush1.msra.mxu0 0.0
        %2937 = vmatprep.subr.mxu0 0.0
        %2938 = vmatpush1.msra.mxu0 0.0
        %2939 = vmatprep.subr.mxu0 0.0
        %2940 = vmatpush1.msra.mxu0 0.0
        %2941 = vmatprep.subr.mxu0 0.0
        %2942 = vmatpush1.msra.mxu0 0.0
        %2943 = vmatprep.subr.mxu0 0.0
        %2944 = vmatpush1.msra.mxu0 0.0
        %2945 = vmatprep.subr.mxu0 0.0
        %2946 = vmatpush1.msra.mxu0 0.0
        %2947 = vmatprep.subr.mxu0 0.0
        %2948 = vmatpush1.msra.mxu0 0.0
        %2949 = vmatprep.subr.mxu0 0.0
        %2950 = vmatpush1.msra.mxu0 0.0
        %2951 = vmatprep.subr.mxu0 0.0
        %2952 = vmatpush1.msra.mxu0 0.0
        %2953 = vmatprep.subr.mxu0 0.0
        %2954 = vmatpush1.msra.mxu0 0.0
        %2955 = vmatprep.subr.mxu0 0.0
        %2956 = vmatpush1.msra.mxu0 0.0
        %2957 = vmatprep.subr.mxu0 0.0
        %2958 = vmatpush1.msra.mxu0 0.0
        %2959 = vmatprep.subr.mxu0 0.0
        %2960 = vmatpush1.msra.mxu0 0.0
        %2961 = vmatprep.subr.mxu0 0.0
        %2962 = vmatpush1.msra.mxu0 %v2927
        %2963 = vmatprep.subr.mxu0 0.0
        %2964 = vmatpush2.msra.mxu0 0.0
        %2965 = vmatprep.subr.mxu0 0.0
        %2966 = vmatpush2.msra.mxu0 0.0
        %2967 = vmatprep.subr.mxu0 0.0
        %2968 = vmatpush2.msra.mxu0 0.0
        %2969 = vmatprep.subr.mxu0 0.0
        %2970 = vmatpush2.msra.mxu0 0.0
        %2971 = vmatprep.subr.mxu0 0.0
        %2972 = vmatpush2.msra.mxu0 0.0
        %2973 = vmatprep.subr.mxu0 0.0
        %2974 = vmatpush2.msra.mxu0 0.0
        %2975 = vmatprep.subr.mxu0 0.0
        %2976 = vmatpush2.msra.mxu0 0.0
        %2977 = vmatprep.subr.mxu0 0.0
        %2978 = vmatpush2.msra.mxu0 0.0
        %2979 = vmatprep.subr.mxu0 0.0
        %2980 = vmatpush2.msra.mxu0 0.0
        %2981 = vmatprep.subr.mxu0 0.0
        %2982 = vmatpush2.msra.mxu0 0.0
        %2983 = vmatprep.subr.mxu0 0.0
        %2984 = vmatpush2.msra.mxu0 0.0
        %2985 = vmatprep.subr.mxu0 0.0
        %2986 = vmatpush2.msra.mxu0 0.0
        %2987 = vmatprep.subr.mxu0 0.0
        %2988 = vmatpush2.msra.mxu0 0.0
        %2989 = vmatprep.subr.mxu0 0.0
        %2990 = vmatpush2.msra.mxu0 0.0
        %2991 = vmatprep.subr.mxu0 0.0
        %2992 = vmatpush2.msra.mxu0 0.0
        %2993 = vmatprep.subr.mxu0 0.0
        %2994 = vmatpush2.msra.mxu0 0.0
        %2995 = vmatprep.mubr.f32.mxu0 0.0
        %2996 = vmatmul.mubr.f32.gmra.mxu0 %v2929
        %v2997 = vpop.f32.mrf.mxu0
        %v2998 = vadd.f32 0.0, %v2997
        %v2999 = vpop.f32.mrf.mxu0
        %3000 = vdwg.mxu0
        %v3002 = vsel %vm1363, %v2747, 0
        %3004 = vmatprep.subr.mxu0 0.0
        %3005 = vmatpush1.msra.mxu0 0.0
        %3006 = vmatprep.subr.mxu0 0.0
        %3007 = vmatpush1.msra.mxu0 0.0
        %3008 = vmatprep.subr.mxu0 0.0
        %3009 = vmatpush1.msra.mxu0 0.0
        %3010 = vmatprep.subr.mxu0 0.0
        %3011 = vmatpush1.msra.mxu0 0.0
        %3012 = vmatprep.subr.mxu0 0.0
        %3013 = vmatpush1.msra.mxu0 0.0
        %3014 = vmatprep.subr.mxu0 0.0
        %3015 = vmatpush1.msra.mxu0 0.0
        %3016 = vmatprep.subr.mxu0 0.0
        %3017 = vmatpush1.msra.mxu0 0.0
        %3018 = vmatprep.subr.mxu0 0.0
        %3019 = vmatpush1.msra.mxu0 0.0
        %3020 = vmatprep.subr.mxu0 0.0
        %3021 = vmatpush1.msra.mxu0 0.0
        %3022 = vmatprep.subr.mxu0 0.0
        %3023 = vmatpush1.msra.mxu0 0.0
        %3024 = vmatprep.subr.mxu0 0.0
        %3025 = vmatpush1.msra.mxu0 0.0
        %3026 = vmatprep.subr.mxu0 0.0
        %3027 = vmatpush1.msra.mxu0 0.0
        %3028 = vmatprep.subr.mxu0 0.0
        %3029 = vmatpush1.msra.mxu0 0.0
        %3030 = vmatprep.subr.mxu0 0.0
        %3031 = vmatpush1.msra.mxu0 0.0
        %3032 = vmatprep.subr.mxu0 0.0
        %3033 = vmatpush1.msra.mxu0 0.0
        %3034 = vmatprep.subr.mxu0 0.0
        %3035 = vmatpush1.msra.mxu0 %v2750
        %3036 = vmatprep.subr.mxu0 0.0
        %3037 = vmatpush2.msra.mxu0 0.0
        %3038 = vmatprep.subr.mxu0 0.0
        %3039 = vmatpush2.msra.mxu0 0.0
        %3040 = vmatprep.subr.mxu0 0.0
        %3041 = vmatpush2.msra.mxu0 0.0
        %3042 = vmatprep.subr.mxu0 0.0
        %3043 = vmatpush2.msra.mxu0 0.0
        %3044 = vmatprep.subr.mxu0 0.0
        %3045 = vmatpush2.msra.mxu0 0.0
        %3046 = vmatprep.subr.mxu0 0.0
        %3047 = vmatpush2.msra.mxu0 0.0
        %3048 = vmatprep.subr.mxu0 0.0
        %3049 = vmatpush2.msra.mxu0 0.0
        %3050 = vmatprep.subr.mxu0 0.0
        %3051 = vmatpush2.msra.mxu0 0.0
        %3052 = vmatprep.subr.mxu0 0.0
        %3053 = vmatpush2.msra.mxu0 0.0
        %3054 = vmatprep.subr.mxu0 0.0
        %3055 = vmatpush2.msra.mxu0 0.0
        %3056 = vmatprep.subr.mxu0 0.0
        %3057 = vmatpush2.msra.mxu0 0.0
        %3058 = vmatprep.subr.mxu0 0.0
        %3059 = vmatpush2.msra.mxu0 0.0
        %3060 = vmatprep.subr.mxu0 0.0
        %3061 = vmatpush2.msra.mxu0 0.0
        %3062 = vmatprep.subr.mxu0 0.0
        %3063 = vmatpush2.msra.mxu0 0.0
        %3064 = vmatprep.subr.mxu0 0.0
        %3065 = vmatpush2.msra.mxu0 0.0
        %3066 = vmatprep.subr.mxu0 0.0
        %3067 = vmatpush2.msra.mxu0 0.0
        %3068 = vmatprep.mubr.f32.mxu0 0.0
        %3069 = vmatmul.mubr.f32.gmra.mxu0 %v3002
        %v3070 = vpop.f32.mrf.mxu0
        %v3071 = vadd.f32 %v2998, %v3070
        %v3072 = vpop.f32.mrf.mxu0
        %3073 = vdwg.mxu0
        %3074 = vrot.lane.b32.xlu0 %v2476, 112
        %v3075 = vpop.permute.xlu0 %3074
        %3076 = vrot.lane.b32.xlu0 %v2563, 112
        %v3077 = vpop.permute.xlu0 %3076
        %3078 = vrot.lane.b32.xlu0 %v2568, 112
        %v3079 = vpop.permute.xlu0 %3078
        %v3080 = vsel %vm1363, %v3075, 0
        %v3082 = vsel %vm1363, %v3077, 0
        %v3084 = vsel %vm1363, %v3079, 0
        %3086 = vmatprep.subr.mxu0 0.0
        %3087 = vmatpush1.xpose.msra.mxu0 0.0
        %3088 = vmatprep.subr.mxu0 0.0
        %3089 = vmatpush1.xpose.msra.mxu0 0.0
        %3090 = vmatprep.subr.mxu0 0.0
        %3091 = vmatpush1.xpose.msra.mxu0 0.0
        %3092 = vmatprep.subr.mxu0 0.0
        %3093 = vmatpush1.xpose.msra.mxu0 0.0
        %3094 = vmatprep.subr.mxu0 0.0
        %3095 = vmatpush1.xpose.msra.mxu0 0.0
        %3096 = vmatprep.subr.mxu0 0.0
        %3097 = vmatpush1.xpose.msra.mxu0 0.0
        %3098 = vmatprep.subr.mxu0 0.0
        %3099 = vmatpush1.xpose.msra.mxu0 0.0
        %3100 = vmatprep.subr.mxu0 0.0
        %3101 = vmatpush1.xpose.msra.mxu0 0.0
        %3102 = vmatprep.subr.mxu0 0.0
        %3103 = vmatpush1.xpose.msra.mxu0 0.0
        %3104 = vmatprep.subr.mxu0 0.0
        %3105 = vmatpush1.xpose.msra.mxu0 0.0
        %3106 = vmatprep.subr.mxu0 0.0
        %3107 = vmatpush1.xpose.msra.mxu0 0.0
        %3108 = vmatprep.subr.mxu0 0.0
        %3109 = vmatpush1.xpose.msra.mxu0 0.0
        %3110 = vmatprep.subr.mxu0 0.0
        %3111 = vmatpush1.xpose.msra.mxu0 0.0
        %3112 = vmatprep.subr.mxu0 0.0
        %3113 = vmatpush1.xpose.msra.mxu0 0.0
        %3114 = vmatprep.subr.mxu0 0.0
        %3115 = vmatpush1.xpose.msra.mxu0 %v3084
        %3116 = vmatprep.subr.mxu0 0.0
        %3117 = vmatpush1.xpose.msra.mxu0 %v3082
        %3118 = vmatprep.subr.mxu0 0.0
        %3119 = vmatpush2.xpose.msra.mxu0 0.0
        %3120 = vmatprep.subr.mxu0 0.0
        %3121 = vmatpush2.xpose.msra.mxu0 0.0
        %3122 = vmatprep.subr.mxu0 0.0
        %3123 = vmatpush2.xpose.msra.mxu0 0.0
        %3124 = vmatprep.subr.mxu0 0.0
        %3125 = vmatpush2.xpose.msra.mxu0 0.0
        %3126 = vmatprep.subr.mxu0 0.0
        %3127 = vmatpush2.xpose.msra.mxu0 0.0
        %3128 = vmatprep.subr.mxu0 0.0
        %3129 = vmatpush2.xpose.msra.mxu0 0.0
        %3130 = vmatprep.subr.mxu0 0.0
        %3131 = vmatpush2.xpose.msra.mxu0 0.0
        %3132 = vmatprep.subr.mxu0 0.0
        %3133 = vmatpush2.xpose.msra.mxu0 0.0
        %3134 = vmatprep.subr.mxu0 0.0
        %3135 = vmatpush2.xpose.msra.mxu0 0.0
        %3136 = vmatprep.subr.mxu0 0.0
        %3137 = vmatpush2.xpose.msra.mxu0 0.0
        %3138 = vmatprep.subr.mxu0 0.0
        %3139 = vmatpush2.xpose.msra.mxu0 0.0
        %3140 = vmatprep.subr.mxu0 0.0
        %3141 = vmatpush2.xpose.msra.mxu0 0.0
        %3142 = vmatprep.subr.mxu0 0.0
        %3143 = vmatpush2.xpose.msra.mxu0 0.0
        %3144 = vmatprep.subr.mxu0 0.0
        %3145 = vmatpush2.xpose.msra.mxu0 0.0
        %3146 = vmatprep.subr.mxu0 0.0
        %3147 = vmatpush2.xpose.msra.mxu0 0.0
        %3148 = vmatprep.subr.mxu0 0.0
        %3149 = vmatpush2.xpose.msra.mxu0 0.0
        %3150 = vmatprep.mubr.f32.mxu0 0.0
        %3151 = vmatmul.mubr.f32.gmra.mxu0 %v3080
        %v3152 = vpop.f32.mrf.mxu0
        %v3153 = vadd.f32 0.0, %v3152
        %v3154 = vpop.f32.mrf.mxu0
        %3155 = vdwg.mxu0
        %v3156 = vsel %vm2657, %v3153, -1e+10
        %v3157 = vsel %vm1445, %v3156, -inf
        %3158 = vmax.xlane.f32.xlu0 %v3157
        %v3159 = vpop.xlane.xlu0 %3158
        %v3160 = vsub.f32 %v3156, %v3159
        %v3161 = vmul.f32 %v3160, 1.442695
        %v3162 = vpow.pop %v3161
        %v3163 = vsel %vm1445, %v3162, 0.0
        %3164 = vadd.xlane.f32.xlu0 %v3163
        %v3165 = vpop.xlane.xlu0 %3164
        %v3166 = vrcp.pop %v3165
        %v3167 = vmul.f32 %v3162, %v3166
        %s3168 = scalar_lea.vmem %s1161, 16 [#allocation29]
        %3169 = vst.msk [vmem:[%s3168] sm:$0xff] %vm1445, %v3167
        %3170 = vrot.lane.b32.xlu0 %v2563, 80
        %v3171 = vpop.permute.xlu0 %3170
        %3172 = vrot.lane.b32.xlu0 %v2568, 80
        %v3173 = vpop.permute.xlu0 %3172
        %v3177 = vsel %vm1445, %v3167, 0
        %3179 = vmatprep.subr.mxu0 0.0
        %3180 = vmatpush1.msra.mxu0 0.0
        %3181 = vmatprep.subr.mxu0 0.0
        %3182 = vmatpush1.msra.mxu0 0.0
        %3183 = vmatprep.subr.mxu0 0.0
        %3184 = vmatpush1.msra.mxu0 0.0
        %3185 = vmatprep.subr.mxu0 0.0
        %3186 = vmatpush1.msra.mxu0 0.0
        %3187 = vmatprep.subr.mxu0 0.0
        %3188 = vmatpush1.msra.mxu0 0.0
        %3189 = vmatprep.subr.mxu0 0.0
        %3190 = vmatpush1.msra.mxu0 0.0
        %3191 = vmatprep.subr.mxu0 0.0
        %3192 = vmatpush1.msra.mxu0 0.0
        %3193 = vmatprep.subr.mxu0 0.0
        %3194 = vmatpush1.msra.mxu0 0.0
        %3195 = vmatprep.subr.mxu0 0.0
        %3196 = vmatpush1.msra.mxu0 0.0
        %3197 = vmatprep.subr.mxu0 0.0
        %3198 = vmatpush1.msra.mxu0 0.0
        %3199 = vmatprep.subr.mxu0 0.0
        %3200 = vmatpush1.msra.mxu0 0.0
        %3201 = vmatprep.subr.mxu0 0.0
        %3202 = vmatpush1.msra.mxu0 0.0
        %3203 = vmatprep.subr.mxu0 0.0
        %3204 = vmatpush1.msra.mxu0 0.0
        %3205 = vmatprep.subr.mxu0 0.0
        %3206 = vmatpush1.msra.mxu0 0.0
        %3207 = vmatprep.subr.mxu0 0.0
        %3208 = vmatpush1.msra.mxu0 %v3173
        %3209 = vmatprep.subr.mxu0 0.0
        %3210 = vmatpush1.msra.mxu0 %v3171
        %3211 = vmatprep.subr.mxu0 0.0
        %3212 = vmatpush2.msra.mxu0 0.0
        %3213 = vmatprep.subr.mxu0 0.0
        %3214 = vmatpush2.msra.mxu0 0.0
        %3215 = vmatprep.subr.mxu0 0.0
        %3216 = vmatpush2.msra.mxu0 0.0
        %3217 = vmatprep.subr.mxu0 0.0
        %3218 = vmatpush2.msra.mxu0 0.0
        %3219 = vmatprep.subr.mxu0 0.0
        %3220 = vmatpush2.msra.mxu0 0.0
        %3221 = vmatprep.subr.mxu0 0.0
        %3222 = vmatpush2.msra.mxu0 0.0
        %3223 = vmatprep.subr.mxu0 0.0
        %3224 = vmatpush2.msra.mxu0 0.0
        %3225 = vmatprep.subr.mxu0 0.0
        %3226 = vmatpush2.msra.mxu0 0.0
        %3227 = vmatprep.subr.mxu0 0.0
        %3228 = vmatpush2.msra.mxu0 0.0
        %3229 = vmatprep.subr.mxu0 0.0
        %3230 = vmatpush2.msra.mxu0 0.0
        %3231 = vmatprep.subr.mxu0 0.0
        %3232 = vmatpush2.msra.mxu0 0.0
        %3233 = vmatprep.subr.mxu0 0.0
        %3234 = vmatpush2.msra.mxu0 0.0
        %3235 = vmatprep.subr.mxu0 0.0
        %3236 = vmatpush2.msra.mxu0 0.0
        %3237 = vmatprep.subr.mxu0 0.0
        %3238 = vmatpush2.msra.mxu0 0.0
        %3239 = vmatprep.subr.mxu0 0.0
        %3240 = vmatpush2.msra.mxu0 0.0
        %3241 = vmatprep.subr.mxu0 0.0
        %3242 = vmatpush2.msra.mxu0 0.0
        %3243 = vmatprep.mubr.f32.mxu0 0.0
        %3244 = vmatmul.mubr.f32.gmra.mxu0 %v3177
        %v3245 = vpop.f32.mrf.mxu0
        %v3246 = vadd.f32 0.0, %v3245
        %v3247 = vpop.f32.mrf.mxu0
        %3248 = vdwg.mxu0
        %s3249 = scalar_lea.vmem [#allocation25], 16
        %v3250 = vld [vmem:[%s3249] sm:$0xff]
        %v3252 = vsel %vm1363, %v3246, 0
        %3254 = vmatprep.subr.mxu0 0.0
        %3255 = vmatpush1.msra.mxu0 0.0
        %3256 = vmatprep.subr.mxu0 0.0
        %3257 = vmatpush1.msra.mxu0 0.0
        %3258 = vmatprep.subr.mxu0 0.0
        %3259 = vmatpush1.msra.mxu0 0.0
        %3260 = vmatprep.subr.mxu0 0.0
        %3261 = vmatpush1.msra.mxu0 0.0
        %3262 = vmatprep.subr.mxu0 0.0
        %3263 = vmatpush1.msra.mxu0 0.0
        %3264 = vmatprep.subr.mxu0 0.0
        %3265 = vmatpush1.msra.mxu0 0.0
        %3266 = vmatprep.subr.mxu0 0.0
        %3267 = vmatpush1.msra.mxu0 0.0
        %3268 = vmatprep.subr.mxu0 0.0
        %3269 = vmatpush1.msra.mxu0 0.0
        %3270 = vmatprep.subr.mxu0 0.0
        %3271 = vmatpush1.msra.mxu0 0.0
        %3272 = vmatprep.subr.mxu0 0.0
        %3273 = vmatpush1.msra.mxu0 0.0
        %3274 = vmatprep.subr.mxu0 0.0
        %3275 = vmatpush1.msra.mxu0 0.0
        %3276 = vmatprep.subr.mxu0 0.0
        %3277 = vmatpush1.msra.mxu0 0.0
        %3278 = vmatprep.subr.mxu0 0.0
        %3279 = vmatpush1.msra.mxu0 0.0
        %3280 = vmatprep.subr.mxu0 0.0
        %3281 = vmatpush1.msra.mxu0 0.0
        %3282 = vmatprep.subr.mxu0 0.0
        %3283 = vmatpush1.msra.mxu0 0.0
        %3284 = vmatprep.subr.mxu0 0.0
        %3285 = vmatpush1.msra.mxu0 %v3250
        %3286 = vmatprep.subr.mxu0 0.0
        %3287 = vmatpush2.msra.mxu0 0.0
        %3288 = vmatprep.subr.mxu0 0.0
        %3289 = vmatpush2.msra.mxu0 0.0
        %3290 = vmatprep.subr.mxu0 0.0
        %3291 = vmatpush2.msra.mxu0 0.0
        %3292 = vmatprep.subr.mxu0 0.0
        %3293 = vmatpush2.msra.mxu0 0.0
        %3294 = vmatprep.subr.mxu0 0.0
        %3295 = vmatpush2.msra.mxu0 0.0
        %3296 = vmatprep.subr.mxu0 0.0
        %3297 = vmatpush2.msra.mxu0 0.0
        %3298 = vmatprep.subr.mxu0 0.0
        %3299 = vmatpush2.msra.mxu0 0.0
        %3300 = vmatprep.subr.mxu0 0.0
        %3301 = vmatpush2.msra.mxu0 0.0
        %3302 = vmatprep.subr.mxu0 0.0
        %3303 = vmatpush2.msra.mxu0 0.0
        %3304 = vmatprep.subr.mxu0 0.0
        %3305 = vmatpush2.msra.mxu0 0.0
        %3306 = vmatprep.subr.mxu0 0.0
        %3307 = vmatpush2.msra.mxu0 0.0
        %3308 = vmatprep.subr.mxu0 0.0
        %3309 = vmatpush2.msra.mxu0 0.0
        %3310 = vmatprep.subr.mxu0 0.0
        %3311 = vmatpush2.msra.mxu0 0.0
        %3312 = vmatprep.subr.mxu0 0.0
        %3313 = vmatpush2.msra.mxu0 0.0
        %3314 = vmatprep.subr.mxu0 0.0
        %3315 = vmatpush2.msra.mxu0 0.0
        %3316 = vmatprep.subr.mxu0 0.0
        %3317 = vmatpush2.msra.mxu0 0.0
        %3318 = vmatprep.mubr.f32.mxu0 0.0
        %3319 = vmatmul.mubr.f32.gmra.mxu0 %v3252
        %v3320 = vpop.f32.mrf.mxu0
        %v3321 = vadd.f32 0.0, %v3320
        %v3322 = vpop.f32.mrf.mxu0
        %3323 = vdwg.mxu0
        %v3324 = vadd.f32 %v3071, %v3321
        %3325 = vrot.lane.b32.xlu0 %v2476, 104
        %v3326 = vpop.permute.xlu0 %3325
        %3327 = vrot.lane.b32.xlu0 %v2563, 104
        %v3328 = vpop.permute.xlu0 %3327
        %3329 = vrot.lane.b32.xlu0 %v2568, 104
        %v3330 = vpop.permute.xlu0 %3329
        %v3331 = vsel %vm1363, %v3326, 0
        %v3333 = vsel %vm1363, %v3328, 0
        %v3335 = vsel %vm1363, %v3330, 0
        %3337 = vmatprep.subr.mxu0 0.0
        %3338 = vmatpush1.xpose.msra.mxu0 0.0
        %3339 = vmatprep.subr.mxu0 0.0
        %3340 = vmatpush1.xpose.msra.mxu0 0.0
        %3341 = vmatprep.subr.mxu0 0.0
        %3342 = vmatpush1.xpose.msra.mxu0 0.0
        %3343 = vmatprep.subr.mxu0 0.0
        %3344 = vmatpush1.xpose.msra.mxu0 0.0
        %3345 = vmatprep.subr.mxu0 0.0
        %3346 = vmatpush1.xpose.msra.mxu0 0.0
        %3347 = vmatprep.subr.mxu0 0.0
        %3348 = vmatpush1.xpose.msra.mxu0 0.0
        %3349 = vmatprep.subr.mxu0 0.0
        %3350 = vmatpush1.xpose.msra.mxu0 0.0
        %3351 = vmatprep.subr.mxu0 0.0
        %3352 = vmatpush1.xpose.msra.mxu0 0.0
        %3353 = vmatprep.subr.mxu0 0.0
        %3354 = vmatpush1.xpose.msra.mxu0 0.0
        %3355 = vmatprep.subr.mxu0 0.0
        %3356 = vmatpush1.xpose.msra.mxu0 0.0
        %3357 = vmatprep.subr.mxu0 0.0
        %3358 = vmatpush1.xpose.msra.mxu0 0.0
        %3359 = vmatprep.subr.mxu0 0.0
        %3360 = vmatpush1.xpose.msra.mxu0 0.0
        %3361 = vmatprep.subr.mxu0 0.0
        %3362 = vmatpush1.xpose.msra.mxu0 0.0
        %3363 = vmatprep.subr.mxu0 0.0
        %3364 = vmatpush1.xpose.msra.mxu0 0.0
        %3365 = vmatprep.subr.mxu0 0.0
        %3366 = vmatpush1.xpose.msra.mxu0 %v3335
        %3367 = vmatprep.subr.mxu0 0.0
        %3368 = vmatpush1.xpose.msra.mxu0 %v3333
        %3369 = vmatprep.subr.mxu0 0.0
        %3370 = vmatpush2.xpose.msra.mxu0 0.0
        %3371 = vmatprep.subr.mxu0 0.0
        %3372 = vmatpush2.xpose.msra.mxu0 0.0
        %3373 = vmatprep.subr.mxu0 0.0
        %3374 = vmatpush2.xpose.msra.mxu0 0.0
        %3375 = vmatprep.subr.mxu0 0.0
        %3376 = vmatpush2.xpose.msra.mxu0 0.0
        %3377 = vmatprep.subr.mxu0 0.0
        %3378 = vmatpush2.xpose.msra.mxu0 0.0
        %3379 = vmatprep.subr.mxu0 0.0
        %3380 = vmatpush2.xpose.msra.mxu0 0.0
        %3381 = vmatprep.subr.mxu0 0.0
        %3382 = vmatpush2.xpose.msra.mxu0 0.0
        %3383 = vmatprep.subr.mxu0 0.0
        %3384 = vmatpush2.xpose.msra.mxu0 0.0
        %3385 = vmatprep.subr.mxu0 0.0
        %3386 = vmatpush2.xpose.msra.mxu0 0.0
        %3387 = vmatprep.subr.mxu0 0.0
        %3388 = vmatpush2.xpose.msra.mxu0 0.0
        %3389 = vmatprep.subr.mxu0 0.0
        %3390 = vmatpush2.xpose.msra.mxu0 0.0
        %3391 = vmatprep.subr.mxu0 0.0
        %3392 = vmatpush2.xpose.msra.mxu0 0.0
        %3393 = vmatprep.subr.mxu0 0.0
        %3394 = vmatpush2.xpose.msra.mxu0 0.0
        %3395 = vmatprep.subr.mxu0 0.0
        %3396 = vmatpush2.xpose.msra.mxu0 0.0
        %3397 = vmatprep.subr.mxu0 0.0
        %3398 = vmatpush2.xpose.msra.mxu0 0.0
        %3399 = vmatprep.subr.mxu0 0.0
        %3400 = vmatpush2.xpose.msra.mxu0 0.0
        %3401 = vmatprep.mubr.f32.mxu0 0.0
        %3402 = vmatmul.mubr.f32.gmra.mxu0 %v3331
        %v3403 = vpop.f32.mrf.mxu0
        %v3404 = vadd.f32 0.0, %v3403
        %v3405 = vpop.f32.mrf.mxu0
        %3406 = vdwg.mxu0
        %v3407 = vsel %vm2657, %v3404, -1e+10
        %v3408 = vsel %vm1445, %v3407, -inf
        %3409 = vmax.xlane.f32.xlu0 %v3408
        %v3410 = vpop.xlane.xlu0 %3409
        %v3411 = vsub.f32 %v3407, %v3410
        %v3412 = vmul.f32 %v3411, 1.442695
        %v3413 = vpow.pop %v3412
        %v3414 = vsel %vm1445, %v3413, 0.0
        %3415 = vadd.xlane.f32.xlu0 %v3414
        %v3416 = vpop.xlane.xlu0 %3415
        %v3417 = vrcp.pop %v3416
        %v3418 = vmul.f32 %v3413, %v3417
        %s3419 = scalar_lea.vmem %s1161, 24 [#allocation29]
        %3420 = vst.msk [vmem:[%s3419] sm:$0xff] %vm1445, %v3418
        %3421 = vrot.lane.b32.xlu0 %v2563, 72
        %v3422 = vpop.permute.xlu0 %3421
        %3423 = vrot.lane.b32.xlu0 %v2568, 72
        %v3424 = vpop.permute.xlu0 %3423
        %v3428 = vsel %vm1445, %v3418, 0
        %3430 = vmatprep.subr.mxu0 0.0
        %3431 = vmatpush1.msra.mxu0 0.0
        %3432 = vmatprep.subr.mxu0 0.0
        %3433 = vmatpush1.msra.mxu0 0.0
        %3434 = vmatprep.subr.mxu0 0.0
        %3435 = vmatpush1.msra.mxu0 0.0
        %3436 = vmatprep.subr.mxu0 0.0
        %3437 = vmatpush1.msra.mxu0 0.0
        %3438 = vmatprep.subr.mxu0 0.0
        %3439 = vmatpush1.msra.mxu0 0.0
        %3440 = vmatprep.subr.mxu0 0.0
        %3441 = vmatpush1.msra.mxu0 0.0
        %3442 = vmatprep.subr.mxu0 0.0
        %3443 = vmatpush1.msra.mxu0 0.0
        %3444 = vmatprep.subr.mxu0 0.0
        %3445 = vmatpush1.msra.mxu0 0.0
        %3446 = vmatprep.subr.mxu0 0.0
        %3447 = vmatpush1.msra.mxu0 0.0
        %3448 = vmatprep.subr.mxu0 0.0
        %3449 = vmatpush1.msra.mxu0 0.0
        %3450 = vmatprep.subr.mxu0 0.0
        %3451 = vmatpush1.msra.mxu0 0.0
        %3452 = vmatprep.subr.mxu0 0.0
        %3453 = vmatpush1.msra.mxu0 0.0
        %3454 = vmatprep.subr.mxu0 0.0
        %3455 = vmatpush1.msra.mxu0 0.0
        %3456 = vmatprep.subr.mxu0 0.0
        %3457 = vmatpush1.msra.mxu0 0.0
        %3458 = vmatprep.subr.mxu0 0.0
        %3459 = vmatpush1.msra.mxu0 %v3424
        %3460 = vmatprep.subr.mxu0 0.0
        %3461 = vmatpush1.msra.mxu0 %v3422
        %3462 = vmatprep.subr.mxu0 0.0
        %3463 = vmatpush2.msra.mxu0 0.0
        %3464 = vmatprep.subr.mxu0 0.0
        %3465 = vmatpush2.msra.mxu0 0.0
        %3466 = vmatprep.subr.mxu0 0.0
        %3467 = vmatpush2.msra.mxu0 0.0
        %3468 = vmatprep.subr.mxu0 0.0
        %3469 = vmatpush2.msra.mxu0 0.0
        %3470 = vmatprep.subr.mxu0 0.0
        %3471 = vmatpush2.msra.mxu0 0.0
        %3472 = vmatprep.subr.mxu0 0.0
        %3473 = vmatpush2.msra.mxu0 0.0
        %3474 = vmatprep.subr.mxu0 0.0
        %3475 = vmatpush2.msra.mxu0 0.0
        %3476 = vmatprep.subr.mxu0 0.0
        %3477 = vmatpush2.msra.mxu0 0.0
        %3478 = vmatprep.subr.mxu0 0.0
        %3479 = vmatpush2.msra.mxu0 0.0
        %3480 = vmatprep.subr.mxu0 0.0
        %3481 = vmatpush2.msra.mxu0 0.0
        %3482 = vmatprep.subr.mxu0 0.0
        %3483 = vmatpush2.msra.mxu0 0.0
        %3484 = vmatprep.subr.mxu0 0.0
        %3485 = vmatpush2.msra.mxu0 0.0
        %3486 = vmatprep.subr.mxu0 0.0
        %3487 = vmatpush2.msra.mxu0 0.0
        %3488 = vmatprep.subr.mxu0 0.0
        %3489 = vmatpush2.msra.mxu0 0.0
        %3490 = vmatprep.subr.mxu0 0.0
        %3491 = vmatpush2.msra.mxu0 0.0
        %3492 = vmatprep.subr.mxu0 0.0
        %3493 = vmatpush2.msra.mxu0 0.0
        %3494 = vmatprep.mubr.f32.mxu0 0.0
        %3495 = vmatmul.mubr.f32.gmra.mxu0 %v3428
        %v3496 = vpop.f32.mrf.mxu0
        %v3497 = vadd.f32 0.0, %v3496
        %v3498 = vpop.f32.mrf.mxu0
        %3499 = vdwg.mxu0
        %s3500 = scalar_lea.vmem [#allocation25], 24
        %v3501 = vld [vmem:[%s3500] sm:$0xff]
        %v3503 = vsel %vm1363, %v3497, 0
        %3505 = vmatprep.subr.mxu0 0.0
        %3506 = vmatpush1.msra.mxu0 0.0
        %3507 = vmatprep.subr.mxu0 0.0
        %3508 = vmatpush1.msra.mxu0 0.0
        %3509 = vmatprep.subr.mxu0 0.0
        %3510 = vmatpush1.msra.mxu0 0.0
        %3511 = vmatprep.subr.mxu0 0.0
        %3512 = vmatpush1.msra.mxu0 0.0
        %3513 = vmatprep.subr.mxu0 0.0
        %3514 = vmatpush1.msra.mxu0 0.0
        %3515 = vmatprep.subr.mxu0 0.0
        %3516 = vmatpush1.msra.mxu0 0.0
        %3517 = vmatprep.subr.mxu0 0.0
        %3518 = vmatpush1.msra.mxu0 0.0
        %3519 = vmatprep.subr.mxu0 0.0
        %3520 = vmatpush1.msra.mxu0 0.0
        %3521 = vmatprep.subr.mxu0 0.0
        %3522 = vmatpush1.msra.mxu0 0.0
        %3523 = vmatprep.subr.mxu0 0.0
        %3524 = vmatpush1.msra.mxu0 0.0
        %3525 = vmatprep.subr.mxu0 0.0
        %3526 = vmatpush1.msra.mxu0 0.0
        %3527 = vmatprep.subr.mxu0 0.0
        %3528 = vmatpush1.msra.mxu0 0.0
        %3529 = vmatprep.subr.mxu0 0.0
        %3530 = vmatpush1.msra.mxu0 0.0
        %3531 = vmatprep.subr.mxu0 0.0
        %3532 = vmatpush1.msra.mxu0 0.0
        %3533 = vmatprep.subr.mxu0 0.0
        %3534 = vmatpush1.msra.mxu0 0.0
        %3535 = vmatprep.subr.mxu0 0.0
        %3536 = vmatpush1.msra.mxu0 %v3501
        %3537 = vmatprep.subr.mxu0 0.0
        %3538 = vmatpush2.msra.mxu0 0.0
        %3539 = vmatprep.subr.mxu0 0.0
        %3540 = vmatpush2.msra.mxu0 0.0
        %3541 = vmatprep.subr.mxu0 0.0
        %3542 = vmatpush2.msra.mxu0 0.0
        %3543 = vmatprep.subr.mxu0 0.0
        %3544 = vmatpush2.msra.mxu0 0.0
        %3545 = vmatprep.subr.mxu0 0.0
        %3546 = vmatpush2.msra.mxu0 0.0
        %3547 = vmatprep.subr.mxu0 0.0
        %3548 = vmatpush2.msra.mxu0 0.0
        %3549 = vmatprep.subr.mxu0 0.0
        %3550 = vmatpush2.msra.mxu0 0.0
        %3551 = vmatprep.subr.mxu0 0.0
        %3552 = vmatpush2.msra.mxu0 0.0
        %3553 = vmatprep.subr.mxu0 0.0
        %3554 = vmatpush2.msra.mxu0 0.0
        %3555 = vmatprep.subr.mxu0 0.0
        %3556 = vmatpush2.msra.mxu0 0.0
        %3557 = vmatprep.subr.mxu0 0.0
        %3558 = vmatpush2.msra.mxu0 0.0
        %3559 = vmatprep.subr.mxu0 0.0
        %3560 = vmatpush2.msra.mxu0 0.0
        %3561 = vmatprep.subr.mxu0 0.0
        %3562 = vmatpush2.msra.mxu0 0.0
        %3563 = vmatprep.subr.mxu0 0.0
        %3564 = vmatpush2.msra.mxu0 0.0
        %3565 = vmatprep.subr.mxu0 0.0
        %3566 = vmatpush2.msra.mxu0 0.0
        %3567 = vmatprep.subr.mxu0 0.0
        %3568 = vmatpush2.msra.mxu0 0.0
        %3569 = vmatprep.mubr.f32.mxu0 0.0
        %3570 = vmatmul.mubr.f32.gmra.mxu0 %v3503
        %v3571 = vpop.f32.mrf.mxu0
        %v3572 = vadd.f32 0.0, %v3571
        %v3573 = vpop.f32.mrf.mxu0
        %3574 = vdwg.mxu0
        %v3575 = vadd.f32 %v3324, %v3572
        %v3576 = vld [vmem:[#allocation26] sm:$0x1]
        %v3578 = vlaneseq
        %v3579 = vshrl.u32 %v3578, 7
        %v3580 = vsub.s32 0, %v3579
        %v3581 = vrot.slane %v3576, %v3580
        %v3583 = vadd.f32 %v3575, %v3581
        %v3584 = vadd.f32 %v2394, %v3583
        %v3585 = vsel %vm1196, %v3584, 0.0
        %3586 = vadd.xlane.f32.xlu0 %v3585
        %v3587 = vpop.xlane.xlu0 %3586
        %v3588 = vmul.f32 %v3587, %v2368
        %v3589 = vsub.f32 %v3584, %v3588
        %v3590 = vmul.f32 %v3589, %v3589
        %v3591 = vsel %vm1196, %v3590, 0.0
        %3592 = vadd.xlane.f32.xlu0 %v3591
        %v3593 = vpop.xlane.xlu0 %3592
        %v3594 = vmul.f32 %v3593, %v2368
        %v3595 = vadd.f32 %v3594, 1e-05
        %v3596 = vrsqrt.pop %v3595
        %v3597 = vmul.f32 %v3589, %v3596
        %v3598 = vld [vmem:[%s19] sm:$0x1]
        %v3600 = vlaneseq
        %v3601 = vshrl.u32 %v3600, 7
        %v3602 = vsub.s32 0, %v3601
        %v3603 = vrot.slane %v3598, %v3602
        %v3605 = vmul.f32 %v3597, %v3603
        %v3606 = vld [vmem:[%s20] sm:$0x1]
        %v3608 = vlaneseq
        %v3609 = vshrl.u32 %v3608, 7
        %v3610 = vsub.s32 0, %v3609
        %v3611 = vrot.slane %v3606, %v3610
        %v3613 = vadd.f32 %v3605, %v3611
        %v3614 = vld [vmem:[%s21] sm:$0xff]
        %v3615 = vld [vmem:[%s21 + $0x8] sm:$0xff]
        %v3616 = vld [vmem:[%s21 + $0x10] sm:$0xff]
        %v3617 = vld [vmem:[%s21 + $0x18] sm:$0xff]
        %v3618 = vld [vmem:[%s22] sm:$0x1]
        %v3620 = vlaneseq
        %v3621 = vshrl.u32 %v3620, 7
        %v3622 = vsub.s32 0, %v3621
        %v3623 = vrot.slane %v3618, %v3622
        %v3626 = vsel %vm1196, %v3613, 0
        %3628 = vmatprep.subr.mxu0 0.0
        %3629 = vmatpush1.msra.mxu0 0.0
        %3630 = vmatprep.subr.mxu0 0.0
        %3631 = vmatpush1.msra.mxu0 0.0
        %3632 = vmatprep.subr.mxu0 0.0
        %3633 = vmatpush1.msra.mxu0 0.0
        %3634 = vmatprep.subr.mxu0 0.0
        %3635 = vmatpush1.msra.mxu0 0.0
        %3636 = vmatprep.subr.mxu0 0.0
        %3637 = vmatpush1.msra.mxu0 0.0
        %3638 = vmatprep.subr.mxu0 0.0
        %3639 = vmatpush1.msra.mxu0 0.0
        %3640 = vmatprep.subr.mxu0 0.0
        %3641 = vmatpush1.msra.mxu0 0.0
        %3642 = vmatprep.subr.mxu0 0.0
        %3643 = vmatpush1.msra.mxu0 0.0
        %3644 = vmatprep.subr.mxu0 0.0
        %3645 = vmatpush1.msra.mxu0 0.0
        %3646 = vmatprep.subr.mxu0 0.0
        %3647 = vmatpush1.msra.mxu0 0.0
        %3648 = vmatprep.subr.mxu0 0.0
        %3649 = vmatpush1.msra.mxu0 0.0
        %3650 = vmatprep.subr.mxu0 0.0
        %3651 = vmatpush1.msra.mxu0 0.0
        %3652 = vmatprep.subr.mxu0 0.0
        %3653 = vmatpush1.msra.mxu0 %v3617
        %3654 = vmatprep.subr.mxu0 0.0
        %3655 = vmatpush1.msra.mxu0 %v3616
        %3656 = vmatprep.subr.mxu0 0.0
        %3657 = vmatpush1.msra.mxu0 %v3615
        %3658 = vmatprep.subr.mxu0 0.0
        %3659 = vmatpush1.msra.mxu0 %v3614
        %3660 = vmatprep.subr.mxu0 0.0
        %3661 = vmatpush2.msra.mxu0 0.0
        %3662 = vmatprep.subr.mxu0 0.0
        %3663 = vmatpush2.msra.mxu0 0.0
        %3664 = vmatprep.subr.mxu0 0.0
        %3665 = vmatpush2.msra.mxu0 0.0
        %3666 = vmatprep.subr.mxu0 0.0
        %3667 = vmatpush2.msra.mxu0 0.0
        %3668 = vmatprep.subr.mxu0 0.0
        %3669 = vmatpush2.msra.mxu0 0.0
        %3670 = vmatprep.subr.mxu0 0.0
        %3671 = vmatpush2.msra.mxu0 0.0
        %3672 = vmatprep.subr.mxu0 0.0
        %3673 = vmatpush2.msra.mxu0 0.0
        %3674 = vmatprep.subr.mxu0 0.0
        %3675 = vmatpush2.msra.mxu0 0.0
        %3676 = vmatprep.subr.mxu0 0.0
        %3677 = vmatpush2.msra.mxu0 0.0
        %3678 = vmatprep.subr.mxu0 0.0
        %3679 = vmatpush2.msra.mxu0 0.0
        %3680 = vmatprep.subr.mxu0 0.0
        %3681 = vmatpush2.msra.mxu0 0.0
        %3682 = vmatprep.subr.mxu0 0.0
        %3683 = vmatpush2.msra.mxu0 0.0
        %3684 = vmatprep.subr.mxu0 0.0
        %3685 = vmatpush2.msra.mxu0 0.0
        %3686 = vmatprep.subr.mxu0 0.0
        %3687 = vmatpush2.msra.mxu0 0.0
        %3688 = vmatprep.subr.mxu0 0.0
        %3689 = vmatpush2.msra.mxu0 0.0
        %3690 = vmatprep.subr.mxu0 0.0
        %3691 = vmatpush2.msra.mxu0 0.0
        %3692 = vmatprep.mubr.f32.mxu0 0.0
        %3693 = vmatmul.mubr.f32.gmra.mxu0 %v3626
        %v3694 = vpop.f32.mrf.mxu0
        %v3695 = vadd.f32 %v3623, %v3694
        %v3696 = vpop.f32.mrf.mxu0
        %3697 = vdwg.mxu0
        %v3698 = vmax.f32 %v3695, 0.0
        %v3699 = vld [vmem:[%s23] sm:$0xff]
        %v3700 = vld [vmem:[%s23 + $0x8] sm:$0xff]
        %v3701 = vld [vmem:[%s23 + $0x10] sm:$0xff]
        %v3702 = vld [vmem:[%s23 + $0x18] sm:$0xff]
        %v3703 = vld [vmem:[%s23 + $0x20] sm:$0xff]
        %v3704 = vld [vmem:[%s23 + $0x28] sm:$0xff]
        %v3705 = vld [vmem:[%s23 + $0x30] sm:$0xff]
        %v3706 = vld [vmem:[%s23 + $0x38] sm:$0xff]
        %v3707 = vld [vmem:[%s24] sm:$0x1]
        %v3709 = vlaneseq
        %v3710 = vshrl.u32 %v3709, 7
        %v3711 = vsub.s32 0, %v3710
        %v3712 = vrot.slane %v3707, %v3711
        %vm3714 = vcmask 523264
        %v3716 = vsel %vm3714, %v3698, 0
        %3718 = vmatprep.subr.mxu0 0.0
        %3719 = vmatpush1.msra.mxu0 0.0
        %3720 = vmatprep.subr.mxu0 0.0
        %3721 = vmatpush1.msra.mxu0 0.0
        %3722 = vmatprep.subr.mxu0 0.0
        %3723 = vmatpush1.msra.mxu0 0.0
        %3724 = vmatprep.subr.mxu0 0.0
        %3725 = vmatpush1.msra.mxu0 0.0
        %3726 = vmatprep.subr.mxu0 0.0
        %3727 = vmatpush1.msra.mxu0 0.0
        %3728 = vmatprep.subr.mxu0 0.0
        %3729 = vmatpush1.msra.mxu0 0.0
        %3730 = vmatprep.subr.mxu0 0.0
        %3731 = vmatpush1.msra.mxu0 0.0
        %3732 = vmatprep.subr.mxu0 0.0
        %3733 = vmatpush1.msra.mxu0 0.0
        %3734 = vmatprep.subr.mxu0 0.0
        %3735 = vmatpush1.msra.mxu0 %v3706
        %3736 = vmatprep.subr.mxu0 0.0
        %3737 = vmatpush1.msra.mxu0 %v3705
        %3738 = vmatprep.subr.mxu0 0.0
        %3739 = vmatpush1.msra.mxu0 %v3704
        %3740 = vmatprep.subr.mxu0 0.0
        %3741 = vmatpush1.msra.mxu0 %v3703
        %3742 = vmatprep.subr.mxu0 0.0
        %3743 = vmatpush1.msra.mxu0 %v3702
        %3744 = vmatprep.subr.mxu0 0.0
        %3745 = vmatpush1.msra.mxu0 %v3701
        %3746 = vmatprep.subr.mxu0 0.0
        %3747 = vmatpush1.msra.mxu0 %v3700
        %3748 = vmatprep.subr.mxu0 0.0
        %3749 = vmatpush1.msra.mxu0 %v3699
        %3750 = vmatprep.subr.mxu0 0.0
        %3751 = vmatpush2.msra.mxu0 0.0
        %3752 = vmatprep.subr.mxu0 0.0
        %3753 = vmatpush2.msra.mxu0 0.0
        %3754 = vmatprep.subr.mxu0 0.0
        %3755 = vmatpush2.msra.mxu0 0.0
        %3756 = vmatprep.subr.mxu0 0.0
        %3757 = vmatpush2.msra.mxu0 0.0
        %3758 = vmatprep.subr.mxu0 0.0
        %3759 = vmatpush2.msra.mxu0 0.0
        %3760 = vmatprep.subr.mxu0 0.0
        %3761 = vmatpush2.msra.mxu0 0.0
        %3762 = vmatprep.subr.mxu0 0.0
        %3763 = vmatpush2.msra.mxu0 0.0
        %3764 = vmatprep.subr.mxu0 0.0
        %3765 = vmatpush2.msra.mxu0 0.0
        %3766 = vmatprep.subr.mxu0 0.0
        %3767 = vmatpush2.msra.mxu0 0.0
        %3768 = vmatprep.subr.mxu0 0.0
        %3769 = vmatpush2.msra.mxu0 0.0
        %3770 = vmatprep.subr.mxu0 0.0
        %3771 = vmatpush2.msra.mxu0 0.0
        %3772 = vmatprep.subr.mxu0 0.0
        %3773 = vmatpush2.msra.mxu0 0.0
        %3774 = vmatprep.subr.mxu0 0.0
        %3775 = vmatpush2.msra.mxu0 0.0
        %3776 = vmatprep.subr.mxu0 0.0
        %3777 = vmatpush2.msra.mxu0 0.0
        %3778 = vmatprep.subr.mxu0 0.0
        %3779 = vmatpush2.msra.mxu0 0.0
        %3780 = vmatprep.subr.mxu0 0.0
        %3781 = vmatpush2.msra.mxu0 0.0
        %3782 = vmatprep.mubr.f32.mxu0 0.0
        %3783 = vmatmul.mubr.f32.gmra.mxu0 %v3716
        %v3784 = vpop.f32.mrf.mxu0
        %v3785 = vadd.f32 %v3712, %v3784
        %v3786 = vpop.f32.mrf.mxu0
        %3787 = vdwg.mxu0
        %v3788 = vadd.f32 %v3613, %v3785
        %v3789 = vsel %vm1196, %v3788, 0.0
        %3790 = vadd.xlane.f32.xlu0 %v3789
        %v3791 = vpop.xlane.xlu0 %3790
        %v3792 = vmul.f32 %v3791, %v2368
        %v3793 = vsub.f32 %v3788, %v3792
        %v3794 = vmul.f32 %v3793, %v3793
        %v3795 = vsel %vm1196, %v3794, 0.0
        %3796 = vadd.xlane.f32.xlu0 %v3795
        %v3797 = vpop.xlane.xlu0 %3796
        %v3798 = vmul.f32 %v3797, %v2368
        %v3799 = vadd.f32 %v3798, 1e-05
        %v3800 = vrsqrt.pop %v3799
        %v3801 = vmul.f32 %v3793, %v3800
        %v3802 = vld [vmem:[%s25] sm:$0x1]
        %v3804 = vlaneseq
        %v3805 = vshrl.u32 %v3804, 7
        %v3806 = vsub.s32 0, %v3805
        %v3807 = vrot.slane %v3802, %v3806
        %v3809 = vmul.f32 %v3801, %v3807
        %v3810 = vld [vmem:[%s26] sm:$0x1]
        %v3812 = vlaneseq
        %v3813 = vshrl.u32 %v3812, 7
        %v3814 = vsub.s32 0, %v3813
        %v3815 = vrot.slane %v3810, %v3814
        %v3817 = vadd.f32 %v3809, %v3815
        %3818 = vst.msk [vmem:[%s1154] sm:$0xff] %vm1196, %v3817
        %s3819 = sand.u32 %s675, 1
        %s3820 = scalar_lea.sflag [#allocation4], %s3819
        %s3821 = sand.u32 %s675, 1
        %s3822 = smul.addr %s3821, 8
        %s3823 = scalar_lea.vmem [#allocation28], %s3822
        %s3824 = sand.u32 %s703, 1
        %s3825 = scalar_lea.sflag [#allocation30], %s3824
        %s3826 = sand.u32 %s703, 1
        %s3827 = smul.addr %s3826, 32
        %s3828 = scalar_lea.vmem [#allocation29], %s3827
        // Predicated region
        $region193: #{tpu_custom_call.1} parent=127 // pred_check
          %p3829 = pneg %p685
        $region194: #{tpu_custom_call.1} parent=127 // pred_check_branch
          %3831 = sbr.rel (%p3829) target = $region196
        $region195: #{tpu_custom_call.1} parent=127 // pred_region
          %s3833 = ssub.s32 128, 128
          %3834 = vsyncadd %s3820, %s3833
          %s3835 = smul.addr %s63, 2
          %s3836 = sadd.s32 %s64, %s3835
          %s3837 = smul.addr %s3836, 128
          %s3838 = scalar_lea.hbm %s27, %s3837
          %s3840 = sshll.u32 %s3823, 4
          %s3841 = int_to_ptr.vmem [resolvable:$true] %s3840
          %3843 = dma.vmem_to_hbm [thread:$0]  %s3841, 128, %s3838, %s3820
        $region196: #{tpu_custom_call.1} parent=127 // pred_fallthru
          _
        // Predicated region
        $region197: #{tpu_custom_call.1} parent=127 // pred_check
          %p3844 = pneg %p713
        $region198: #{tpu_custom_call.1} parent=127 // pred_check_branch
          %3846 = sbr.rel (%p3844) target = $region200
        $region199: #{tpu_custom_call.1} parent=127 // pred_region
          %s3848 = ssub.s32 512, 512
          %3849 = vsyncadd %s3825, %s3848
          %s3850 = smul.addr %s63, 8
          %s3851 = sadd.s32 %s64, %s3850
          %s3852 = smul.addr %s3851, 128
          %s3853 = scalar_lea.hbm %s28, %s3852
          %s3854 = sshll.u32 %s3828, 4
          %s3855 = int_to_ptr.vmem [resolvable:$true] %s3854
          %3860 = dma.vmem_to_hbm [thread:$0]  %s3855, 512, %s3853, %s3825, 128, 256, 8
        $region200: #{tpu_custom_call.1} parent=127 // pred_fallthru
          _
      $region128: #{tpu_custom_call.1} parent=5 // pred_fallthru
        _
      %p3861 = scmp.le.s32.totalorder 2, %s54
      // Predicated region
      $region201: #{tpu_custom_call.1} parent=5 // pred_check
        %p3862 = pneg %p3861
      $region202: #{tpu_custom_call.1} parent=5 // pred_check_branch
        %3864 = sbr.rel (%p3862) target = $region204
      $region203: #{tpu_custom_call.1} parent=5 // pred_region
        %s3865 = ssub.s32 %s54, 2
        // Predicated region
        $region205: #{tpu_custom_call.1} parent=203 // pred_check
          %p3866 = pneg %p691
        $region206: #{tpu_custom_call.1} parent=203 // pred_check_branch
          %3868 = sbr.rel (%p3866) target = $region208
        $region207: #{tpu_custom_call.1} parent=203 // pred_region
          %s3869 = sand.u32 %s676, 1
          %s3870 = scalar_lea.sflag [#allocation4], %s3869
          %s3871 = sand.u32 %s676, 1
          %s3872 = smul.addr %s3871, 8
          %s3873 = scalar_lea.vmem [#allocation28], %s3872
          %3874 = dma.done %s3870, 128
        $region208: #{tpu_custom_call.1} parent=203 // pred_fallthru
          _
        // Predicated region
        $region209: #{tpu_custom_call.1} parent=203 // pred_check
          %p3875 = pneg %p719
        $region210: #{tpu_custom_call.1} parent=203 // pred_check_branch
          %3877 = sbr.rel (%p3875) target = $region212
        $region211: #{tpu_custom_call.1} parent=203 // pred_region
          %s3878 = sand.u32 %s704, 1
          %s3879 = scalar_lea.sflag [#allocation30], %s3878
          %s3880 = sand.u32 %s704, 1
          %s3881 = smul.addr %s3880, 32
          %s3882 = scalar_lea.vmem [#allocation29], %s3881
          %3883 = dma.done %s3879, 512
        $region212: #{tpu_custom_call.1} parent=203 // pred_fallthru
          _
      $region204: #{tpu_custom_call.1} parent=5 // pred_fallthru
        _
    $region6: #{tpu_custom_call.1} parent=1 // loop_footer
      %s58 = sadd.s32 1, %s54
    $region7: #{tpu_custom_call.1} parent=1 // loop_footer_branch
      %53 = sbr.rel target = $region3
    $region8: #{tpu_custom_call.1} parent=1 // loop_exit
      _
    %3884 = vsyncpa [#allocation3], 1
    %s3885 = scalar_lea.sflag [#allocation3], 1
    %3886 = vsyncpa %s3885, 1
    %3887 = vsyncpa [#allocation6], 1
    %s3888 = scalar_lea.sflag [#allocation6], 1
    %3889 = vsyncpa %s3888, 1
    %3890 = vsyncpa [#allocation9], 1
    %3891 = vsyncpa [#allocation12], 1
    %3892 = vsyncpa [#allocation15], 1
    %3893 = vsyncpa [#allocation18], 1
    %3894 = vsyncpa [#allocation21], 1
    %3895 = vsyncpa [#allocation24], 1
    %3896 = vsyncpa [#allocation27], 1
    %3897 = vsyncpa [#allocation4], 1
    %s3898 = scalar_lea.sflag [#allocation4], 1
    %3899 = vsyncpa %s3898, 1
    %3900 = vsyncpa [#allocation30], 1
    %s3901 = scalar_lea.sflag [#allocation30], 1
    %3902 = vsyncpa %s3901, 1

</llo_original>
